<compile_context>
chip_gen: v5e
topology: v5e:2x2
jax: 0.10.0
libtpu: 0.0.40
codegen_flags: <defaults>
</compile_context>

<pallas_src>
import functools

import jax
import jax.numpy as jnp
from jax import lax
from jax.experimental import pallas as pl
from jax.experimental.pallas import tpu as pltpu

_INV_SQRT2 = 0.7071067811865475
_SQRT_2_OVER_PI = 0.7978845608028654
_LH = 8  # left halo width in the fallback (misaligned-slice) scratch layout


@functools.lru_cache(maxsize=None)
def _probe_roll(shape, dtype_name):
    """Probe pltpu.roll on a rank-4 value along the second-minor axis.

    Returns +1 / -1 = the pltpu shift sign that reproduces jnp.roll(x, +1),
    or None if the roll does not lower / does not match either direction.
    """
    dtype = jnp.dtype(dtype_name)

    def k(x_ref, o_ref):
        o_ref[...] = pltpu.roll(x_ref[...], 1, axis=2)

    try:
        x = jax.random.normal(jax.random.PRNGKey(1), shape, jnp.float32).astype(dtype)
        y = pl.pallas_call(k, out_shape=jax.ShapeDtypeStruct(shape, dtype))(x)
        y = jax.block_until_ready(y)
        if bool(jnp.array_equal(y, jnp.roll(x, 1, axis=2))):
            return 1
        if bool(jnp.array_equal(y, jnp.roll(x, -1, axis=2))):
            return -1
        return None
    except Exception:
        return None


def _mlp_dwconv_kernel(x_ref, w1_ref, b1_ref, wdw_ref, bdw_ref, w2_ref, b2_ref,
                       o_ref, pad_ref, *, H, W, TB, extra_relu, approx_gelu,
                       use_roll, roll_sign):
    """One batch-block (TB images) per grid step.

    x_ref   : (TB, N, Cin)                VMEM
    w1_ref  : (Cin, Ch)        bf16       VMEM
    b1_ref  : (1, Ch)          f32        VMEM
    wdw_ref : (3, 3, Ch)       conv_dtype VMEM   depthwise 3x3 kernel, HWC
    bdw_ref : (1, Ch)          conv_dtype VMEM
    w2_ref  : (Ch, Cout)       bf16       VMEM
    b2_ref  : (1, Cout)        f32        VMEM
    o_ref   : (TB, N, Cout)               VMEM
    pad_ref : (TB, H+2, Wp, Ch) conv_dtype VMEM scratch.  Feature maps live at
              rows 1..H, cols c0..c0+W-1 (c0 = 0 for the roll path, _LH for
              the fallback path).  Only the two halo rows are zeroed per step.
    """
    N = H * W
    Cin = x_ref.shape[-1]
    Ch = w1_ref.shape[1]
    conv_dtype = pad_ref.dtype

    # ---- fc1 (MXU, bf16 x bf16 -> f32 accumulate), M = TB*N rows ----
    x = x_ref[...].reshape(TB * N, Cin).astype(jnp.bfloat16)
    h = jnp.dot(x, w1_ref[...], preferred_element_type=jnp.float32)
    h = h + b1_ref[...]                                      # (TB*N, Ch) f32
    if extra_relu:
        h = jnp.maximum(h, 0.0)

    # ---- depthwise 3x3, stride 1, pad 1 ----
    c0 = 0 if use_roll else _LH
    zrow = jnp.zeros((TB, 1, W, Ch), conv_dtype)
    # Halo rows re-zeroed every step (tiny, aligned); see header note on why
    # this is NOT gated on program_id == 0.
    pad_ref[:, 0:1, c0:c0 + W, :] = zrow
    pad_ref[:, H + 1:H + 2, c0:c0 + W, :] = zrow
    pad_ref[:, 1:H + 1, c0:c0 + W, :] = h.reshape(TB, H, W, Ch).astype(conv_dtype)

    wdw = wdw_ref[...]                                       # (3, 3, Ch)

    if use_roll:
        # Single aligned load; the +/-1 W shifts run on the XLU.  Wrapped
        # columns carry interior data, masked out below.
        center = pad_ref[...]                                # (TB, H+2, W, Ch)
        left = pltpu.roll(center, roll_sign % W, axis=2)      # col j-1 at pos j
        right = pltpu.roll(center, (-roll_sign) % W, axis=2)  # col j+1 at pos j
    else:
        # Fallback: one aligned + two misaligned window loads; the left/right
        # windows read stale halo columns, masked out below.
        center = pad_ref[:, :, c0:c0 + W, :]
        left = pad_ref[:, :, c0 - 1:c0 - 1 + W, :]
        right = pad_ref[:, :, c0 + 1:c0 + 1 + W, :]

    def row_taps(win, dj):
        # Three H shifts are free leading-axis value slices; the first tap
        # initialises the accumulator (no zeros init).
        c = win[:, 0:H] * wdw[0, dj]
        c = c + win[:, 1:H + 1] * wdw[1, dj]
        c = c + win[:, 2:H + 2] * wdw[2, dj]
        return c

    col = lax.broadcasted_iota(jnp.int32, (W, Ch), 0)        # output column id
    zero = jnp.zeros((), conv_dtype)
    acc = row_taps(center, 1)                                          # center
    acc = acc + jnp.where(col == 0, zero, row_taps(left, 0))           # left
    acc = acc + jnp.where(col == W - 1, zero, row_taps(right, 2))      # right
    acc = acc + bdw_ref[...]                                 # (TB, H, W, Ch)

    # ---- GELU ----
    if approx_gelu:
        # tanh approximation -> EUP slot (frees VALU in the bound region).
        a = acc
        g = 0.5 * a * (1.0 + jnp.tanh(_SQRT_2_OVER_PI * (a + 0.044715 * a * a * a)))
    else:
        # exact erf GELU == torch.nn.GELU() default numerics (f32 math).
        a = acc.astype(jnp.float32)
        g = 0.5 * a * (1.0 + lax.erf(a * _INV_SQRT2))

    # ---- fc2 (MXU, bf16 x bf16 -> f32 accumulate) ----
    g2 = g.reshape(TB * N, Ch).astype(jnp.bfloat16)
    y = jnp.dot(g2, w2_ref[...], preferred_element_type=jnp.float32)
    y = y + b2_ref[...]                                      # (TB*N, Cout)

    # TODO(synk): dropout with p > 0 (module default drop=0.0 -> identity)
    # would need pltpu.prng_seed / prng_random_bits in-kernel.
    o_ref[...] = y.reshape(TB, N, -1).astype(o_ref.dtype)


def mlp_with_dwconv(x, params, feat_size, *, extra_relu=False, approx_gelu=False,
                    conv_dtype=jnp.float32, batch_block=None, use_roll=None,
                    vmem_limit_bytes=None):
    """x: (B, N, Cin) with N == feat_size[0] * feat_size[1].

    conv_dtype=jnp.bfloat16 is recommended on v6e/v7x (bf16 VPU/EUP); keep the
    float32 default on v5e.  For W not a multiple of 8 (e.g. PVTv2's 7x7 last
    stage) the (N,Ch)<->(H,W,Ch) reshapes cross (8,128) tiles and pay relayout
    copies; pad W to 8 upstream for that stage.
    """
    H, W = feat_size
    B, N, Cin = x.shape
    assert N == H * W
    w1, b1, wdw, bdw, w2, b2 = params
    Ch = w1.shape[1]
    Cout = w2.shape[1]

    # Cast MXU-feeding weights to bf16 once (f32 accumulation in-kernel);
    # conv weights/bias to the conv datapath dtype.
    w1 = w1.astype(jnp.bfloat16)
    w2 = w2.astype(jnp.bfloat16)
    b1 = b1.astype(jnp.float32)
    b2 = b2.astype(jnp.float32)
    wdw = wdw.astype(conv_dtype)
    bdw = bdw.astype(conv_dtype)

    # Batch several images per grid step at small N so the MXU M dim is >=128.
    if batch_block is None:
        batch_block = 1
        for tb in (8, 4, 2):
            if B % tb == 0 and tb * N <= 4096:
                batch_block = tb
                break
    TB = batch_block
    assert B % TB == 0

    # Probe roll support / direction once per (shape, dtype) on this backend.
    roll_sign = None
    if use_roll is None or use_roll:
        roll_sign = _probe_roll((TB, H + 2, W, Ch), jnp.dtype(conv_dtype).name)
    if use_roll is None:
        use_roll = roll_sign is not None
    if use_roll and roll_sign is None:
        use_roll = False
    if roll_sign is None:
        roll_sign = 1  # unused in the fallback path

    Wp = W if use_roll else (_LH + W + 8)

    kernel = functools.partial(
        _mlp_dwconv_kernel, H=H, W=W, TB=TB, extra_relu=extra_relu,
        approx_gelu=approx_gelu, use_roll=use_roll, roll_sign=roll_sign)

    # Footprint-derived VMEM limit (double-buffered x/o blocks + weights +
    # scratch), clamped to [32 MiB, 64 MiB] so it is valid on every generation.
    itemsize = jnp.dtype(conv_dtype).itemsize
    scratch_bytes = TB * (H + 2) * Wp * Ch * itemsize
    blk_bytes = TB * N * (Cin + Cout) * x.dtype.itemsize
    w_bytes = (Cin * Ch + Ch * Cout) * 2 + (9 * Ch + 2 * Ch + Cout) * 4
    if vmem_limit_bytes is None:
        est = scratch_bytes + 2 * blk_bytes + 2 * w_bytes
        vmem_limit_bytes = int(min(64 * 2 ** 20, max(32 * 2 ** 20, 2 * est)))

    return pl.pallas_call(
        kernel,
        out_shape=jax.ShapeDtypeStruct((B, N, Cout), x.dtype),
        grid_spec=pltpu.PrefetchScalarGridSpec(
            num_scalar_prefetch=0,
            grid=(B // TB,),
            in_specs=[
                pl.BlockSpec((TB, N, Cin), lambda b: (b, 0, 0)),
                pl.BlockSpec((Cin, Ch), lambda b: (0, 0)),
                pl.BlockSpec((1, Ch), lambda b: (0, 0)),
                pl.BlockSpec((3, 3, Ch), lambda b: (0, 0, 0)),
                pl.BlockSpec((1, Ch), lambda b: (0, 0)),
                pl.BlockSpec((Ch, Cout), lambda b: (0, 0)),
                pl.BlockSpec((1, Cout), lambda b: (0, 0)),
            ],
            out_specs=pl.BlockSpec((TB, N, Cout), lambda b: (b, 0, 0)),
            scratch_shapes=[pltpu.VMEM((TB, H + 2, Wp, Ch), conv_dtype)],
        ),
        compiler_params=pltpu.CompilerParams(
            dimension_semantics=("parallel",),
            vmem_limit_bytes=vmem_limit_bytes,
        ),
    )(x, w1, b1, wdw, bdw, w2, b2)


def ref_forward(x, params, feat_size, *, extra_relu=False, approx_gelu=False):
    """Pure-JAX f32 reference of the PyTorch forward pass."""
    H, W = feat_size
    B, N, _ = x.shape
    w1, b1, wdw, bdw, w2, b2 = params
    Ch = w1.shape[1]

    h = x @ w1 + b1
    if extra_relu:
        h = jnp.maximum(h, 0.0)
    hw = h.reshape(B, H, W, Ch)
    conv = jax.lax.conv_general_dilated(
        hw, wdw.reshape(3, 3, 1, Ch),
        window_strides=(1, 1), padding="SAME",
        dimension_numbers=("NHWC", "HWIO", "NHWC"),
        feature_group_count=Ch) + bdw
    if approx_gelu:
        g = 0.5 * conv * (1.0 + jnp.tanh(_SQRT_2_OVER_PI * (conv + 0.044715 * conv ** 3)))
    else:
        g = 0.5 * conv * (1.0 + jax.lax.erf(conv * _INV_SQRT2))
    g = g.reshape(B, N, Ch)
    return g @ w2 + b2


def init_params(key, in_features, hidden_features, out_features, dtype=jnp.float32):
    ks = jax.random.split(key, 6)
    w1 = jax.random.normal(ks[0], (in_features, hidden_features), dtype) * 0.1
    b1 = jax.random.normal(ks[1], (1, hidden_features), dtype) * 0.1
    wdw = jax.random.normal(ks[2], (3, 3, hidden_features), dtype) * 0.1
    bdw = jax.random.normal(ks[3], (1, hidden_features), dtype) * 0.1
    w2 = jax.random.normal(ks[4], (hidden_features, out_features), dtype) * 0.1
    b2 = jax.random.normal(ks[5], (1, out_features), dtype) * 0.1
    return (w1, b1, wdw, bdw, w2, b2)


if __name__ == "__main__":
    key = jax.random.PRNGKey(0)
    B = 2
    H, W = 8, 8
    N = H * W
    in_features = 128     # = out_features -> lane-dense (128) output stores
    hidden_features = 256
    out_features = 128

    k_x, k_p = jax.random.split(key)
    x = jax.random.normal(k_x, (B, N, in_features), jnp.float32)
    params = init_params(k_p, in_features, hidden_features, out_features)

    for extra_relu in (False, True):
        for approx_gelu in (False, True):
            out = mlp_with_dwconv(x, params, (H, W), extra_relu=extra_relu,
                                  approx_gelu=approx_gelu)
            out = jax.block_until_ready(out)
            ref = ref_forward(x, params, (H, W), extra_relu=extra_relu,
                              approx_gelu=approx_gelu)
            assert out.shape == (B, N, out_features)
            err = jnp.max(jnp.abs(out - ref))
            # Tolerance accounts for the bf16-fed MXU matmuls (max err ~1e-2).
            assert jnp.allclose(out, ref, atol=5e-2, rtol=3e-2), (
                f"extra_relu={extra_relu} approx_gelu={approx_gelu} "
                f"max abs err = {err}")

    print("KERNEL_OK")
</pallas_src>

<mosaic_0001>
module attributes {stable_mosaic.version = 11 : i64} {
  func.func @k(%arg0: memref<2x10x8x256xf32, #tpu.memory_space<vmem>>, %arg1: memref<2x10x8x256xf32, #tpu.memory_space<vmem>>) attributes {dimension_semantics = [], scalar_prefetch = 0 : i64, scratch_operands = 0 : i64, tpu.core_type = #tpu.core_type<tc>} {
    %c0 = arith.constant 0 : index
    %c0_0 = arith.constant 0 : index
    %c0_1 = arith.constant 0 : index
    %c0_2 = arith.constant 0 : index
    %0 = vector.load %arg0[%c0, %c0_0, %c0_1, %c0_2] : memref<2x10x8x256xf32, #tpu.memory_space<vmem>>, vector<2x10x8x256xf32>
    %c1_i32 = arith.constant 1 : i32
    %1 = tpu.dynamic_rotate %0 by %c1_i32 dim 2 : vector<2x10x8x256xf32>, i32 -> vector<2x10x8x256xf32>
    %c0_3 = arith.constant 0 : index
    %c0_4 = arith.constant 0 : index
    %c0_5 = arith.constant 0 : index
    %c0_6 = arith.constant 0 : index
    %2 = vector.load %arg1[%c0_3, %c0_4, %c0_5, %c0_6] : memref<2x10x8x256xf32, #tpu.memory_space<vmem>>, vector<2x10x8x256xf32>
    tpu.vector_store %arg1[%c0_3, %c0_4, %c0_5, %c0_6], %1 {strides = array<i32>} : memref<2x10x8x256xf32, #tpu.memory_space<vmem>>, vector<2x10x8x256xf32>,
    return
  }
}

module attributes {stable_mosaic.version = 11 : i64} {
  func.func @_mlp_dwconv_kernel(%arg0: i32, %arg1: memref<2x64x128xf32, #tpu.memory_space<vmem>>, %arg2: memref<128x256xbf16, #tpu.memory_space<vmem>>, %arg3: memref<1x256xf32, #tpu.memory_space<vmem>>, %arg4: memref<3x3x256xf32, #tpu.memory_space<vmem>>, %arg5: memref<1x256xf32, #tpu.memory_space<vmem>>, %arg6: memref<256x128xbf16, #tpu.memory_space<vmem>>, %arg7: memref<1x128xf32, #tpu.memory_space<vmem>>, %arg8: memref<2x64x128xf32, #tpu.memory_space<vmem>>, %arg9: memref<2x10x24x256xf32, #tpu.memory_space<vmem>>) attributes {dimension_semantics = [#tpu.dimension_semantics<parallel>], iteration_bounds = array<i64: 1>, scalar_prefetch = 0 : i64, scratch_operands = 1 : i64, tpu.core_type = #tpu.core_type<tc>, window_params = [{transform_indices = @transform_0, window_bounds = array<i64: 2, 64, 128>}, {pipeline_mode = #tpu.pipeline_mode<synchronous>, transform_indices = @transform_1, window_bounds = array<i64: 128, 256>}, {pipeline_mode = #tpu.pipeline_mode<synchronous>, transform_indices = @transform_2, window_bounds = array<i64: 1, 256>}, {pipeline_mode = #tpu.pipeline_mode<synchronous>, transform_indices = @transform_3, window_bounds = array<i64: 3, 3, 256>}, {pipeline_mode = #tpu.pipeline_mode<synchronous>, transform_indices = @transform_4, window_bounds = array<i64: 1, 256>}, {pipeline_mode = #tpu.pipeline_mode<synchronous>, transform_indices = @transform_5, window_bounds = array<i64: 256, 128>}, {pipeline_mode = #tpu.pipeline_mode<synchronous>, transform_indices = @transform_6, window_bounds = array<i64: 1, 128>}, {transform_indices = @transform_7, window_bounds = array<i64: 2, 64, 128>}]} {
    %c0 = arith.constant 0 : index
    %c0_0 = arith.constant 0 : index
    %c0_1 = arith.constant 0 : index
    %0 = vector.load %arg1[%c0, %c0_0, %c0_1] : memref<2x64x128xf32, #tpu.memory_space<vmem>>, vector<2x64x128xf32>
    %1 = vector.shape_cast %0 : vector<2x64x128xf32> to vector<128x128xf32>
    %2 = arith.truncf %1 : vector<128x128xf32> to vector<128x128xbf16>
    %c0_2 = arith.constant 0 : index
    %c0_3 = arith.constant 0 : index
    %3 = vector.load %arg2[%c0_2, %c0_3] : memref<128x256xbf16, #tpu.memory_space<vmem>>, vector<128x256xbf16>
    %cst = arith.constant dense<0.000000e+00> : vector<128x256xf32>
    %4 = tpu.matmul %2, %3, %cst {dimension_numbers = #tpu.dot_dimension_numbers<[1], [0], [0], [1], [0, 0, 1, 1], [], []>} : vector<128x128xbf16>, vector<128x256xbf16>, vector<128x256xf32> -> vector<128x256xf32>
    %c0_4 = arith.constant 0 : index
    %c0_5 = arith.constant 0 : index
    %5 = vector.load %arg3[%c0_4, %c0_5] : memref<1x256xf32, #tpu.memory_space<vmem>>, vector<1x256xf32>
    %6 = vector.broadcast %5 : vector<1x256xf32> to vector<128x256xf32>
    %7 = arith.addf %4, %6 : vector<128x256xf32>
    %cst_6 = arith.constant 0.000000e+00 : f32
    %8 = vector.broadcast %cst_6 : f32 to vector<2x1x8x256xf32>
    %c0_7 = arith.constant 0 : index
    %c0_8 = arith.constant 0 : index
    %c8 = arith.constant 8 : index
    %c0_9 = arith.constant 0 : index
    %9 = vector.load %arg9[%c0_7, %c0_8, %c8, %c0_9] : memref<2x10x24x256xf32, #tpu.memory_space<vmem>>, vector<2x1x8x256xf32>
    tpu.vector_store %arg9[%c0_7, %c0_8, %c8, %c0_9], %8 {strides = array<i32>} : memref<2x10x24x256xf32, #tpu.memory_space<vmem>>, vector<2x1x8x256xf32>,
    %c0_10 = arith.constant 0 : index
    %c9 = arith.constant 9 : index
    %c8_11 = arith.constant 8 : index
    %c0_12 = arith.constant 0 : index
    %10 = vector.load %arg9[%c0_10, %c9, %c8_11, %c0_12] : memref<2x10x24x256xf32, #tpu.memory_space<vmem>>, vector<2x1x8x256xf32>
    tpu.vector_store %arg9[%c0_10, %c9, %c8_11, %c0_12], %8 {strides = array<i32>} : memref<2x10x24x256xf32, #tpu.memory_space<vmem>>, vector<2x1x8x256xf32>,
    %11 = vector.shape_cast %7 : vector<128x256xf32> to vector<2x8x8x256xf32>
    %c0_13 = arith.constant 0 : index
    %c1 = arith.constant 1 : index
    %c8_14 = arith.constant 8 : index
    %c0_15 = arith.constant 0 : index
    %12 = vector.load %arg9[%c0_13, %c1, %c8_14, %c0_15] : memref<2x10x24x256xf32, #tpu.memory_space<vmem>>, vector<2x8x8x256xf32>
    tpu.vector_store %arg9[%c0_13, %c1, %c8_14, %c0_15], %11 {strides = array<i32>} : memref<2x10x24x256xf32, #tpu.memory_space<vmem>>, vector<2x8x8x256xf32>,
    %c0_16 = arith.constant 0 : index
    %c0_17 = arith.constant 0 : index
    %c0_18 = arith.constant 0 : index
    %13 = vector.load %arg4[%c0_16, %c0_17, %c0_18] : memref<3x3x256xf32, #tpu.memory_space<vmem>>, vector<3x3x256xf32>
    %c0_19 = arith.constant 0 : index
    %c0_20 = arith.constant 0 : index
    %c8_21 = arith.constant 8 : index
    %c0_22 = arith.constant 0 : index
    %14 = vector.load %arg9[%c0_19, %c0_20, %c8_21, %c0_22] : memref<2x10x24x256xf32, #tpu.memory_space<vmem>>, vector<2x10x8x256xf32>
    %c0_23 = arith.constant 0 : index
    %c0_24 = arith.constant 0 : index
    %c7 = arith.constant 7 : index
    %c0_25 = arith.constant 0 : index
    %15 = vector.load %arg9[%c0_23, %c0_24, %c7, %c0_25] : memref<2x10x24x256xf32, #tpu.memory_space<vmem>>, vector<2x10x8x256xf32>
    %c0_26 = arith.constant 0 : index
    %c0_27 = arith.constant 0 : index
    %c9_28 = arith.constant 9 : index
    %c0_29 = arith.constant 0 : index
    %16 = vector.load %arg9[%c0_26, %c0_27, %c9_28, %c0_29] : memref<2x10x24x256xf32, #tpu.memory_space<vmem>>, vector<2x10x8x256xf32>
    %17 = tpu.iota {dimensions = array<i32: 0>} : vector<8x256xi32>
    %18 = vector.extract_strided_slice %14 {offsets = [0, 0, 0, 0], sizes = [2, 8, 8, 256], strides = [1, 1, 1, 1]} : vector<2x10x8x256xf32> to vector<2x8x8x256xf32>
    %19 = vector.extract_strided_slice %13 {offsets = [0, 1, 0], sizes = [1, 1, 256], strides = [1, 1, 1]} : vector<3x3x256xf32> to vector<1x1x256xf32>
    %20 = vector.shape_cast %19 : vector<1x1x256xf32> to vector<256xf32>
    %21 = vector.shape_cast %20 : vector<256xf32> to vector<1x1x1x256xf32>
    %22 = vector.broadcast %21 : vector<1x1x1x256xf32> to vector<2x8x8x256xf32>
    %23 = arith.mulf %18, %22 : vector<2x8x8x256xf32>
    %24 = vector.extract_strided_slice %14 {offsets = [0, 1, 0, 0], sizes = [2, 8, 8, 256], strides = [1, 1, 1, 1]} : vector<2x10x8x256xf32> to vector<2x8x8x256xf32>
    %25 = vector.extract_strided_slice %13 {offsets = [1, 1, 0], sizes = [1, 1, 256], strides = [1, 1, 1]} : vector<3x3x256xf32> to vector<1x1x256xf32>
    %26 = vector.shape_cast %25 : vector<1x1x256xf32> to vector<256xf32>
    %27 = vector.shape_cast %26 : vector<256xf32> to vector<1x1x1x256xf32>
    %28 = vector.broadcast %27 : vector<1x1x1x256xf32> to vector<2x8x8x256xf32>
    %29 = arith.mulf %24, %28 : vector<2x8x8x256xf32>
    %30 = arith.addf %23, %29 : vector<2x8x8x256xf32>
    %31 = vector.extract_strided_slice %14 {offsets = [0, 2, 0, 0], sizes = [2, 8, 8, 256], strides = [1, 1, 1, 1]} : vector<2x10x8x256xf32> to vector<2x8x8x256xf32>
    %32 = vector.extract_strided_slice %13 {offsets = [2, 1, 0], sizes = [1, 1, 256], strides = [1, 1, 1]} : vector<3x3x256xf32> to vector<1x1x256xf32>
    %33 = vector.shape_cast %32 : vector<1x1x256xf32> to vector<256xf32>
    %34 = vector.shape_cast %33 : vector<256xf32> to vector<1x1x1x256xf32>
    %35 = vector.broadcast %34 : vector<1x1x1x256xf32> to vector<2x8x8x256xf32>
    %36 = arith.mulf %31, %35 : vector<2x8x8x256xf32>
    %37 = arith.addf %30, %36 : vector<2x8x8x256xf32>
    %c0_i32 = arith.constant 0 : i32
    %38 = vector.broadcast %c0_i32 : i32 to vector<8x256xi32>
    %39 = arith.cmpi eq, %17, %38 : vector<8x256xi32>
    %40 = vector.extract_strided_slice %15 {offsets = [0, 0, 0, 0], sizes = [2, 8, 8, 256], strides = [1, 1, 1, 1]} : vector<2x10x8x256xf32> to vector<2x8x8x256xf32>
    %41 = vector.extract_strided_slice %13 {offsets = [0, 0, 0], sizes = [1, 1, 256], strides = [1, 1, 1]} : vector<3x3x256xf32> to vector<1x1x256xf32>
    %42 = vector.shape_cast %41 : vector<1x1x256xf32> to vector<256xf32>
    %43 = vector.shape_cast %42 : vector<256xf32> to vector<1x1x1x256xf32>
    %44 = vector.broadcast %43 : vector<1x1x1x256xf32> to vector<2x8x8x256xf32>
    %45 = arith.mulf %40, %44 : vector<2x8x8x256xf32>
    %46 = vector.extract_strided_slice %15 {offsets = [0, 1, 0, 0], sizes = [2, 8, 8, 256], strides = [1, 1, 1, 1]} : vector<2x10x8x256xf32> to vector<2x8x8x256xf32>
    %47 = vector.extract_strided_slice %13 {offsets = [1, 0, 0], sizes = [1, 1, 256], strides = [1, 1, 1]} : vector<3x3x256xf32> to vector<1x1x256xf32>
    %48 = vector.shape_cast %47 : vector<1x1x256xf32> to vector<256xf32>
    %49 = vector.shape_cast %48 : vector<256xf32> to vector<1x1x1x256xf32>
    %50 = vector.broadcast %49 : vector<1x1x1x256xf32> to vector<2x8x8x256xf32>
    %51 = arith.mulf %46, %50 : vector<2x8x8x256xf32>
    %52 = arith.addf %45, %51 : vector<2x8x8x256xf32>
    %53 = vector.extract_strided_slice %15 {offsets = [0, 2, 0, 0], sizes = [2, 8, 8, 256], strides = [1, 1, 1, 1]} : vector<2x10x8x256xf32> to vector<2x8x8x256xf32>
    %54 = vector.extract_strided_slice %13 {offsets = [2, 0, 0], sizes = [1, 1, 256], strides = [1, 1, 1]} : vector<3x3x256xf32> to vector<1x1x256xf32>
    %55 = vector.shape_cast %54 : vector<1x1x256xf32> to vector<256xf32>
    %56 = vector.shape_cast %55 : vector<256xf32> to vector<1x1x1x256xf32>
    %57 = vector.broadcast %56 : vector<1x1x1x256xf32> to vector<2x8x8x256xf32>
    %58 = arith.mulf %53, %57 : vector<2x8x8x256xf32>
    %59 = arith.addf %52, %58 : vector<2x8x8x256xf32>
    %cst_30 = arith.constant 0.000000e+00 : f32
    %60 = vector.shape_cast %39 : vector<8x256xi1> to vector<1x1x8x256xi1>
    %61 = vector.broadcast %60 : vector<1x1x8x256xi1> to vector<2x8x8x256xi1>
    %62 = vector.broadcast %cst_30 : f32 to vector<2x8x8x256xf32>
    %63 = arith.select %61, %62, %59 : vector<2x8x8x256xi1>, vector<2x8x8x256xf32>
    %64 = arith.addf %37, %63 : vector<2x8x8x256xf32>
    %c7_i32 = arith.constant 7 : i32
    %65 = vector.broadcast %c7_i32 : i32 to vector<8x256xi32>
    %66 = arith.cmpi eq, %17, %65 : vector<8x256xi32>
    %67 = vector.extract_strided_slice %16 {offsets = [0, 0, 0, 0], sizes = [2, 8, 8, 256], strides = [1, 1, 1, 1]} : vector<2x10x8x256xf32> to vector<2x8x8x256xf32>
    %68 = vector.extract_strided_slice %13 {offsets = [0, 2, 0], sizes = [1, 1, 256], strides = [1, 1, 1]} : vector<3x3x256xf32> to vector<1x1x256xf32>
    %69 = vector.shape_cast %68 : vector<1x1x256xf32> to vector<256xf32>
    %70 = vector.shape_cast %69 : vector<256xf32> to vector<1x1x1x256xf32>
    %71 = vector.broadcast %70 : vector<1x1x1x256xf32> to vector<2x8x8x256xf32>
    %72 = arith.mulf %67, %71 : vector<2x8x8x256xf32>
    %73 = vector.extract_strided_slice %16 {offsets = [0, 1, 0, 0], sizes = [2, 8, 8, 256], strides = [1, 1, 1, 1]} : vector<2x10x8x256xf32> to vector<2x8x8x256xf32>
    %74 = vector.extract_strided_slice %13 {offsets = [1, 2, 0], sizes = [1, 1, 256], strides = [1, 1, 1]} : vector<3x3x256xf32> to vector<1x1x256xf32>
    %75 = vector.shape_cast %74 : vector<1x1x256xf32> to vector<256xf32>
    %76 = vector.shape_cast %75 : vector<256xf32> to vector<1x1x1x256xf32>
    %77 = vector.broadcast %76 : vector<1x1x1x256xf32> to vector<2x8x8x256xf32>
    %78 = arith.mulf %73, %77 : vector<2x8x8x256xf32>
    %79 = arith.addf %72, %78 : vector<2x8x8x256xf32>
    %80 = vector.extract_strided_slice %16 {offsets = [0, 2, 0, 0], sizes = [2, 8, 8, 256], strides = [1, 1, 1, 1]} : vector<2x10x8x256xf32> to vector<2x8x8x256xf32>
    %81 = vector.extract_strided_slice %13 {offsets = [2, 2, 0], sizes = [1, 1, 256], strides = [1, 1, 1]} : vector<3x3x256xf32> to vector<1x1x256xf32>
    %82 = vector.shape_cast %81 : vector<1x1x256xf32> to vector<256xf32>
    %83 = vector.shape_cast %82 : vector<256xf32> to vector<1x1x1x256xf32>
    %84 = vector.broadcast %83 : vector<1x1x1x256xf32> to vector<2x8x8x256xf32>
    %85 = arith.mulf %80, %84 : vector<2x8x8x256xf32>
    %86 = arith.addf %79, %85 : vector<2x8x8x256xf32>
    %cst_31 = arith.constant 0.000000e+00 : f32
    %87 = vector.shape_cast %66 : vector<8x256xi1> to vector<1x1x8x256xi1>
    %88 = vector.broadcast %87 : vector<1x1x8x256xi1> to vector<2x8x8x256xi1>
    %89 = vector.broadcast %cst_31 : f32 to vector<2x8x8x256xf32>
    %90 = arith.select %88, %89, %86 : vector<2x8x8x256xi1>, vector<2x8x8x256xf32>
    %91 = arith.addf %64, %90 : vector<2x8x8x256xf32>
    %c0_32 = arith.constant 0 : index
    %c0_33 = arith.constant 0 : index
    %92 = vector.load %arg5[%c0_32, %c0_33] : memref<1x256xf32, #tpu.memory_space<vmem>>, vector<1x256xf32>
    %93 = vector.shape_cast %92 : vector<1x256xf32> to vector<1x1x1x256xf32>
    %94 = vector.broadcast %93 : vector<1x1x1x256xf32> to vector<2x8x8x256xf32>
    %95 = arith.addf %91, %94 : vector<2x8x8x256xf32>
    %cst_34 = arith.constant 5.000000e-01 : f32
    %96 = vector.broadcast %cst_34 : f32 to vector<2x8x8x256xf32>
    %97 = arith.mulf %96, %95 : vector<2x8x8x256xf32>
    %cst_35 = arith.constant 0.707106769 : f32
    %98 = vector.broadcast %cst_35 : f32 to vector<2x8x8x256xf32>
    %99 = arith.mulf %95, %98 : vector<2x8x8x256xf32>
    %100 = math.erf %99 : vector<2x8x8x256xf32>
    %cst_36 = arith.constant 1.000000e+00 : f32
    %101 = vector.broadcast %cst_36 : f32 to vector<2x8x8x256xf32>
    %102 = arith.addf %101, %100 : vector<2x8x8x256xf32>
    %103 = arith.mulf %97, %102 : vector<2x8x8x256xf32>
    %104 = vector.shape_cast %103 : vector<2x8x8x256xf32> to vector<128x256xf32>
    %105 = arith.truncf %104 : vector<128x256xf32> to vector<128x256xbf16>
    %c0_37 = arith.constant 0 : index
    %c0_38 = arith.constant 0 : index
    %106 = vector.load %arg6[%c0_37, %c0_38] : memref<256x128xbf16, #tpu.memory_space<vmem>>, vector<256x128xbf16>
    %cst_39 = arith.constant dense<0.000000e+00> : vector<128x128xf32>
    %107 = tpu.matmul %105, %106, %cst_39 {dimension_numbers = #tpu.dot_dimension_numbers<[1], [0], [0], [1], [0, 0, 1, 1], [], []>} : vector<128x256xbf16>, vector<256x128xbf16>, vector<128x128xf32> -> vector<128x128xf32>
    %c0_40 = arith.constant 0 : index
    %c0_41 = arith.constant 0 : index
    %108 = vector.load %arg7[%c0_40, %c0_41] : memref<1x128xf32, #tpu.memory_space<vmem>>, vector<1x128xf32>
    %109 = vector.broadcast %108 : vector<1x128xf32> to vector<128x128xf32>
    %110 = arith.addf %107, %109 : vector<128x128xf32>
    %111 = vector.shape_cast %110 : vector<128x128xf32> to vector<2x64x128xf32>
    %c0_42 = arith.constant 0 : index
    %c0_43 = arith.constant 0 : index
    %c0_44 = arith.constant 0 : index
    %112 = vector.load %arg8[%c0_42, %c0_43, %c0_44] : memref<2x64x128xf32, #tpu.memory_space<vmem>>, vector<2x64x128xf32>
    tpu.vector_store %arg8[%c0_42, %c0_43, %c0_44], %111 {strides = array<i32>} : memref<2x64x128xf32, #tpu.memory_space<vmem>>, vector<2x64x128xf32>,
    return
  }
  func.func @transform_0(%arg0: i32) -> (i32, i32, i32) {
    %c0_i32 = arith.constant 0 : i32
    %c0_i32_0 = arith.constant 0 : i32
    %c0_i32_1 = arith.constant 0 : i32
    return %arg0, %c0_i32, %c0_i32_0 : i32, i32, i32
  }
  func.func @transform_1(%arg0: i32) -> (i32, i32) {
    %c0_i32 = arith.constant 0 : i32
    %c0_i32_0 = arith.constant 0 : i32
    %c0_i32_1 = arith.constant 0 : i32
    return %c0_i32, %c0_i32_0 : i32, i32
  }
  func.func @transform_2(%arg0: i32) -> (i32, i32) {
    %c0_i32 = arith.constant 0 : i32
    %c0_i32_0 = arith.constant 0 : i32
    %c0_i32_1 = arith.constant 0 : i32
    return %c0_i32, %c0_i32_0 : i32, i32
  }
  func.func @transform_3(%arg0: i32) -> (i32, i32, i32) {
    %c0_i32 = arith.constant 0 : i32
    %c0_i32_0 = arith.constant 0 : i32
    %c0_i32_1 = arith.constant 0 : i32
    %c0_i32_2 = arith.constant 0 : i32
    return %c0_i32, %c0_i32_0, %c0_i32_1 : i32, i32, i32
  }
  func.func @transform_4(%arg0: i32) -> (i32, i32) {
    %c0_i32 = arith.constant 0 : i32
    %c0_i32_0 = arith.constant 0 : i32
    %c0_i32_1 = arith.constant 0 : i32
    return %c0_i32, %c0_i32_0 : i32, i32
  }
  func.func @transform_5(%arg0: i32) -> (i32, i32) {
    %c0_i32 = arith.constant 0 : i32
    %c0_i32_0 = arith.constant 0 : i32
    %c0_i32_1 = arith.constant 0 : i32
    return %c0_i32, %c0_i32_0 : i32, i32
  }
  func.func @transform_6(%arg0: i32) -> (i32, i32) {
    %c0_i32 = arith.constant 0 : i32
    %c0_i32_0 = arith.constant 0 : i32
    %c0_i32_1 = arith.constant 0 : i32
    return %c0_i32, %c0_i32_0 : i32, i32
  }
  func.func @transform_7(%arg0: i32) -> (i32, i32, i32) {
    %c0_i32 = arith.constant 0 : i32
    %c0_i32_0 = arith.constant 0 : i32
    %c0_i32_1 = arith.constant 0 : i32
    return %arg0, %c0_i32, %c0_i32_0 : i32, i32, i32
  }
}

</mosaic_0001>

<llo_original>
// kernel: tpu_custom_call.1
$region0: #{tpu_custom_call.1}
  #allocation0 [shape = 'u32[]', space=smem, size = 0x4, offset = 0x4, fixed_abs, tag = 'smem constant byte address 0x4 - core index']
  #allocation1 [shape = 'u32[72,128]{1,0:T(1,128)}', space=vmem, size = 0x9000, scoped, tag = 'internal scratch']
  %s0 = inlined_call_operand.hbm [shape: f32[2,10,8,256], index: 0, kind: input, shape index: {}]
  %s1 = inlined_call_operand.hbm [shape: f32[2,10,8,256], index: 1, kind: output, shape index: {}]
  %s2 = sld [smem:[#allocation0]]
  $region18: #{tpu_custom_call.1} parent=0
    _
  %s4 = ssub.s32 1, %s2
  %s5 = scalar_select 0, %s4, %s2
  $region1: #{tpu_custom_call.1} parent=0
    #allocation2 [shape = 'u8[163840]{0}', space=vmem, size = 0x28000, scoped, tag = 'input window, operand 0, single buffered']
    #allocation3 [shape = 's32[1]{0}', space=sflag, size = 0x4, scoped, tag = 'scoped memory for tpu_custom_call.1']
    #allocation4 [shape = 's32[1]{0}', space=sflag, size = 0x4, scoped, tag = 'scoped memory for tpu_custom_call.1']
    #allocation5 [shape = 'u8[163840]{0}', space=vmem, size = 0x28000, scoped, tag = 'output window, operand 0, single buffered']
    %6 = vsyncpa [#allocation3], 0
    %7 = vsyncpa [#allocation4], 0
    // Predicated region
    $region2: #{tpu_custom_call.1} parent=1 // pred_check
      _
    $region3: #{tpu_custom_call.1} parent=1 // pred_check_branch
      %9 = sbr.rel (0) target = $region5
    $region4: #{tpu_custom_call.1} parent=1 // pred_region
      %11 = vsyncadd [#allocation3], 0
      %s12 = sshll.u32 %s0, 4
      %s13 = int_to_ptr.hbm [resolvable:$true] %s12
      %s14 = sshll.u32 [#allocation2], 4
      %s15 = int_to_ptr.vmem [resolvable:$true] %s14
      %20 = dma.hbm_to_vmem [thread:$0]  %s13, 5120, %s15, [#allocation3], 256, 256, 16
    $region5: #{tpu_custom_call.1} parent=1 // pred_fallthru
      _
    // Predicated region
    $region6: #{tpu_custom_call.1} parent=1 // pred_check
      _
    $region7: #{tpu_custom_call.1} parent=1 // pred_check_branch
      %22 = sbr.rel (0) target = $region9
    $region8: #{tpu_custom_call.1} parent=1 // pred_region
      %24 = dma.done [#allocation3], 5120
    $region9: #{tpu_custom_call.1} parent=1 // pred_fallthru
      _
    %v25 = vld [vmem:[#allocation2] sm:$0xff]
    %v26 = vld [vmem:[#allocation2 + $0x8] sm:$0xff]
    %v27 = vld [vmem:[#allocation2 + $0x10] sm:$0xff]
    %v28 = vld [vmem:[#allocation2 + $0x18] sm:$0xff]
    %v29 = vld [vmem:[#allocation2 + $0x20] sm:$0xff]
    %v30 = vld [vmem:[#allocation2 + $0x28] sm:$0xff]
    %v31 = vld [vmem:[#allocation2 + $0x30] sm:$0xff]
    %v32 = vld [vmem:[#allocation2 + $0x38] sm:$0xff]
    %v33 = vld [vmem:[#allocation2 + $0x40] sm:$0xff]
    %v34 = vld [vmem:[#allocation2 + $0x48] sm:$0xff]
    %v35 = vld [vmem:[#allocation2 + $0x50] sm:$0xff]
    %v36 = vld [vmem:[#allocation2 + $0x58] sm:$0xff]
    %v37 = vld [vmem:[#allocation2 + $0x60] sm:$0xff]
    %v38 = vld [vmem:[#allocation2 + $0x68] sm:$0xff]
    %v39 = vld [vmem:[#allocation2 + $0x70] sm:$0xff]
    %v40 = vld [vmem:[#allocation2 + $0x78] sm:$0xff]
    %v41 = vld [vmem:[#allocation2 + $0x80] sm:$0xff]
    %v42 = vld [vmem:[#allocation2 + $0x88] sm:$0xff]
    %v43 = vld [vmem:[#allocation2 + $0x90] sm:$0xff]
    %v44 = vld [vmem:[#allocation2 + $0x98] sm:$0xff]
    %v45 = vld [vmem:[#allocation2 + $0xa0] sm:$0xff]
    %v46 = vld [vmem:[#allocation2 + $0xa8] sm:$0xff]
    %v47 = vld [vmem:[#allocation2 + $0xb0] sm:$0xff]
    %v48 = vld [vmem:[#allocation2 + $0xb8] sm:$0xff]
    %v49 = vld [vmem:[#allocation2 + $0xc0] sm:$0xff]
    %v50 = vld [vmem:[#allocation2 + $0xc8] sm:$0xff]
    %v51 = vld [vmem:[#allocation2 + $0xd0] sm:$0xff]
    %v52 = vld [vmem:[#allocation2 + $0xd8] sm:$0xff]
    %v53 = vld [vmem:[#allocation2 + $0xe0] sm:$0xff]
    %v54 = vld [vmem:[#allocation2 + $0xe8] sm:$0xff]
    %v55 = vld [vmem:[#allocation2 + $0xf0] sm:$0xff]
    %v56 = vld [vmem:[#allocation2 + $0xf8] sm:$0xff]
    %v57 = vld [vmem:[#allocation2 + $0x100] sm:$0xff]
    %v58 = vld [vmem:[#allocation2 + $0x108] sm:$0xff]
    %v59 = vld [vmem:[#allocation2 + $0x110] sm:$0xff]
    %v60 = vld [vmem:[#allocation2 + $0x118] sm:$0xff]
    %v61 = vld [vmem:[#allocation2 + $0x120] sm:$0xff]
    %v62 = vld [vmem:[#allocation2 + $0x128] sm:$0xff]
    %v63 = vld [vmem:[#allocation2 + $0x130] sm:$0xff]
    %v64 = vld [vmem:[#allocation2 + $0x138] sm:$0xff]
    %v65 = vrot.slane %v25, 7
    %v66 = vrot.slane %v26, 7
    %v67 = vrot.slane %v27, 7
    %v68 = vrot.slane %v28, 7
    %v69 = vrot.slane %v29, 7
    %v70 = vrot.slane %v30, 7
    %v71 = vrot.slane %v31, 7
    %v72 = vrot.slane %v32, 7
    %v73 = vrot.slane %v33, 7
    %v74 = vrot.slane %v34, 7
    %v75 = vrot.slane %v35, 7
    %v76 = vrot.slane %v36, 7
    %v77 = vrot.slane %v37, 7
    %v78 = vrot.slane %v38, 7
    %v79 = vrot.slane %v39, 7
    %v80 = vrot.slane %v40, 7
    %v81 = vrot.slane %v41, 7
    %v82 = vrot.slane %v42, 7
    %v83 = vrot.slane %v43, 7
    %v84 = vrot.slane %v44, 7
    %v85 = vrot.slane %v45, 7
    %v86 = vrot.slane %v46, 7
    %v87 = vrot.slane %v47, 7
    %v88 = vrot.slane %v48, 7
    %v89 = vrot.slane %v49, 7
    %v90 = vrot.slane %v50, 7
    %v91 = vrot.slane %v51, 7
    %v92 = vrot.slane %v52, 7
    %v93 = vrot.slane %v53, 7
    %v94 = vrot.slane %v54, 7
    %v95 = vrot.slane %v55, 7
    %v96 = vrot.slane %v56, 7
    %v97 = vrot.slane %v57, 7
    %v98 = vrot.slane %v58, 7
    %v99 = vrot.slane %v59, 7
    %v100 = vrot.slane %v60, 7
    %v101 = vrot.slane %v61, 7
    %v102 = vrot.slane %v62, 7
    %v103 = vrot.slane %v63, 7
    %v104 = vrot.slane %v64, 7
    %105 = vst [vmem:[#allocation5] sm:$0xff] %v65
    %106 = vst [vmem:[#allocation5 + $0x8] sm:$0xff] %v66
    %107 = vst [vmem:[#allocation5 + $0x10] sm:$0xff] %v67
    %108 = vst [vmem:[#allocation5 + $0x18] sm:$0xff] %v68
    %109 = vst [vmem:[#allocation5 + $0x20] sm:$0xff] %v69
    %110 = vst [vmem:[#allocation5 + $0x28] sm:$0xff] %v70
    %111 = vst [vmem:[#allocation5 + $0x30] sm:$0xff] %v71
    %112 = vst [vmem:[#allocation5 + $0x38] sm:$0xff] %v72
    %113 = vst [vmem:[#allocation5 + $0x40] sm:$0xff] %v73
    %114 = vst [vmem:[#allocation5 + $0x48] sm:$0xff] %v74
    %115 = vst [vmem:[#allocation5 + $0x50] sm:$0xff] %v75
    %116 = vst [vmem:[#allocation5 + $0x58] sm:$0xff] %v76
    %117 = vst [vmem:[#allocation5 + $0x60] sm:$0xff] %v77
    %118 = vst [vmem:[#allocation5 + $0x68] sm:$0xff] %v78
    %119 = vst [vmem:[#allocation5 + $0x70] sm:$0xff] %v79
    %120 = vst [vmem:[#allocation5 + $0x78] sm:$0xff] %v80
    %121 = vst [vmem:[#allocation5 + $0x80] sm:$0xff] %v81
    %122 = vst [vmem:[#allocation5 + $0x88] sm:$0xff] %v82
    %123 = vst [vmem:[#allocation5 + $0x90] sm:$0xff] %v83
    %124 = vst [vmem:[#allocation5 + $0x98] sm:$0xff] %v84
    %125 = vst [vmem:[#allocation5 + $0xa0] sm:$0xff] %v85
    %126 = vst [vmem:[#allocation5 + $0xa8] sm:$0xff] %v86
    %127 = vst [vmem:[#allocation5 + $0xb0] sm:$0xff] %v87
    %128 = vst [vmem:[#allocation5 + $0xb8] sm:$0xff] %v88
    %129 = vst [vmem:[#allocation5 + $0xc0] sm:$0xff] %v89
    %130 = vst [vmem:[#allocation5 + $0xc8] sm:$0xff] %v90
    %131 = vst [vmem:[#allocation5 + $0xd0] sm:$0xff] %v91
    %132 = vst [vmem:[#allocation5 + $0xd8] sm:$0xff] %v92
    %133 = vst [vmem:[#allocation5 + $0xe0] sm:$0xff] %v93
    %134 = vst [vmem:[#allocation5 + $0xe8] sm:$0xff] %v94
    %135 = vst [vmem:[#allocation5 + $0xf0] sm:$0xff] %v95
    %136 = vst [vmem:[#allocation5 + $0xf8] sm:$0xff] %v96
    %137 = vst [vmem:[#allocation5 + $0x100] sm:$0xff] %v97
    %138 = vst [vmem:[#allocation5 + $0x108] sm:$0xff] %v98
    %139 = vst [vmem:[#allocation5 + $0x110] sm:$0xff] %v99
    %140 = vst [vmem:[#allocation5 + $0x118] sm:$0xff] %v100
    %141 = vst [vmem:[#allocation5 + $0x120] sm:$0xff] %v101
    %142 = vst [vmem:[#allocation5 + $0x128] sm:$0xff] %v102
    %143 = vst [vmem:[#allocation5 + $0x130] sm:$0xff] %v103
    %144 = vst [vmem:[#allocation5 + $0x138] sm:$0xff] %v104
    // Predicated region
    $region10: #{tpu_custom_call.1} parent=1 // pred_check
      _
    $region11: #{tpu_custom_call.1} parent=1 // pred_check_branch
      %146 = sbr.rel (0) target = $region13
    $region12: #{tpu_custom_call.1} parent=1 // pred_region
      %148 = vsyncadd [#allocation4], 0
      %s149 = sshll.u32 [#allocation5], 4
      %s150 = int_to_ptr.vmem [resolvable:$true] %s149
      %s151 = sshll.u32 %s1, 4
      %s152 = int_to_ptr.hbm [resolvable:$true] %s151
      %157 = dma.vmem_to_hbm [thread:$0]  %s150, 5120, %s152, [#allocation4], 256, 256, 16
    $region13: #{tpu_custom_call.1} parent=1 // pred_fallthru
      _
    // Predicated region
    $region14: #{tpu_custom_call.1} parent=1 // pred_check
      _
    $region15: #{tpu_custom_call.1} parent=1 // pred_check_branch
      %159 = sbr.rel (0) target = $region17
    $region16: #{tpu_custom_call.1} parent=1 // pred_region
      %161 = dma.done [#allocation4], 5120
    $region17: #{tpu_custom_call.1} parent=1 // pred_fallthru
      _
    %162 = vsyncpa [#allocation3], 1
    %163 = vsyncpa [#allocation4], 1

// kernel: tpu_custom_call.1
$region0: #{tpu_custom_call.1}
  #allocation0 [shape = 'u32[]', space=smem, size = 0x4, offset = 0x4, fixed_abs, tag = 'smem constant byte address 0x4 - core index']
  #allocation1 [shape = 'u32[72,128]{1,0:T(1,128)}', space=vmem, size = 0x9000, scoped, tag = 'internal scratch']
  #allocation2 [shape = 'f32[2,10,24,256]{3,2,1,0:T(8,128)}', space=vmem, size = 0x78000, scoped, tag = 'scratch operand']
  %s0 = inlined_call_operand.hbm [shape: f32[2,64,128], index: 0, kind: input, shape index: {}]
  %s1 = inlined_call_operand.hbm [shape: bf16[128,256], index: 1, kind: input, shape index: {}]
  %s2 = inlined_call_operand.hbm [shape: f32[1,256], index: 2, kind: input, shape index: {}]
  %s3 = inlined_call_operand.hbm [shape: f32[3,3,256], index: 3, kind: input, shape index: {}]
  %s4 = inlined_call_operand.vmem [shape: f32[1,256], index: 4, kind: input, shape index: {}]
  %s5 = inlined_call_operand.hbm [shape: bf16[256,128], index: 5, kind: input, shape index: {}]
  %s6 = inlined_call_operand.vmem [shape: f32[1,128], index: 6, kind: input, shape index: {}]
  %s7 = inlined_call_operand.hbm [shape: f32[2,64,128], index: 7, kind: output, shape index: {}]
  %s8 = sld [smem:[#allocation0]]
  $region58: #{tpu_custom_call.1} parent=0
    _
  %s10 = ssub.s32 1, %s8
  %s11 = scalar_select 0, %s10, %s8
  $region1: #{tpu_custom_call.1} parent=0
    #allocation3 [shape = 'u8[65536]{0}', space=vmem, size = 0x10000, scoped, tag = 'input window, operand 0, single buffered']
    #allocation4 [shape = 's32[1]{0}', space=sflag, size = 0x4, scoped, tag = 'scoped memory for tpu_custom_call.1']
    #allocation5 [shape = 's32[1]{0}', space=sflag, size = 0x4, scoped, tag = 'scoped memory for tpu_custom_call.1']
    #allocation6 [shape = 'u8[65536]{0}', space=vmem, size = 0x10000, scoped, tag = 'input window, operand 1, single buffered']
    #allocation7 [shape = 's32[1]{0}', space=sflag, size = 0x4, scoped, tag = 'scoped memory for tpu_custom_call.1']
    #allocation8 [shape = 'u8[1024]{0}', space=vmem, size = 0x400, scoped, tag = 'input window, operand 2, single buffered']
    #allocation9 [shape = 'u8[12288]{0}', space=vmem, size = 0x3000, scoped, tag = 'input window, operand 3, single buffered']
    #allocation10 [shape = 's32[1]{0}', space=sflag, size = 0x4, scoped, tag = 'scoped memory for tpu_custom_call.1']
    #allocation11 [shape = 'u8[65536]{0}', space=vmem, size = 0x10000, scoped, tag = 'input window, operand 5, single buffered']
    #allocation12 [shape = 'u8[65536]{0}', space=vmem, size = 0x10000, scoped, tag = 'output window, operand 0, single buffered']
    %12 = vsyncpa [#allocation4], 0
    %13 = vsyncpa [#allocation7], 0
    %14 = vsyncpa [#allocation10], 0
    %15 = vsyncpa [#allocation5], 0
    // Predicated region
    $region2: #{tpu_custom_call.1} parent=1 // pred_check
      _
    $region3: #{tpu_custom_call.1} parent=1 // pred_check_branch
      %17 = sbr.rel (0) target = $region5
    $region4: #{tpu_custom_call.1} parent=1 // pred_region
      %19 = vsyncadd [#allocation4], 0
      %s20 = sshll.u32 %s0, 4
      %s21 = int_to_ptr.hbm [resolvable:$true] %s20
      %s22 = sshll.u32 [#allocation3], 4
      %s23 = int_to_ptr.vmem [resolvable:$true] %s22
      %28 = dma.hbm_to_vmem [thread:$0]  %s21, 2048, %s23, [#allocation4], 128, 128, 8
    $region5: #{tpu_custom_call.1} parent=1 // pred_fallthru
      _
    // Predicated region
    $region6: #{tpu_custom_call.1} parent=1 // pred_check
      _
    $region7: #{tpu_custom_call.1} parent=1 // pred_check_branch
      %30 = sbr.rel (0) target = $region9
    $region8: #{tpu_custom_call.1} parent=1 // pred_region
      %32 = vsyncadd [#allocation7], 0
      %s33 = sshll.u32 %s1, 4
      %s34 = int_to_ptr.hbm [resolvable:$true] %s33
      %s35 = sshll.u32 [#allocation6], 4
      %s36 = int_to_ptr.vmem [resolvable:$true] %s35
      %41 = dma.hbm_to_vmem [thread:$0]  %s34, 2048, %s36, [#allocation7], 128, 128, 8
    $region9: #{tpu_custom_call.1} parent=1 // pred_fallthru
      _
    // Predicated region
    $region10: #{tpu_custom_call.1} parent=1 // pred_check
      _
    $region11: #{tpu_custom_call.1} parent=1 // pred_check_branch
      %43 = sbr.rel (0) target = $region13
    $region12: #{tpu_custom_call.1} parent=1 // pred_region
      %45 = vsyncadd [#allocation7], 0
      %s47 = sshll.u32 %s2, 4
      %s48 = int_to_ptr.hbm [resolvable:$true] %s47
      %s49 = sshll.u32 [#allocation8], 4
      %s50 = int_to_ptr.vmem [resolvable:$true] %s49
      %52 = dma.hbm_to_vmem [thread:$0]  %s48, 32, %s50, [#allocation7]
    $region13: #{tpu_custom_call.1} parent=1 // pred_fallthru
      _
    // Predicated region
    $region14: #{tpu_custom_call.1} parent=1 // pred_check
      _
    $region15: #{tpu_custom_call.1} parent=1 // pred_check_branch
      %54 = sbr.rel (0) target = $region17
    $region16: #{tpu_custom_call.1} parent=1 // pred_region
      %56 = vsyncadd [#allocation10], 0
      %s57 = sshll.u32 %s3, 4
      %s58 = int_to_ptr.hbm [resolvable:$true] %s57
      %s59 = sshll.u32 [#allocation9], 4
      %s60 = int_to_ptr.vmem [resolvable:$true] %s59
      %65 = dma.hbm_to_vmem [thread:$0]  %s58, 384, %s60, [#allocation10], 128, 128, 8
    $region17: #{tpu_custom_call.1} parent=1 // pred_fallthru
      _
    // Predicated region
    $region18: #{tpu_custom_call.1} parent=1 // pred_check
      _
    $region19: #{tpu_custom_call.1} parent=1 // pred_check_branch
      %67 = sbr.rel (0) target = $region21
    $region20: #{tpu_custom_call.1} parent=1 // pred_region
      _
    $region21: #{tpu_custom_call.1} parent=1 // pred_fallthru
      _
    // Predicated region
    $region22: #{tpu_custom_call.1} parent=1 // pred_check
      _
    $region23: #{tpu_custom_call.1} parent=1 // pred_check_branch
      %69 = sbr.rel (0) target = $region25
    $region24: #{tpu_custom_call.1} parent=1 // pred_region
      %71 = vsyncadd [#allocation10], 0
      %s72 = sshll.u32 %s5, 4
      %s73 = int_to_ptr.hbm [resolvable:$true] %s72
      %s74 = sshll.u32 [#allocation11], 4
      %s75 = int_to_ptr.vmem [resolvable:$true] %s74
      %80 = dma.hbm_to_vmem [thread:$0]  %s73, 2048, %s75, [#allocation10], 64, 64, 4
    $region25: #{tpu_custom_call.1} parent=1 // pred_fallthru
      _
    // Predicated region
    $region26: #{tpu_custom_call.1} parent=1 // pred_check
      _
    $region27: #{tpu_custom_call.1} parent=1 // pred_check_branch
      %82 = sbr.rel (0) target = $region29
    $region28: #{tpu_custom_call.1} parent=1 // pred_region
      _
    $region29: #{tpu_custom_call.1} parent=1 // pred_fallthru
      _
    // Predicated region
    $region30: #{tpu_custom_call.1} parent=1 // pred_check
      _
    $region31: #{tpu_custom_call.1} parent=1 // pred_check_branch
      %84 = sbr.rel (0) target = $region33
    $region32: #{tpu_custom_call.1} parent=1 // pred_region
      %86 = dma.done [#allocation4], 2048
    $region33: #{tpu_custom_call.1} parent=1 // pred_fallthru
      _
    // Predicated region
    $region34: #{tpu_custom_call.1} parent=1 // pred_check
      _
    $region35: #{tpu_custom_call.1} parent=1 // pred_check_branch
      %88 = sbr.rel (0) target = $region37
    $region36: #{tpu_custom_call.1} parent=1 // pred_region
      %90 = dma.done [#allocation7], 2048
    $region37: #{tpu_custom_call.1} parent=1 // pred_fallthru
      _
    // Predicated region
    $region38: #{tpu_custom_call.1} parent=1 // pred_check
      _
    $region39: #{tpu_custom_call.1} parent=1 // pred_check_branch
      %92 = sbr.rel (0) target = $region41
    $region40: #{tpu_custom_call.1} parent=1 // pred_region
      %94 = dma.done [#allocation7], 32
    $region41: #{tpu_custom_call.1} parent=1 // pred_fallthru
      _
    // Predicated region
    $region42: #{tpu_custom_call.1} parent=1 // pred_check
      _
    $region43: #{tpu_custom_call.1} parent=1 // pred_check_branch
      %96 = sbr.rel (0) target = $region45
    $region44: #{tpu_custom_call.1} parent=1 // pred_region
      %98 = dma.done [#allocation10], 384
    $region45: #{tpu_custom_call.1} parent=1 // pred_fallthru
      _
    // Predicated region
    $region46: #{tpu_custom_call.1} parent=1 // pred_check
      _
    $region47: #{tpu_custom_call.1} parent=1 // pred_check_branch
      %100 = sbr.rel (0) target = $region49
    $region48: #{tpu_custom_call.1} parent=1 // pred_region
      %102 = dma.done [#allocation10], 2048
    $region49: #{tpu_custom_call.1} parent=1 // pred_fallthru
      _
    %v103 = vld [vmem:[#allocation3] sm:$0xff]
    %v104 = vld [vmem:[#allocation3 + $0x8] sm:$0xff]
    %v105 = vld [vmem:[#allocation3 + $0x10] sm:$0xff]
    %v106 = vld [vmem:[#allocation3 + $0x18] sm:$0xff]
    %v107 = vld [vmem:[#allocation3 + $0x20] sm:$0xff]
    %v108 = vld [vmem:[#allocation3 + $0x28] sm:$0xff]
    %v109 = vld [vmem:[#allocation3 + $0x30] sm:$0xff]
    %v110 = vld [vmem:[#allocation3 + $0x38] sm:$0xff]
    %v111 = vld [vmem:[#allocation3 + $0x40] sm:$0xff]
    %v112 = vld [vmem:[#allocation3 + $0x48] sm:$0xff]
    %v113 = vld [vmem:[#allocation3 + $0x50] sm:$0xff]
    %v114 = vld [vmem:[#allocation3 + $0x58] sm:$0xff]
    %v115 = vld [vmem:[#allocation3 + $0x60] sm:$0xff]
    %v116 = vld [vmem:[#allocation3 + $0x68] sm:$0xff]
    %v117 = vld [vmem:[#allocation3 + $0x70] sm:$0xff]
    %v118 = vld [vmem:[#allocation3 + $0x78] sm:$0xff]
    %v119 = vpack.c.bf16 %v104, %v103
    %v120 = vpack.c.bf16 %v106, %v105
    %v121 = vpack.c.bf16 %v108, %v107
    %v122 = vpack.c.bf16 %v110, %v109
    %v123 = vpack.c.bf16 %v112, %v111
    %v124 = vpack.c.bf16 %v114, %v113
    %v125 = vpack.c.bf16 %v116, %v115
    %v126 = vpack.c.bf16 %v118, %v117
    %v127 = vld [vmem:[#allocation6] sm:$0xff]
    %v128 = vld [vmem:[#allocation6 + $0x8] sm:$0xff]
    %v129 = vld [vmem:[#allocation6 + $0x10] sm:$0xff]
    %v130 = vld [vmem:[#allocation6 + $0x18] sm:$0xff]
    %v131 = vld [vmem:[#allocation6 + $0x20] sm:$0xff]
    %v132 = vld [vmem:[#allocation6 + $0x28] sm:$0xff]
    %v133 = vld [vmem:[#allocation6 + $0x30] sm:$0xff]
    %v134 = vld [vmem:[#allocation6 + $0x38] sm:$0xff]
    %v135 = vld [vmem:[#allocation6 + $0x40] sm:$0xff]
    %v136 = vld [vmem:[#allocation6 + $0x48] sm:$0xff]
    %v137 = vld [vmem:[#allocation6 + $0x50] sm:$0xff]
    %v138 = vld [vmem:[#allocation6 + $0x58] sm:$0xff]
    %v139 = vld [vmem:[#allocation6 + $0x60] sm:$0xff]
    %v140 = vld [vmem:[#allocation6 + $0x68] sm:$0xff]
    %v141 = vld [vmem:[#allocation6 + $0x70] sm:$0xff]
    %v142 = vld [vmem:[#allocation6 + $0x78] sm:$0xff]
    %v143 = vld [vmem:[#allocation8] sm:$0x3]
    %v145 = vperm.slane %v143, 0
    %v146 = vperm.slane %v143, 1
    %v165 = vunpack.c.l.b16 %v127
    %v166 = vunpack.c.h.b16 %v127
    %v167 = vunpack.c.l.b16 %v128
    %v168 = vunpack.c.h.b16 %v128
    %v169 = vunpack.c.l.b16 %v129
    %v170 = vunpack.c.h.b16 %v129
    %v171 = vunpack.c.l.b16 %v130
    %v172 = vunpack.c.h.b16 %v130
    %v173 = vunpack.c.l.b16 %v131
    %v174 = vunpack.c.h.b16 %v131
    %v175 = vunpack.c.l.b16 %v132
    %v176 = vunpack.c.h.b16 %v132
    %v177 = vunpack.c.l.b16 %v133
    %v178 = vunpack.c.h.b16 %v133
    %v179 = vunpack.c.l.b16 %v134
    %v180 = vunpack.c.h.b16 %v134
    %v181 = vunpack.c.l.b16 %v135
    %v182 = vunpack.c.h.b16 %v135
    %v183 = vunpack.c.l.b16 %v136
    %v184 = vunpack.c.h.b16 %v136
    %v185 = vunpack.c.l.b16 %v137
    %v186 = vunpack.c.h.b16 %v137
    %v187 = vunpack.c.l.b16 %v138
    %v188 = vunpack.c.h.b16 %v138
    %v189 = vunpack.c.l.b16 %v139
    %v190 = vunpack.c.h.b16 %v139
    %v191 = vunpack.c.l.b16 %v140
    %v192 = vunpack.c.h.b16 %v140
    %v193 = vunpack.c.l.b16 %v141
    %v194 = vunpack.c.h.b16 %v141
    %v195 = vunpack.c.l.b16 %v142
    %v196 = vunpack.c.h.b16 %v142
    %v197 = vpack.c.b16 %v167, %v165
    %v198 = vpack.c.b16 %v168, %v166
    %v199 = vpack.c.b16 %v171, %v169
    %v200 = vpack.c.b16 %v172, %v170
    %v201 = vpack.c.b16 %v175, %v173
    %v202 = vpack.c.b16 %v176, %v174
    %v203 = vpack.c.b16 %v179, %v177
    %v204 = vpack.c.b16 %v180, %v178
    %v205 = vpack.c.b16 %v183, %v181
    %v206 = vpack.c.b16 %v184, %v182
    %v207 = vpack.c.b16 %v187, %v185
    %v208 = vpack.c.b16 %v188, %v186
    %v209 = vpack.c.b16 %v191, %v189
    %v210 = vpack.c.b16 %v192, %v190
    %v211 = vpack.c.b16 %v195, %v193
    %v212 = vpack.c.b16 %v196, %v194
    %229 = vmatpush.bf16.msra.mxu0 %v211
    %230 = vmatpush.bf16.msra.mxu0 %v209
    %231 = vmatpush.bf16.msra.mxu0 %v207
    %232 = vmatpush.bf16.msra.mxu0 %v205
    %233 = vmatpush.bf16.msra.mxu0 %v203
    %234 = vmatpush.bf16.msra.mxu0 %v201
    %235 = vmatpush.bf16.msra.mxu0 %v199
    %236 = vmatpush.bf16.msra.mxu0 %v197
    %237 = vmatmul.bf16.gmra.mxu0 %v119
    %v238 = vpop.f32.mrf.mxu0
    %v239 = vadd.f32 %v145, %v238
    %v240 = vpop.f32.mrf.mxu0
    %v241 = vadd.f32 %v145, %v240
    %242 = vmatmul.bf16.gmra.mxu0 %v120
    %v243 = vpop.f32.mrf.mxu0
    %v244 = vadd.f32 %v145, %v243
    %v245 = vpop.f32.mrf.mxu0
    %v246 = vadd.f32 %v145, %v245
    %247 = vmatmul.bf16.gmra.mxu0 %v121
    %v248 = vpop.f32.mrf.mxu0
    %v249 = vadd.f32 %v145, %v248
    %v250 = vpop.f32.mrf.mxu0
    %v251 = vadd.f32 %v145, %v250
    %252 = vmatmul.bf16.gmra.mxu0 %v122
    %v253 = vpop.f32.mrf.mxu0
    %v254 = vadd.f32 %v145, %v253
    %v255 = vpop.f32.mrf.mxu0
    %v256 = vadd.f32 %v145, %v255
    %257 = vmatmul.bf16.gmra.mxu0 %v123
    %v258 = vpop.f32.mrf.mxu0
    %v259 = vadd.f32 %v145, %v258
    %v260 = vpop.f32.mrf.mxu0
    %v261 = vadd.f32 %v145, %v260
    %262 = vmatmul.bf16.gmra.mxu0 %v124
    %v263 = vpop.f32.mrf.mxu0
    %v264 = vadd.f32 %v145, %v263
    %v265 = vpop.f32.mrf.mxu0
    %v266 = vadd.f32 %v145, %v265
    %267 = vmatmul.bf16.gmra.mxu0 %v125
    %v268 = vpop.f32.mrf.mxu0
    %v269 = vadd.f32 %v145, %v268
    %v270 = vpop.f32.mrf.mxu0
    %v271 = vadd.f32 %v145, %v270
    %272 = vmatmul.bf16.gmra.mxu0 %v126
    %v273 = vpop.f32.mrf.mxu0
    %v274 = vadd.f32 %v145, %v273
    %v275 = vpop.f32.mrf.mxu0
    %v276 = vadd.f32 %v145, %v275
    %277 = vdwg.mxu0
    %278 = vmatpush.bf16.msra.mxu0 %v212
    %279 = vmatpush.bf16.msra.mxu0 %v210
    %280 = vmatpush.bf16.msra.mxu0 %v208
    %281 = vmatpush.bf16.msra.mxu0 %v206
    %282 = vmatpush.bf16.msra.mxu0 %v204
    %283 = vmatpush.bf16.msra.mxu0 %v202
    %284 = vmatpush.bf16.msra.mxu0 %v200
    %285 = vmatpush.bf16.msra.mxu0 %v198
    %286 = vmatmul.bf16.gmra.mxu0 %v119
    %v287 = vpop.f32.mrf.mxu0
    %v288 = vadd.f32 %v146, %v287
    %v289 = vpop.f32.mrf.mxu0
    %v290 = vadd.f32 %v146, %v289
    %291 = vmatmul.bf16.gmra.mxu0 %v120
    %v292 = vpop.f32.mrf.mxu0
    %v293 = vadd.f32 %v146, %v292
    %v294 = vpop.f32.mrf.mxu0
    %v295 = vadd.f32 %v146, %v294
    %296 = vmatmul.bf16.gmra.mxu0 %v121
    %v297 = vpop.f32.mrf.mxu0
    %v298 = vadd.f32 %v146, %v297
    %v299 = vpop.f32.mrf.mxu0
    %v300 = vadd.f32 %v146, %v299
    %301 = vmatmul.bf16.gmra.mxu0 %v122
    %v302 = vpop.f32.mrf.mxu0
    %v303 = vadd.f32 %v146, %v302
    %v304 = vpop.f32.mrf.mxu0
    %v305 = vadd.f32 %v146, %v304
    %306 = vmatmul.bf16.gmra.mxu0 %v123
    %v307 = vpop.f32.mrf.mxu0
    %v308 = vadd.f32 %v146, %v307
    %v309 = vpop.f32.mrf.mxu0
    %v310 = vadd.f32 %v146, %v309
    %311 = vmatmul.bf16.gmra.mxu0 %v124
    %v312 = vpop.f32.mrf.mxu0
    %v313 = vadd.f32 %v146, %v312
    %v314 = vpop.f32.mrf.mxu0
    %v315 = vadd.f32 %v146, %v314
    %316 = vmatmul.bf16.gmra.mxu0 %v125
    %v317 = vpop.f32.mrf.mxu0
    %v318 = vadd.f32 %v146, %v317
    %v319 = vpop.f32.mrf.mxu0
    %v320 = vadd.f32 %v146, %v319
    %321 = vmatmul.bf16.gmra.mxu0 %v126
    %v322 = vpop.f32.mrf.mxu0
    %v323 = vadd.f32 %v146, %v322
    %v324 = vpop.f32.mrf.mxu0
    %v325 = vadd.f32 %v146, %v324
    %326 = vdwg.mxu0
    %327 = vst [vmem:[#allocation2 + $0x10] sm:$0xff] 0.0
    %328 = vst [vmem:[#allocation2 + $0x18] sm:$0xff] 0.0
    %329 = vst [vmem:[#allocation2 + $0x1f0] sm:$0xff] 0.0
    %330 = vst [vmem:[#allocation2 + $0x1f8] sm:$0xff] 0.0
    %s331 = scalar_lea.vmem [#allocation2], 432
    %332 = vst [vmem:[%s331 + $0x10] sm:$0xff] 0.0
    %333 = vst [vmem:[%s331 + $0x18] sm:$0xff] 0.0
    %334 = vst [vmem:[%s331 + $0x1f0] sm:$0xff] 0.0
    %335 = vst [vmem:[%s331 + $0x1f8] sm:$0xff] 0.0
    %s336 = scalar_lea.vmem [#allocation2], 48
    %337 = vst [vmem:[%s336 + $0x10] sm:$0xff] %v239
    %338 = vst [vmem:[%s336 + $0x18] sm:$0xff] %v288
    %339 = vst [vmem:[%s336 + $0x40] sm:$0xff] %v241
    %340 = vst [vmem:[%s336 + $0x48] sm:$0xff] %v290
    %341 = vst [vmem:[%s336 + $0x70] sm:$0xff] %v244
    %342 = vst [vmem:[%s336 + $0x78] sm:$0xff] %v293
    %343 = vst [vmem:[%s336 + $0xa0] sm:$0xff] %v246
    %344 = vst [vmem:[%s336 + $0xa8] sm:$0xff] %v295
    %345 = vst [vmem:[%s336 + $0xd0] sm:$0xff] %v249
    %346 = vst [vmem:[%s336 + $0xd8] sm:$0xff] %v298
    %347 = vst [vmem:[%s336 + $0x100] sm:$0xff] %v251
    %348 = vst [vmem:[%s336 + $0x108] sm:$0xff] %v300
    %349 = vst [vmem:[%s336 + $0x130] sm:$0xff] %v254
    %350 = vst [vmem:[%s336 + $0x138] sm:$0xff] %v303
    %351 = vst [vmem:[%s336 + $0x160] sm:$0xff] %v256
    %352 = vst [vmem:[%s336 + $0x168] sm:$0xff] %v305
    %353 = vst [vmem:[%s336 + $0x1f0] sm:$0xff] %v259
    %354 = vst [vmem:[%s336 + $0x1f8] sm:$0xff] %v308
    %355 = vst [vmem:[%s336 + $0x220] sm:$0xff] %v261
    %356 = vst [vmem:[%s336 + $0x228] sm:$0xff] %v310
    %357 = vst [vmem:[%s336 + $0x250] sm:$0xff] %v264
    %358 = vst [vmem:[%s336 + $0x258] sm:$0xff] %v313
    %359 = vst [vmem:[%s336 + $0x280] sm:$0xff] %v266
    %360 = vst [vmem:[%s336 + $0x288] sm:$0xff] %v315
    %361 = vst [vmem:[%s336 + $0x2b0] sm:$0xff] %v269
    %362 = vst [vmem:[%s336 + $0x2b8] sm:$0xff] %v318
    %363 = vst [vmem:[%s336 + $0x2e0] sm:$0xff] %v271
    %364 = vst [vmem:[%s336 + $0x2e8] sm:$0xff] %v320
    %365 = vst [vmem:[%s336 + $0x310] sm:$0xff] %v274
    %366 = vst [vmem:[%s336 + $0x318] sm:$0xff] %v323
    %367 = vst [vmem:[%s336 + $0x340] sm:$0xff] %v276
    %368 = vst [vmem:[%s336 + $0x348] sm:$0xff] %v325
    %v369 = vld [vmem:[#allocation9] sm:$0x77]
    %v370 = vld [vmem:[#allocation9 + $0x8] sm:$0x77]
    %v371 = vld [vmem:[#allocation9 + $0x10] sm:$0x77]
    %v372 = vld [vmem:[#allocation2 + $0x10] sm:$0xff]
    %v373 = vld [vmem:[#allocation2 + $0x18] sm:$0xff]
    %v374 = vld [vmem:[#allocation2 + $0x40] sm:$0xff]
    %v375 = vld [vmem:[#allocation2 + $0x48] sm:$0xff]
    %v376 = vld [vmem:[#allocation2 + $0x70] sm:$0xff]
    %v377 = vld [vmem:[#allocation2 + $0x78] sm:$0xff]
    %v378 = vld [vmem:[#allocation2 + $0xa0] sm:$0xff]
    %v379 = vld [vmem:[#allocation2 + $0xa8] sm:$0xff]
    %v380 = vld [vmem:[#allocation2 + $0xd0] sm:$0xff]
    %v381 = vld [vmem:[#allocation2 + $0xd8] sm:$0xff]
    %v382 = vld [vmem:[#allocation2 + $0x100] sm:$0xff]
    %v383 = vld [vmem:[#allocation2 + $0x108] sm:$0xff]
    %v384 = vld [vmem:[#allocation2 + $0x130] sm:$0xff]
    %v385 = vld [vmem:[#allocation2 + $0x138] sm:$0xff]
    %v386 = vld [vmem:[#allocation2 + $0x160] sm:$0xff]
    %v387 = vld [vmem:[#allocation2 + $0x168] sm:$0xff]
    %v388 = vld [vmem:[#allocation2 + $0x190] sm:$0xff]
    %v389 = vld [vmem:[#allocation2 + $0x198] sm:$0xff]
    %v390 = vld [vmem:[#allocation2 + $0x1c0] sm:$0xff]
    %v391 = vld [vmem:[#allocation2 + $0x1c8] sm:$0xff]
    %v392 = vld [vmem:[#allocation2 + $0x1f0] sm:$0xff]
    %v393 = vld [vmem:[#allocation2 + $0x1f8] sm:$0xff]
    %v394 = vld [vmem:[#allocation2 + $0x220] sm:$0xff]
    %v395 = vld [vmem:[#allocation2 + $0x228] sm:$0xff]
    %v396 = vld [vmem:[#allocation2 + $0x250] sm:$0xff]
    %v397 = vld [vmem:[#allocation2 + $0x258] sm:$0xff]
    %v398 = vld [vmem:[#allocation2 + $0x280] sm:$0xff]
    %v399 = vld [vmem:[#allocation2 + $0x288] sm:$0xff]
    %v400 = vld [vmem:[#allocation2 + $0x2b0] sm:$0xff]
    %v401 = vld [vmem:[#allocation2 + $0x2b8] sm:$0xff]
    %v402 = vld [vmem:[#allocation2 + $0x2e0] sm:$0xff]
    %v403 = vld [vmem:[#allocation2 + $0x2e8] sm:$0xff]
    %v404 = vld [vmem:[#allocation2 + $0x310] sm:$0xff]
    %v405 = vld [vmem:[#allocation2 + $0x318] sm:$0xff]
    %v406 = vld [vmem:[#allocation2 + $0x340] sm:$0xff]
    %v407 = vld [vmem:[#allocation2 + $0x348] sm:$0xff]
    %v408 = vld [vmem:[#allocation2 + $0x370] sm:$0xff]
    %v409 = vld [vmem:[#allocation2 + $0x378] sm:$0xff]
    %v410 = vld [vmem:[#allocation2 + $0x3a0] sm:$0xff]
    %v411 = vld [vmem:[#allocation2 + $0x3a8] sm:$0xff]
    %v412 = vld [vmem:[#allocation2] sm:$0x80]
    %v413 = vld [vmem:[#allocation2 + $0x8] sm:$0x80]
    %v414 = vld [vmem:[#allocation2 + $0x10] sm:$0x7f]
    %v415 = vld [vmem:[#allocation2 + $0x18] sm:$0x7f]
    %v416 = vld [vmem:[#allocation2 + $0x30] sm:$0x80]
    %v417 = vld [vmem:[#allocation2 + $0x38] sm:$0x80]
    %v418 = vld [vmem:[#allocation2 + $0x40] sm:$0x7f]
    %v419 = vld [vmem:[#allocation2 + $0x48] sm:$0x7f]
    %v420 = vld [vmem:[#allocation2 + $0x60] sm:$0x80]
    %v421 = vld [vmem:[#allocation2 + $0x68] sm:$0x80]
    %v422 = vld [vmem:[#allocation2 + $0x70] sm:$0x7f]
    %v423 = vld [vmem:[#allocation2 + $0x78] sm:$0x7f]
    %v424 = vld [vmem:[#allocation2 + $0x90] sm:$0x80]
    %v425 = vld [vmem:[#allocation2 + $0x98] sm:$0x80]
    %v426 = vld [vmem:[#allocation2 + $0xa0] sm:$0x7f]
    %v427 = vld [vmem:[#allocation2 + $0xa8] sm:$0x7f]
    %v428 = vld [vmem:[#allocation2 + $0xc0] sm:$0x80]
    %v429 = vld [vmem:[#allocation2 + $0xc8] sm:$0x80]
    %v430 = vld [vmem:[#allocation2 + $0xd0] sm:$0x7f]
    %v431 = vld [vmem:[#allocation2 + $0xd8] sm:$0x7f]
    %v432 = vld [vmem:[#allocation2 + $0xf0] sm:$0x80]
    %v433 = vld [vmem:[#allocation2 + $0xf8] sm:$0x80]
    %v434 = vld [vmem:[#allocation2 + $0x100] sm:$0x7f]
    %v435 = vld [vmem:[#allocation2 + $0x108] sm:$0x7f]
    %v436 = vld [vmem:[#allocation2 + $0x120] sm:$0x80]
    %v437 = vld [vmem:[#allocation2 + $0x128] sm:$0x80]
    %v438 = vld [vmem:[#allocation2 + $0x130] sm:$0x7f]
    %v439 = vld [vmem:[#allocation2 + $0x138] sm:$0x7f]
    %v440 = vld [vmem:[#allocation2 + $0x150] sm:$0x80]
    %v441 = vld [vmem:[#allocation2 + $0x158] sm:$0x80]
    %v442 = vld [vmem:[#allocation2 + $0x160] sm:$0x7f]
    %v443 = vld [vmem:[#allocation2 + $0x168] sm:$0x7f]
    %v444 = vld [vmem:[#allocation2 + $0x180] sm:$0x80]
    %v445 = vld [vmem:[#allocation2 + $0x188] sm:$0x80]
    %v446 = vld [vmem:[#allocation2 + $0x190] sm:$0x7f]
    %v447 = vld [vmem:[#allocation2 + $0x198] sm:$0x7f]
    %v448 = vld [vmem:[#allocation2 + $0x1b0] sm:$0x80]
    %v449 = vld [vmem:[#allocation2 + $0x1b8] sm:$0x80]
    %v450 = vld [vmem:[#allocation2 + $0x1c0] sm:$0x7f]
    %v451 = vld [vmem:[#allocation2 + $0x1c8] sm:$0x7f]
    %v452 = vld [vmem:[#allocation2 + $0x1e0] sm:$0x80]
    %v453 = vld [vmem:[#allocation2 + $0x1e8] sm:$0x80]
    %v454 = vld [vmem:[#allocation2 + $0x1f0] sm:$0x7f]
    %v455 = vld [vmem:[#allocation2 + $0x1f8] sm:$0x7f]
    %v456 = vld [vmem:[#allocation2 + $0x210] sm:$0x80]
    %v457 = vld [vmem:[#allocation2 + $0x218] sm:$0x80]
    %v458 = vld [vmem:[#allocation2 + $0x220] sm:$0x7f]
    %v459 = vld [vmem:[#allocation2 + $0x228] sm:$0x7f]
    %v460 = vld [vmem:[#allocation2 + $0x240] sm:$0x80]
    %v461 = vld [vmem:[#allocation2 + $0x248] sm:$0x80]
    %v462 = vld [vmem:[#allocation2 + $0x250] sm:$0x7f]
    %v463 = vld [vmem:[#allocation2 + $0x258] sm:$0x7f]
    %v464 = vld [vmem:[#allocation2 + $0x270] sm:$0x80]
    %v465 = vld [vmem:[#allocation2 + $0x278] sm:$0x80]
    %v466 = vld [vmem:[#allocation2 + $0x280] sm:$0x7f]
    %v467 = vld [vmem:[#allocation2 + $0x288] sm:$0x7f]
    %v468 = vld [vmem:[#allocation2 + $0x2a0] sm:$0x80]
    %v469 = vld [vmem:[#allocation2 + $0x2a8] sm:$0x80]
    %v470 = vld [vmem:[#allocation2 + $0x2b0] sm:$0x7f]
    %v471 = vld [vmem:[#allocation2 + $0x2b8] sm:$0x7f]
    %v472 = vld [vmem:[#allocation2 + $0x2d0] sm:$0x80]
    %v473 = vld [vmem:[#allocation2 + $0x2d8] sm:$0x80]
    %v474 = vld [vmem:[#allocation2 + $0x2e0] sm:$0x7f]
    %v475 = vld [vmem:[#allocation2 + $0x2e8] sm:$0x7f]
    %v476 = vld [vmem:[#allocation2 + $0x300] sm:$0x80]
    %v477 = vld [vmem:[#allocation2 + $0x308] sm:$0x80]
    %v478 = vld [vmem:[#allocation2 + $0x310] sm:$0x7f]
    %v479 = vld [vmem:[#allocation2 + $0x318] sm:$0x7f]
    %v480 = vld [vmem:[#allocation2 + $0x330] sm:$0x80]
    %v481 = vld [vmem:[#allocation2 + $0x338] sm:$0x80]
    %v482 = vld [vmem:[#allocation2 + $0x340] sm:$0x7f]
    %v483 = vld [vmem:[#allocation2 + $0x348] sm:$0x7f]
    %v484 = vld [vmem:[#allocation2 + $0x360] sm:$0x80]
    %v485 = vld [vmem:[#allocation2 + $0x368] sm:$0x80]
    %v486 = vld [vmem:[#allocation2 + $0x370] sm:$0x7f]
    %v487 = vld [vmem:[#allocation2 + $0x378] sm:$0x7f]
    %v488 = vld [vmem:[#allocation2 + $0x390] sm:$0x80]
    %v489 = vld [vmem:[#allocation2 + $0x398] sm:$0x80]
    %v490 = vld [vmem:[#allocation2 + $0x3a0] sm:$0x7f]
    %v491 = vld [vmem:[#allocation2 + $0x3a8] sm:$0x7f]
    %v492 = vld [vmem:[#allocation2 + $0x10] sm:$0xfe]
    %v493 = vld [vmem:[#allocation2 + $0x18] sm:$0xfe]
    %v494 = vld [vmem:[#allocation2 + $0x20] sm:$0x1]
    %v495 = vld [vmem:[#allocation2 + $0x28] sm:$0x1]
    %v496 = vld [vmem:[#allocation2 + $0x40] sm:$0xfe]
    %v497 = vld [vmem:[#allocation2 + $0x48] sm:$0xfe]
    %v498 = vld [vmem:[#allocation2 + $0x50] sm:$0x1]
    %v499 = vld [vmem:[#allocation2 + $0x58] sm:$0x1]
    %v500 = vld [vmem:[#allocation2 + $0x70] sm:$0xfe]
    %v501 = vld [vmem:[#allocation2 + $0x78] sm:$0xfe]
    %v502 = vld [vmem:[#allocation2 + $0x80] sm:$0x1]
    %v503 = vld [vmem:[#allocation2 + $0x88] sm:$0x1]
    %v504 = vld [vmem:[#allocation2 + $0xa0] sm:$0xfe]
    %v505 = vld [vmem:[#allocation2 + $0xa8] sm:$0xfe]
    %v506 = vld [vmem:[#allocation2 + $0xb0] sm:$0x1]
    %v507 = vld [vmem:[#allocation2 + $0xb8] sm:$0x1]
    %v508 = vld [vmem:[#allocation2 + $0xd0] sm:$0xfe]
    %v509 = vld [vmem:[#allocation2 + $0xd8] sm:$0xfe]
    %v510 = vld [vmem:[#allocation2 + $0xe0] sm:$0x1]
    %v511 = vld [vmem:[#allocation2 + $0xe8] sm:$0x1]
    %v512 = vld [vmem:[#allocation2 + $0x100] sm:$0xfe]
    %v513 = vld [vmem:[#allocation2 + $0x108] sm:$0xfe]
    %v514 = vld [vmem:[#allocation2 + $0x110] sm:$0x1]
    %v515 = vld [vmem:[#allocation2 + $0x118] sm:$0x1]
    %v516 = vld [vmem:[#allocation2 + $0x130] sm:$0xfe]
    %v517 = vld [vmem:[#allocation2 + $0x138] sm:$0xfe]
    %v518 = vld [vmem:[#allocation2 + $0x140] sm:$0x1]
    %v519 = vld [vmem:[#allocation2 + $0x148] sm:$0x1]
    %v520 = vld [vmem:[#allocation2 + $0x160] sm:$0xfe]
    %v521 = vld [vmem:[#allocation2 + $0x168] sm:$0xfe]
    %v522 = vld [vmem:[#allocation2 + $0x170] sm:$0x1]
    %v523 = vld [vmem:[#allocation2 + $0x178] sm:$0x1]
    %v524 = vld [vmem:[#allocation2 + $0x190] sm:$0xfe]
    %v525 = vld [vmem:[#allocation2 + $0x198] sm:$0xfe]
    %v526 = vld [vmem:[#allocation2 + $0x1a0] sm:$0x1]
    %v527 = vld [vmem:[#allocation2 + $0x1a8] sm:$0x1]
    %v528 = vld [vmem:[#allocation2 + $0x1c0] sm:$0xfe]
    %v529 = vld [vmem:[#allocation2 + $0x1c8] sm:$0xfe]
    %v530 = vld [vmem:[#allocation2 + $0x1d0] sm:$0x1]
    %v531 = vld [vmem:[#allocation2 + $0x1d8] sm:$0x1]
    %v532 = vld [vmem:[#allocation2 + $0x1f0] sm:$0xfe]
    %v533 = vld [vmem:[#allocation2 + $0x1f8] sm:$0xfe]
    %v534 = vld [vmem:[#allocation2 + $0x200] sm:$0x1]
    %v535 = vld [vmem:[#allocation2 + $0x208] sm:$0x1]
    %v536 = vld [vmem:[#allocation2 + $0x220] sm:$0xfe]
    %v537 = vld [vmem:[#allocation2 + $0x228] sm:$0xfe]
    %v538 = vld [vmem:[#allocation2 + $0x230] sm:$0x1]
    %v539 = vld [vmem:[#allocation2 + $0x238] sm:$0x1]
    %v540 = vld [vmem:[#allocation2 + $0x250] sm:$0xfe]
    %v541 = vld [vmem:[#allocation2 + $0x258] sm:$0xfe]
    %v542 = vld [vmem:[#allocation2 + $0x260] sm:$0x1]
    %v543 = vld [vmem:[#allocation2 + $0x268] sm:$0x1]
    %v544 = vld [vmem:[#allocation2 + $0x280] sm:$0xfe]
    %v545 = vld [vmem:[#allocation2 + $0x288] sm:$0xfe]
    %v546 = vld [vmem:[#allocation2 + $0x290] sm:$0x1]
    %v547 = vld [vmem:[#allocation2 + $0x298] sm:$0x1]
    %v548 = vld [vmem:[#allocation2 + $0x2b0] sm:$0xfe]
    %v549 = vld [vmem:[#allocation2 + $0x2b8] sm:$0xfe]
    %v550 = vld [vmem:[#allocation2 + $0x2c0] sm:$0x1]
    %v551 = vld [vmem:[#allocation2 + $0x2c8] sm:$0x1]
    %v552 = vld [vmem:[#allocation2 + $0x2e0] sm:$0xfe]
    %v553 = vld [vmem:[#allocation2 + $0x2e8] sm:$0xfe]
    %v554 = vld [vmem:[#allocation2 + $0x2f0] sm:$0x1]
    %v555 = vld [vmem:[#allocation2 + $0x2f8] sm:$0x1]
    %v556 = vld [vmem:[#allocation2 + $0x310] sm:$0xfe]
    %v557 = vld [vmem:[#allocation2 + $0x318] sm:$0xfe]
    %v558 = vld [vmem:[#allocation2 + $0x320] sm:$0x1]
    %v559 = vld [vmem:[#allocation2 + $0x328] sm:$0x1]
    %v560 = vld [vmem:[#allocation2 + $0x340] sm:$0xfe]
    %v561 = vld [vmem:[#allocation2 + $0x348] sm:$0xfe]
    %v562 = vld [vmem:[#allocation2 + $0x350] sm:$0x1]
    %v563 = vld [vmem:[#allocation2 + $0x358] sm:$0x1]
    %v564 = vld [vmem:[#allocation2 + $0x370] sm:$0xfe]
    %v565 = vld [vmem:[#allocation2 + $0x378] sm:$0xfe]
    %v566 = vld [vmem:[#allocation2 + $0x380] sm:$0x1]
    %v567 = vld [vmem:[#allocation2 + $0x388] sm:$0x1]
    %v568 = vld [vmem:[#allocation2 + $0x3a0] sm:$0xfe]
    %v569 = vld [vmem:[#allocation2 + $0x3a8] sm:$0xfe]
    %v570 = vld [vmem:[#allocation2 + $0x3b0] sm:$0x1]
    %v571 = vld [vmem:[#allocation2 + $0x3b8] sm:$0x1]
    %v572 = vlaneseq
    %v573 = vshrl.u32 %v572, 7
    %v575 = vperm.slane %v369, 1
    %v576 = vperm.slane %v369, 5
    %v579 = vperm.slane %v575, 1
    %v580 = vperm.slane %v576, 1
    %v581 = vmul.f32 %v372, %v579
    %v582 = vmul.f32 %v373, %v580
    %v583 = vmul.f32 %v374, %v579
    %v584 = vmul.f32 %v375, %v580
    %v585 = vmul.f32 %v376, %v579
    %v586 = vmul.f32 %v377, %v580
    %v587 = vmul.f32 %v378, %v579
    %v588 = vmul.f32 %v379, %v580
    %v589 = vmul.f32 %v380, %v579
    %v590 = vmul.f32 %v381, %v580
    %v591 = vmul.f32 %v382, %v579
    %v592 = vmul.f32 %v383, %v580
    %v593 = vmul.f32 %v384, %v579
    %v594 = vmul.f32 %v385, %v580
    %v595 = vmul.f32 %v386, %v579
    %v596 = vmul.f32 %v387, %v580
    %v597 = vmul.f32 %v392, %v579
    %v598 = vmul.f32 %v393, %v580
    %v599 = vmul.f32 %v394, %v579
    %v600 = vmul.f32 %v395, %v580
    %v601 = vmul.f32 %v396, %v579
    %v602 = vmul.f32 %v397, %v580
    %v603 = vmul.f32 %v398, %v579
    %v604 = vmul.f32 %v399, %v580
    %v605 = vmul.f32 %v400, %v579
    %v606 = vmul.f32 %v401, %v580
    %v607 = vmul.f32 %v402, %v579
    %v608 = vmul.f32 %v403, %v580
    %v609 = vmul.f32 %v404, %v579
    %v610 = vmul.f32 %v405, %v580
    %v611 = vmul.f32 %v406, %v579
    %v612 = vmul.f32 %v407, %v580
    %v614 = vperm.slane %v370, 1
    %v615 = vperm.slane %v370, 5
    %v618 = vperm.slane %v614, 1
    %v619 = vperm.slane %v615, 1
    %v620 = vmul.f32 %v374, %v618
    %v621 = vmul.f32 %v375, %v619
    %v622 = vmul.f32 %v376, %v618
    %v623 = vmul.f32 %v377, %v619
    %v624 = vmul.f32 %v378, %v618
    %v625 = vmul.f32 %v379, %v619
    %v626 = vmul.f32 %v380, %v618
    %v627 = vmul.f32 %v381, %v619
    %v628 = vmul.f32 %v382, %v618
    %v629 = vmul.f32 %v383, %v619
    %v630 = vmul.f32 %v384, %v618
    %v631 = vmul.f32 %v385, %v619
    %v632 = vmul.f32 %v386, %v618
    %v633 = vmul.f32 %v387, %v619
    %v634 = vmul.f32 %v388, %v618
    %v635 = vmul.f32 %v389, %v619
    %v636 = vmul.f32 %v394, %v618
    %v637 = vmul.f32 %v395, %v619
    %v638 = vmul.f32 %v396, %v618
    %v639 = vmul.f32 %v397, %v619
    %v640 = vmul.f32 %v398, %v618
    %v641 = vmul.f32 %v399, %v619
    %v642 = vmul.f32 %v400, %v618
    %v643 = vmul.f32 %v401, %v619
    %v644 = vmul.f32 %v402, %v618
    %v645 = vmul.f32 %v403, %v619
    %v646 = vmul.f32 %v404, %v618
    %v647 = vmul.f32 %v405, %v619
    %v648 = vmul.f32 %v406, %v618
    %v649 = vmul.f32 %v407, %v619
    %v650 = vmul.f32 %v408, %v618
    %v651 = vmul.f32 %v409, %v619
    %v652 = vadd.f32 %v581, %v620
    %v653 = vadd.f32 %v582, %v621
    %v654 = vadd.f32 %v583, %v622
    %v655 = vadd.f32 %v584, %v623
    %v656 = vadd.f32 %v585, %v624
    %v657 = vadd.f32 %v586, %v625
    %v658 = vadd.f32 %v587, %v626
    %v659 = vadd.f32 %v588, %v627
    %v660 = vadd.f32 %v589, %v628
    %v661 = vadd.f32 %v590, %v629
    %v662 = vadd.f32 %v591, %v630
    %v663 = vadd.f32 %v592, %v631
    %v664 = vadd.f32 %v593, %v632
    %v665 = vadd.f32 %v594, %v633
    %v666 = vadd.f32 %v595, %v634
    %v667 = vadd.f32 %v596, %v635
    %v668 = vadd.f32 %v597, %v636
    %v669 = vadd.f32 %v598, %v637
    %v670 = vadd.f32 %v599, %v638
    %v671 = vadd.f32 %v600, %v639
    %v672 = vadd.f32 %v601, %v640
    %v673 = vadd.f32 %v602, %v641
    %v674 = vadd.f32 %v603, %v642
    %v675 = vadd.f32 %v604, %v643
    %v676 = vadd.f32 %v605, %v644
    %v677 = vadd.f32 %v606, %v645
    %v678 = vadd.f32 %v607, %v646
    %v679 = vadd.f32 %v608, %v647
    %v680 = vadd.f32 %v609, %v648
    %v681 = vadd.f32 %v610, %v649
    %v682 = vadd.f32 %v611, %v650
    %v683 = vadd.f32 %v612, %v651
    %v685 = vperm.slane %v371, 1
    %v686 = vperm.slane %v371, 5
    %v689 = vperm.slane %v685, 1
    %v690 = vperm.slane %v686, 1
    %v691 = vmul.f32 %v376, %v689
    %v692 = vmul.f32 %v377, %v690
    %v693 = vmul.f32 %v378, %v689
    %v694 = vmul.f32 %v379, %v690
    %v695 = vmul.f32 %v380, %v689
    %v696 = vmul.f32 %v381, %v690
    %v697 = vmul.f32 %v382, %v689
    %v698 = vmul.f32 %v383, %v690
    %v699 = vmul.f32 %v384, %v689
    %v700 = vmul.f32 %v385, %v690
    %v701 = vmul.f32 %v386, %v689
    %v702 = vmul.f32 %v387, %v690
    %v703 = vmul.f32 %v388, %v689
    %v704 = vmul.f32 %v389, %v690
    %v705 = vmul.f32 %v390, %v689
    %v706 = vmul.f32 %v391, %v690
    %v707 = vmul.f32 %v396, %v689
    %v708 = vmul.f32 %v397, %v690
    %v709 = vmul.f32 %v398, %v689
    %v710 = vmul.f32 %v399, %v690
    %v711 = vmul.f32 %v400, %v689
    %v712 = vmul.f32 %v401, %v690
    %v713 = vmul.f32 %v402, %v689
    %v714 = vmul.f32 %v403, %v690
    %v715 = vmul.f32 %v404, %v689
    %v716 = vmul.f32 %v405, %v690
    %v717 = vmul.f32 %v406, %v689
    %v718 = vmul.f32 %v407, %v690
    %v719 = vmul.f32 %v408, %v689
    %v720 = vmul.f32 %v409, %v690
    %v721 = vmul.f32 %v410, %v689
    %v722 = vmul.f32 %v411, %v690
    %v723 = vadd.f32 %v652, %v691
    %v724 = vadd.f32 %v653, %v692
    %v725 = vadd.f32 %v654, %v693
    %v726 = vadd.f32 %v655, %v694
    %v727 = vadd.f32 %v656, %v695
    %v728 = vadd.f32 %v657, %v696
    %v729 = vadd.f32 %v658, %v697
    %v730 = vadd.f32 %v659, %v698
    %v731 = vadd.f32 %v660, %v699
    %v732 = vadd.f32 %v661, %v700
    %v733 = vadd.f32 %v662, %v701
    %v734 = vadd.f32 %v663, %v702
    %v735 = vadd.f32 %v664, %v703
    %v736 = vadd.f32 %v665, %v704
    %v737 = vadd.f32 %v666, %v705
    %v738 = vadd.f32 %v667, %v706
    %v739 = vadd.f32 %v668, %v707
    %v740 = vadd.f32 %v669, %v708
    %v741 = vadd.f32 %v670, %v709
    %v742 = vadd.f32 %v671, %v710
    %v743 = vadd.f32 %v672, %v711
    %v744 = vadd.f32 %v673, %v712
    %v745 = vadd.f32 %v674, %v713
    %v746 = vadd.f32 %v675, %v714
    %v747 = vadd.f32 %v676, %v715
    %v748 = vadd.f32 %v677, %v716
    %v749 = vadd.f32 %v678, %v717
    %v750 = vadd.f32 %v679, %v718
    %v751 = vadd.f32 %v680, %v719
    %v752 = vadd.f32 %v681, %v720
    %v753 = vadd.f32 %v682, %v721
    %v754 = vadd.f32 %v683, %v722
    %vm755 = vcmp.eq.s32.totalorder %v573, 0
    %v756 = vperm.slane %v369, 0
    %v757 = vperm.slane %v369, 4
    %v760 = vperm.slane %v756, 0
    %v761 = vperm.slane %v757, 0
    %v762 = vmul.f32 %v412, %v760
    %v763 = vmul.f32 %v413, %v761
    %v764 = vmul.f32 %v414, %v760
    %v765 = vmul.f32 %v415, %v761
    %v766 = vmul.f32 %v416, %v760
    %v767 = vmul.f32 %v417, %v761
    %v768 = vmul.f32 %v418, %v760
    %v769 = vmul.f32 %v419, %v761
    %v770 = vmul.f32 %v420, %v760
    %v771 = vmul.f32 %v421, %v761
    %v772 = vmul.f32 %v422, %v760
    %v773 = vmul.f32 %v423, %v761
    %v774 = vmul.f32 %v424, %v760
    %v775 = vmul.f32 %v425, %v761
    %v776 = vmul.f32 %v426, %v760
    %v777 = vmul.f32 %v427, %v761
    %v778 = vmul.f32 %v428, %v760
    %v779 = vmul.f32 %v429, %v761
    %v780 = vmul.f32 %v430, %v760
    %v781 = vmul.f32 %v431, %v761
    %v782 = vmul.f32 %v432, %v760
    %v783 = vmul.f32 %v433, %v761
    %v784 = vmul.f32 %v434, %v760
    %v785 = vmul.f32 %v435, %v761
    %v786 = vmul.f32 %v436, %v760
    %v787 = vmul.f32 %v437, %v761
    %v788 = vmul.f32 %v438, %v760
    %v789 = vmul.f32 %v439, %v761
    %v790 = vmul.f32 %v440, %v760
    %v791 = vmul.f32 %v441, %v761
    %v792 = vmul.f32 %v442, %v760
    %v793 = vmul.f32 %v443, %v761
    %v794 = vmul.f32 %v452, %v760
    %v795 = vmul.f32 %v453, %v761
    %v796 = vmul.f32 %v454, %v760
    %v797 = vmul.f32 %v455, %v761
    %v798 = vmul.f32 %v456, %v760
    %v799 = vmul.f32 %v457, %v761
    %v800 = vmul.f32 %v458, %v760
    %v801 = vmul.f32 %v459, %v761
    %v802 = vmul.f32 %v460, %v760
    %v803 = vmul.f32 %v461, %v761
    %v804 = vmul.f32 %v462, %v760
    %v805 = vmul.f32 %v463, %v761
    %v806 = vmul.f32 %v464, %v760
    %v807 = vmul.f32 %v465, %v761
    %v808 = vmul.f32 %v466, %v760
    %v809 = vmul.f32 %v467, %v761
    %v810 = vmul.f32 %v468, %v760
    %v811 = vmul.f32 %v469, %v761
    %v812 = vmul.f32 %v470, %v760
    %v813 = vmul.f32 %v471, %v761
    %v814 = vmul.f32 %v472, %v760
    %v815 = vmul.f32 %v473, %v761
    %v816 = vmul.f32 %v474, %v760
    %v817 = vmul.f32 %v475, %v761
    %v818 = vmul.f32 %v476, %v760
    %v819 = vmul.f32 %v477, %v761
    %v820 = vmul.f32 %v478, %v760
    %v821 = vmul.f32 %v479, %v761
    %v822 = vmul.f32 %v480, %v760
    %v823 = vmul.f32 %v481, %v761
    %v824 = vmul.f32 %v482, %v760
    %v825 = vmul.f32 %v483, %v761
    %v826 = vperm.slane %v370, 0
    %v827 = vperm.slane %v370, 4
    %v830 = vperm.slane %v826, 0
    %v831 = vperm.slane %v827, 0
    %v832 = vmul.f32 %v416, %v830
    %v833 = vmul.f32 %v417, %v831
    %v834 = vmul.f32 %v418, %v830
    %v835 = vmul.f32 %v419, %v831
    %v836 = vmul.f32 %v420, %v830
    %v837 = vmul.f32 %v421, %v831
    %v838 = vmul.f32 %v422, %v830
    %v839 = vmul.f32 %v423, %v831
    %v840 = vmul.f32 %v424, %v830
    %v841 = vmul.f32 %v425, %v831
    %v842 = vmul.f32 %v426, %v830
    %v843 = vmul.f32 %v427, %v831
    %v844 = vmul.f32 %v428, %v830
    %v845 = vmul.f32 %v429, %v831
    %v846 = vmul.f32 %v430, %v830
    %v847 = vmul.f32 %v431, %v831
    %v848 = vmul.f32 %v432, %v830
    %v849 = vmul.f32 %v433, %v831
    %v850 = vmul.f32 %v434, %v830
    %v851 = vmul.f32 %v435, %v831
    %v852 = vmul.f32 %v436, %v830
    %v853 = vmul.f32 %v437, %v831
    %v854 = vmul.f32 %v438, %v830
    %v855 = vmul.f32 %v439, %v831
    %v856 = vmul.f32 %v440, %v830
    %v857 = vmul.f32 %v441, %v831
    %v858 = vmul.f32 %v442, %v830
    %v859 = vmul.f32 %v443, %v831
    %v860 = vmul.f32 %v444, %v830
    %v861 = vmul.f32 %v445, %v831
    %v862 = vmul.f32 %v446, %v830
    %v863 = vmul.f32 %v447, %v831
    %v864 = vmul.f32 %v456, %v830
    %v865 = vmul.f32 %v457, %v831
    %v866 = vmul.f32 %v458, %v830
    %v867 = vmul.f32 %v459, %v831
    %v868 = vmul.f32 %v460, %v830
    %v869 = vmul.f32 %v461, %v831
    %v870 = vmul.f32 %v462, %v830
    %v871 = vmul.f32 %v463, %v831
    %v872 = vmul.f32 %v464, %v830
    %v873 = vmul.f32 %v465, %v831
    %v874 = vmul.f32 %v466, %v830
    %v875 = vmul.f32 %v467, %v831
    %v876 = vmul.f32 %v468, %v830
    %v877 = vmul.f32 %v469, %v831
    %v878 = vmul.f32 %v470, %v830
    %v879 = vmul.f32 %v471, %v831
    %v880 = vmul.f32 %v472, %v830
    %v881 = vmul.f32 %v473, %v831
    %v882 = vmul.f32 %v474, %v830
    %v883 = vmul.f32 %v475, %v831
    %v884 = vmul.f32 %v476, %v830
    %v885 = vmul.f32 %v477, %v831
    %v886 = vmul.f32 %v478, %v830
    %v887 = vmul.f32 %v479, %v831
    %v888 = vmul.f32 %v480, %v830
    %v889 = vmul.f32 %v481, %v831
    %v890 = vmul.f32 %v482, %v830
    %v891 = vmul.f32 %v483, %v831
    %v892 = vmul.f32 %v484, %v830
    %v893 = vmul.f32 %v485, %v831
    %v894 = vmul.f32 %v486, %v830
    %v895 = vmul.f32 %v487, %v831
    %v896 = vadd.f32 %v762, %v832
    %v897 = vadd.f32 %v763, %v833
    %v898 = vadd.f32 %v764, %v834
    %v899 = vadd.f32 %v765, %v835
    %v900 = vadd.f32 %v766, %v836
    %v901 = vadd.f32 %v767, %v837
    %v902 = vadd.f32 %v768, %v838
    %v903 = vadd.f32 %v769, %v839
    %v904 = vadd.f32 %v770, %v840
    %v905 = vadd.f32 %v771, %v841
    %v906 = vadd.f32 %v772, %v842
    %v907 = vadd.f32 %v773, %v843
    %v908 = vadd.f32 %v774, %v844
    %v909 = vadd.f32 %v775, %v845
    %v910 = vadd.f32 %v776, %v846
    %v911 = vadd.f32 %v777, %v847
    %v912 = vadd.f32 %v778, %v848
    %v913 = vadd.f32 %v779, %v849
    %v914 = vadd.f32 %v780, %v850
    %v915 = vadd.f32 %v781, %v851
    %v916 = vadd.f32 %v782, %v852
    %v917 = vadd.f32 %v783, %v853
    %v918 = vadd.f32 %v784, %v854
    %v919 = vadd.f32 %v785, %v855
    %v920 = vadd.f32 %v786, %v856
    %v921 = vadd.f32 %v787, %v857
    %v922 = vadd.f32 %v788, %v858
    %v923 = vadd.f32 %v789, %v859
    %v924 = vadd.f32 %v790, %v860
    %v925 = vadd.f32 %v791, %v861
    %v926 = vadd.f32 %v792, %v862
    %v927 = vadd.f32 %v793, %v863
    %v928 = vadd.f32 %v794, %v864
    %v929 = vadd.f32 %v795, %v865
    %v930 = vadd.f32 %v796, %v866
    %v931 = vadd.f32 %v797, %v867
    %v932 = vadd.f32 %v798, %v868
    %v933 = vadd.f32 %v799, %v869
    %v934 = vadd.f32 %v800, %v870
    %v935 = vadd.f32 %v801, %v871
    %v936 = vadd.f32 %v802, %v872
    %v937 = vadd.f32 %v803, %v873
    %v938 = vadd.f32 %v804, %v874
    %v939 = vadd.f32 %v805, %v875
    %v940 = vadd.f32 %v806, %v876
    %v941 = vadd.f32 %v807, %v877
    %v942 = vadd.f32 %v808, %v878
    %v943 = vadd.f32 %v809, %v879
    %v944 = vadd.f32 %v810, %v880
    %v945 = vadd.f32 %v811, %v881
    %v946 = vadd.f32 %v812, %v882
    %v947 = vadd.f32 %v813, %v883
    %v948 = vadd.f32 %v814, %v884
    %v949 = vadd.f32 %v815, %v885
    %v950 = vadd.f32 %v816, %v886
    %v951 = vadd.f32 %v817, %v887
    %v952 = vadd.f32 %v818, %v888
    %v953 = vadd.f32 %v819, %v889
    %v954 = vadd.f32 %v820, %v890
    %v955 = vadd.f32 %v821, %v891
    %v956 = vadd.f32 %v822, %v892
    %v957 = vadd.f32 %v823, %v893
    %v958 = vadd.f32 %v824, %v894
    %v959 = vadd.f32 %v825, %v895
    %v960 = vperm.slane %v371, 0
    %v961 = vperm.slane %v371, 4
    %v964 = vperm.slane %v960, 0
    %v965 = vperm.slane %v961, 0
    %v966 = vmul.f32 %v420, %v964
    %v967 = vmul.f32 %v421, %v965
    %v968 = vmul.f32 %v422, %v964
    %v969 = vmul.f32 %v423, %v965
    %v970 = vmul.f32 %v424, %v964
    %v971 = vmul.f32 %v425, %v965
    %v972 = vmul.f32 %v426, %v964
    %v973 = vmul.f32 %v427, %v965
    %v974 = vmul.f32 %v428, %v964
    %v975 = vmul.f32 %v429, %v965
    %v976 = vmul.f32 %v430, %v964
    %v977 = vmul.f32 %v431, %v965
    %v978 = vmul.f32 %v432, %v964
    %v979 = vmul.f32 %v433, %v965
    %v980 = vmul.f32 %v434, %v964
    %v981 = vmul.f32 %v435, %v965
    %v982 = vmul.f32 %v436, %v964
    %v983 = vmul.f32 %v437, %v965
    %v984 = vmul.f32 %v438, %v964
    %v985 = vmul.f32 %v439, %v965
    %v986 = vmul.f32 %v440, %v964
    %v987 = vmul.f32 %v441, %v965
    %v988 = vmul.f32 %v442, %v964
    %v989 = vmul.f32 %v443, %v965
    %v990 = vmul.f32 %v444, %v964
    %v991 = vmul.f32 %v445, %v965
    %v992 = vmul.f32 %v446, %v964
    %v993 = vmul.f32 %v447, %v965
    %v994 = vmul.f32 %v448, %v964
    %v995 = vmul.f32 %v449, %v965
    %v996 = vmul.f32 %v450, %v964
    %v997 = vmul.f32 %v451, %v965
    %v998 = vmul.f32 %v460, %v964
    %v999 = vmul.f32 %v461, %v965
    %v1000 = vmul.f32 %v462, %v964
    %v1001 = vmul.f32 %v463, %v965
    %v1002 = vmul.f32 %v464, %v964
    %v1003 = vmul.f32 %v465, %v965
    %v1004 = vmul.f32 %v466, %v964
    %v1005 = vmul.f32 %v467, %v965
    %v1006 = vmul.f32 %v468, %v964
    %v1007 = vmul.f32 %v469, %v965
    %v1008 = vmul.f32 %v470, %v964
    %v1009 = vmul.f32 %v471, %v965
    %v1010 = vmul.f32 %v472, %v964
    %v1011 = vmul.f32 %v473, %v965
    %v1012 = vmul.f32 %v474, %v964
    %v1013 = vmul.f32 %v475, %v965
    %v1014 = vmul.f32 %v476, %v964
    %v1015 = vmul.f32 %v477, %v965
    %v1016 = vmul.f32 %v478, %v964
    %v1017 = vmul.f32 %v479, %v965
    %v1018 = vmul.f32 %v480, %v964
    %v1019 = vmul.f32 %v481, %v965
    %v1020 = vmul.f32 %v482, %v964
    %v1021 = vmul.f32 %v483, %v965
    %v1022 = vmul.f32 %v484, %v964
    %v1023 = vmul.f32 %v485, %v965
    %v1024 = vmul.f32 %v486, %v964
    %v1025 = vmul.f32 %v487, %v965
    %v1026 = vmul.f32 %v488, %v964
    %v1027 = vmul.f32 %v489, %v965
    %v1028 = vmul.f32 %v490, %v964
    %v1029 = vmul.f32 %v491, %v965
    %v1030 = vadd.f32 %v896, %v966
    %v1031 = vadd.f32 %v897, %v967
    %v1032 = vadd.f32 %v898, %v968
    %v1033 = vadd.f32 %v899, %v969
    %v1034 = vadd.f32 %v900, %v970
    %v1035 = vadd.f32 %v901, %v971
    %v1036 = vadd.f32 %v902, %v972
    %v1037 = vadd.f32 %v903, %v973
    %v1038 = vadd.f32 %v904, %v974
    %v1039 = vadd.f32 %v905, %v975
    %v1040 = vadd.f32 %v906, %v976
    %v1041 = vadd.f32 %v907, %v977
    %v1042 = vadd.f32 %v908, %v978
    %v1043 = vadd.f32 %v909, %v979
    %v1044 = vadd.f32 %v910, %v980
    %v1045 = vadd.f32 %v911, %v981
    %v1046 = vadd.f32 %v912, %v982
    %v1047 = vadd.f32 %v913, %v983
    %v1048 = vadd.f32 %v914, %v984
    %v1049 = vadd.f32 %v915, %v985
    %v1050 = vadd.f32 %v916, %v986
    %v1051 = vadd.f32 %v917, %v987
    %v1052 = vadd.f32 %v918, %v988
    %v1053 = vadd.f32 %v919, %v989
    %v1054 = vadd.f32 %v920, %v990
    %v1055 = vadd.f32 %v921, %v991
    %v1056 = vadd.f32 %v922, %v992
    %v1057 = vadd.f32 %v923, %v993
    %v1058 = vadd.f32 %v924, %v994
    %v1059 = vadd.f32 %v925, %v995
    %v1060 = vadd.f32 %v926, %v996
    %v1061 = vadd.f32 %v927, %v997
    %v1062 = vadd.f32 %v928, %v998
    %v1063 = vadd.f32 %v929, %v999
    %v1064 = vadd.f32 %v930, %v1000
    %v1065 = vadd.f32 %v931, %v1001
    %v1066 = vadd.f32 %v932, %v1002
    %v1067 = vadd.f32 %v933, %v1003
    %v1068 = vadd.f32 %v934, %v1004
    %v1069 = vadd.f32 %v935, %v1005
    %v1070 = vadd.f32 %v936, %v1006
    %v1071 = vadd.f32 %v937, %v1007
    %v1072 = vadd.f32 %v938, %v1008
    %v1073 = vadd.f32 %v939, %v1009
    %v1074 = vadd.f32 %v940, %v1010
    %v1075 = vadd.f32 %v941, %v1011
    %v1076 = vadd.f32 %v942, %v1012
    %v1077 = vadd.f32 %v943, %v1013
    %v1078 = vadd.f32 %v944, %v1014
    %v1079 = vadd.f32 %v945, %v1015
    %v1080 = vadd.f32 %v946, %v1016
    %v1081 = vadd.f32 %v947, %v1017
    %v1082 = vadd.f32 %v948, %v1018
    %v1083 = vadd.f32 %v949, %v1019
    %v1084 = vadd.f32 %v950, %v1020
    %v1085 = vadd.f32 %v951, %v1021
    %v1086 = vadd.f32 %v952, %v1022
    %v1087 = vadd.f32 %v953, %v1023
    %v1088 = vadd.f32 %v954, %v1024
    %v1089 = vadd.f32 %v955, %v1025
    %v1090 = vadd.f32 %v956, %v1026
    %v1091 = vadd.f32 %v957, %v1027
    %v1092 = vadd.f32 %v958, %v1028
    %v1093 = vadd.f32 %v959, %v1029
    %v1094 = vsel %vm755, 1, 0
    %vm1095 = vcmp.eq.s32.totalorder %v1094, 1
    %vm1160 = vcmask 1040384
    %v1161 = vrot.slane %v1030, 7
    %v1162 = vrot.slane %v1032, 7
    %v1163 = vsel %vm1160, %v1161, %v1162
    %v1164 = vrot.slane %v1031, 7
    %v1165 = vrot.slane %v1033, 7
    %v1166 = vsel %vm1160, %v1164, %v1165
    %v1167 = vrot.slane %v1034, 7
    %v1168 = vrot.slane %v1036, 7
    %v1169 = vsel %vm1160, %v1167, %v1168
    %v1170 = vrot.slane %v1035, 7
    %v1171 = vrot.slane %v1037, 7
    %v1172 = vsel %vm1160, %v1170, %v1171
    %v1173 = vrot.slane %v1038, 7
    %v1174 = vrot.slane %v1040, 7
    %v1175 = vsel %vm1160, %v1173, %v1174
    %v1176 = vrot.slane %v1039, 7
    %v1177 = vrot.slane %v1041, 7
    %v1178 = vsel %vm1160, %v1176, %v1177
    %v1179 = vrot.slane %v1042, 7
    %v1180 = vrot.slane %v1044, 7
    %v1181 = vsel %vm1160, %v1179, %v1180
    %v1182 = vrot.slane %v1043, 7
    %v1183 = vrot.slane %v1045, 7
    %v1184 = vsel %vm1160, %v1182, %v1183
    %v1185 = vrot.slane %v1046, 7
    %v1186 = vrot.slane %v1048, 7
    %v1187 = vsel %vm1160, %v1185, %v1186
    %v1188 = vrot.slane %v1047, 7
    %v1189 = vrot.slane %v1049, 7
    %v1190 = vsel %vm1160, %v1188, %v1189
    %v1191 = vrot.slane %v1050, 7
    %v1192 = vrot.slane %v1052, 7
    %v1193 = vsel %vm1160, %v1191, %v1192
    %v1194 = vrot.slane %v1051, 7
    %v1195 = vrot.slane %v1053, 7
    %v1196 = vsel %vm1160, %v1194, %v1195
    %v1197 = vrot.slane %v1054, 7
    %v1198 = vrot.slane %v1056, 7
    %v1199 = vsel %vm1160, %v1197, %v1198
    %v1200 = vrot.slane %v1055, 7
    %v1201 = vrot.slane %v1057, 7
    %v1202 = vsel %vm1160, %v1200, %v1201
    %v1203 = vrot.slane %v1058, 7
    %v1204 = vrot.slane %v1060, 7
    %v1205 = vsel %vm1160, %v1203, %v1204
    %v1206 = vrot.slane %v1059, 7
    %v1207 = vrot.slane %v1061, 7
    %v1208 = vsel %vm1160, %v1206, %v1207
    %v1209 = vrot.slane %v1062, 7
    %v1210 = vrot.slane %v1064, 7
    %v1211 = vsel %vm1160, %v1209, %v1210
    %v1212 = vrot.slane %v1063, 7
    %v1213 = vrot.slane %v1065, 7
    %v1214 = vsel %vm1160, %v1212, %v1213
    %v1215 = vrot.slane %v1066, 7
    %v1216 = vrot.slane %v1068, 7
    %v1217 = vsel %vm1160, %v1215, %v1216
    %v1218 = vrot.slane %v1067, 7
    %v1219 = vrot.slane %v1069, 7
    %v1220 = vsel %vm1160, %v1218, %v1219
    %v1221 = vrot.slane %v1070, 7
    %v1222 = vrot.slane %v1072, 7
    %v1223 = vsel %vm1160, %v1221, %v1222
    %v1224 = vrot.slane %v1071, 7
    %v1225 = vrot.slane %v1073, 7
    %v1226 = vsel %vm1160, %v1224, %v1225
    %v1227 = vrot.slane %v1074, 7
    %v1228 = vrot.slane %v1076, 7
    %v1229 = vsel %vm1160, %v1227, %v1228
    %v1230 = vrot.slane %v1075, 7
    %v1231 = vrot.slane %v1077, 7
    %v1232 = vsel %vm1160, %v1230, %v1231
    %v1233 = vrot.slane %v1078, 7
    %v1234 = vrot.slane %v1080, 7
    %v1235 = vsel %vm1160, %v1233, %v1234
    %v1236 = vrot.slane %v1079, 7
    %v1237 = vrot.slane %v1081, 7
    %v1238 = vsel %vm1160, %v1236, %v1237
    %v1239 = vrot.slane %v1082, 7
    %v1240 = vrot.slane %v1084, 7
    %v1241 = vsel %vm1160, %v1239, %v1240
    %v1242 = vrot.slane %v1083, 7
    %v1243 = vrot.slane %v1085, 7
    %v1244 = vsel %vm1160, %v1242, %v1243
    %v1245 = vrot.slane %v1086, 7
    %v1246 = vrot.slane %v1088, 7
    %v1247 = vsel %vm1160, %v1245, %v1246
    %v1248 = vrot.slane %v1087, 7
    %v1249 = vrot.slane %v1089, 7
    %v1250 = vsel %vm1160, %v1248, %v1249
    %v1251 = vrot.slane %v1090, 7
    %v1252 = vrot.slane %v1092, 7
    %v1253 = vsel %vm1160, %v1251, %v1252
    %v1254 = vrot.slane %v1091, 7
    %v1255 = vrot.slane %v1093, 7
    %v1256 = vsel %vm1160, %v1254, %v1255
    %v1289 = vsel %vm1095, 0.0, %v1163
    %v1290 = vsel %vm1095, 0.0, %v1166
    %v1291 = vsel %vm1095, 0.0, %v1169
    %v1292 = vsel %vm1095, 0.0, %v1172
    %v1293 = vsel %vm1095, 0.0, %v1175
    %v1294 = vsel %vm1095, 0.0, %v1178
    %v1295 = vsel %vm1095, 0.0, %v1181
    %v1296 = vsel %vm1095, 0.0, %v1184
    %v1297 = vsel %vm1095, 0.0, %v1187
    %v1298 = vsel %vm1095, 0.0, %v1190
    %v1299 = vsel %vm1095, 0.0, %v1193
    %v1300 = vsel %vm1095, 0.0, %v1196
    %v1301 = vsel %vm1095, 0.0, %v1199
    %v1302 = vsel %vm1095, 0.0, %v1202
    %v1303 = vsel %vm1095, 0.0, %v1205
    %v1304 = vsel %vm1095, 0.0, %v1208
    %v1305 = vsel %vm1095, 0.0, %v1211
    %v1306 = vsel %vm1095, 0.0, %v1214
    %v1307 = vsel %vm1095, 0.0, %v1217
    %v1308 = vsel %vm1095, 0.0, %v1220
    %v1309 = vsel %vm1095, 0.0, %v1223
    %v1310 = vsel %vm1095, 0.0, %v1226
    %v1311 = vsel %vm1095, 0.0, %v1229
    %v1312 = vsel %vm1095, 0.0, %v1232
    %v1313 = vsel %vm1095, 0.0, %v1235
    %v1314 = vsel %vm1095, 0.0, %v1238
    %v1315 = vsel %vm1095, 0.0, %v1241
    %v1316 = vsel %vm1095, 0.0, %v1244
    %v1317 = vsel %vm1095, 0.0, %v1247
    %v1318 = vsel %vm1095, 0.0, %v1250
    %v1319 = vsel %vm1095, 0.0, %v1253
    %v1320 = vsel %vm1095, 0.0, %v1256
    %v1321 = vadd.f32 %v723, %v1289
    %v1322 = vadd.f32 %v724, %v1290
    %v1323 = vadd.f32 %v725, %v1291
    %v1324 = vadd.f32 %v726, %v1292
    %v1325 = vadd.f32 %v727, %v1293
    %v1326 = vadd.f32 %v728, %v1294
    %v1327 = vadd.f32 %v729, %v1295
    %v1328 = vadd.f32 %v730, %v1296
    %v1329 = vadd.f32 %v731, %v1297
    %v1330 = vadd.f32 %v732, %v1298
    %v1331 = vadd.f32 %v733, %v1299
    %v1332 = vadd.f32 %v734, %v1300
    %v1333 = vadd.f32 %v735, %v1301
    %v1334 = vadd.f32 %v736, %v1302
    %v1335 = vadd.f32 %v737, %v1303
    %v1336 = vadd.f32 %v738, %v1304
    %v1337 = vadd.f32 %v739, %v1305
    %v1338 = vadd.f32 %v740, %v1306
    %v1339 = vadd.f32 %v741, %v1307
    %v1340 = vadd.f32 %v742, %v1308
    %v1341 = vadd.f32 %v743, %v1309
    %v1342 = vadd.f32 %v744, %v1310
    %v1343 = vadd.f32 %v745, %v1311
    %v1344 = vadd.f32 %v746, %v1312
    %v1345 = vadd.f32 %v747, %v1313
    %v1346 = vadd.f32 %v748, %v1314
    %v1347 = vadd.f32 %v749, %v1315
    %v1348 = vadd.f32 %v750, %v1316
    %v1349 = vadd.f32 %v751, %v1317
    %v1350 = vadd.f32 %v752, %v1318
    %v1351 = vadd.f32 %v753, %v1319
    %v1352 = vadd.f32 %v754, %v1320
    %vm1353 = vcmp.eq.s32.totalorder %v573, 7
    %v1354 = vperm.slane %v369, 2
    %v1355 = vperm.slane %v369, 6
    %v1358 = vperm.slane %v1354, 2
    %v1359 = vperm.slane %v1355, 2
    %v1360 = vmul.f32 %v492, %v1358
    %v1361 = vmul.f32 %v493, %v1359
    %v1362 = vmul.f32 %v494, %v1358
    %v1363 = vmul.f32 %v495, %v1359
    %v1364 = vmul.f32 %v496, %v1358
    %v1365 = vmul.f32 %v497, %v1359
    %v1366 = vmul.f32 %v498, %v1358
    %v1367 = vmul.f32 %v499, %v1359
    %v1368 = vmul.f32 %v500, %v1358
    %v1369 = vmul.f32 %v501, %v1359
    %v1370 = vmul.f32 %v502, %v1358
    %v1371 = vmul.f32 %v503, %v1359
    %v1372 = vmul.f32 %v504, %v1358
    %v1373 = vmul.f32 %v505, %v1359
    %v1374 = vmul.f32 %v506, %v1358
    %v1375 = vmul.f32 %v507, %v1359
    %v1376 = vmul.f32 %v508, %v1358
    %v1377 = vmul.f32 %v509, %v1359
    %v1378 = vmul.f32 %v510, %v1358
    %v1379 = vmul.f32 %v511, %v1359
    %v1380 = vmul.f32 %v512, %v1358
    %v1381 = vmul.f32 %v513, %v1359
    %v1382 = vmul.f32 %v514, %v1358
    %v1383 = vmul.f32 %v515, %v1359
    %v1384 = vmul.f32 %v516, %v1358
    %v1385 = vmul.f32 %v517, %v1359
    %v1386 = vmul.f32 %v518, %v1358
    %v1387 = vmul.f32 %v519, %v1359
    %v1388 = vmul.f32 %v520, %v1358
    %v1389 = vmul.f32 %v521, %v1359
    %v1390 = vmul.f32 %v522, %v1358
    %v1391 = vmul.f32 %v523, %v1359
    %v1392 = vmul.f32 %v532, %v1358
    %v1393 = vmul.f32 %v533, %v1359
    %v1394 = vmul.f32 %v534, %v1358
    %v1395 = vmul.f32 %v535, %v1359
    %v1396 = vmul.f32 %v536, %v1358
    %v1397 = vmul.f32 %v537, %v1359
    %v1398 = vmul.f32 %v538, %v1358
    %v1399 = vmul.f32 %v539, %v1359
    %v1400 = vmul.f32 %v540, %v1358
    %v1401 = vmul.f32 %v541, %v1359
    %v1402 = vmul.f32 %v542, %v1358
    %v1403 = vmul.f32 %v543, %v1359
    %v1404 = vmul.f32 %v544, %v1358
    %v1405 = vmul.f32 %v545, %v1359
    %v1406 = vmul.f32 %v546, %v1358
    %v1407 = vmul.f32 %v547, %v1359
    %v1408 = vmul.f32 %v548, %v1358
    %v1409 = vmul.f32 %v549, %v1359
    %v1410 = vmul.f32 %v550, %v1358
    %v1411 = vmul.f32 %v551, %v1359
    %v1412 = vmul.f32 %v552, %v1358
    %v1413 = vmul.f32 %v553, %v1359
    %v1414 = vmul.f32 %v554, %v1358
    %v1415 = vmul.f32 %v555, %v1359
    %v1416 = vmul.f32 %v556, %v1358
    %v1417 = vmul.f32 %v557, %v1359
    %v1418 = vmul.f32 %v558, %v1358
    %v1419 = vmul.f32 %v559, %v1359
    %v1420 = vmul.f32 %v560, %v1358
    %v1421 = vmul.f32 %v561, %v1359
    %v1422 = vmul.f32 %v562, %v1358
    %v1423 = vmul.f32 %v563, %v1359
    %v1424 = vperm.slane %v370, 2
    %v1425 = vperm.slane %v370, 6
    %v1428 = vperm.slane %v1424, 2
    %v1429 = vperm.slane %v1425, 2
    %v1430 = vmul.f32 %v496, %v1428
    %v1431 = vmul.f32 %v497, %v1429
    %v1432 = vmul.f32 %v498, %v1428
    %v1433 = vmul.f32 %v499, %v1429
    %v1434 = vmul.f32 %v500, %v1428
    %v1435 = vmul.f32 %v501, %v1429
    %v1436 = vmul.f32 %v502, %v1428
    %v1437 = vmul.f32 %v503, %v1429
    %v1438 = vmul.f32 %v504, %v1428
    %v1439 = vmul.f32 %v505, %v1429
    %v1440 = vmul.f32 %v506, %v1428
    %v1441 = vmul.f32 %v507, %v1429
    %v1442 = vmul.f32 %v508, %v1428
    %v1443 = vmul.f32 %v509, %v1429
    %v1444 = vmul.f32 %v510, %v1428
    %v1445 = vmul.f32 %v511, %v1429
    %v1446 = vmul.f32 %v512, %v1428
    %v1447 = vmul.f32 %v513, %v1429
    %v1448 = vmul.f32 %v514, %v1428
    %v1449 = vmul.f32 %v515, %v1429
    %v1450 = vmul.f32 %v516, %v1428
    %v1451 = vmul.f32 %v517, %v1429
    %v1452 = vmul.f32 %v518, %v1428
    %v1453 = vmul.f32 %v519, %v1429
    %v1454 = vmul.f32 %v520, %v1428
    %v1455 = vmul.f32 %v521, %v1429
    %v1456 = vmul.f32 %v522, %v1428
    %v1457 = vmul.f32 %v523, %v1429
    %v1458 = vmul.f32 %v524, %v1428
    %v1459 = vmul.f32 %v525, %v1429
    %v1460 = vmul.f32 %v526, %v1428
    %v1461 = vmul.f32 %v527, %v1429
    %v1462 = vmul.f32 %v536, %v1428
    %v1463 = vmul.f32 %v537, %v1429
    %v1464 = vmul.f32 %v538, %v1428
    %v1465 = vmul.f32 %v539, %v1429
    %v1466 = vmul.f32 %v540, %v1428
    %v1467 = vmul.f32 %v541, %v1429
    %v1468 = vmul.f32 %v542, %v1428
    %v1469 = vmul.f32 %v543, %v1429
    %v1470 = vmul.f32 %v544, %v1428
    %v1471 = vmul.f32 %v545, %v1429
    %v1472 = vmul.f32 %v546, %v1428
    %v1473 = vmul.f32 %v547, %v1429
    %v1474 = vmul.f32 %v548, %v1428
    %v1475 = vmul.f32 %v549, %v1429
    %v1476 = vmul.f32 %v550, %v1428
    %v1477 = vmul.f32 %v551, %v1429
    %v1478 = vmul.f32 %v552, %v1428
    %v1479 = vmul.f32 %v553, %v1429
    %v1480 = vmul.f32 %v554, %v1428
    %v1481 = vmul.f32 %v555, %v1429
    %v1482 = vmul.f32 %v556, %v1428
    %v1483 = vmul.f32 %v557, %v1429
    %v1484 = vmul.f32 %v558, %v1428
    %v1485 = vmul.f32 %v559, %v1429
    %v1486 = vmul.f32 %v560, %v1428
    %v1487 = vmul.f32 %v561, %v1429
    %v1488 = vmul.f32 %v562, %v1428
    %v1489 = vmul.f32 %v563, %v1429
    %v1490 = vmul.f32 %v564, %v1428
    %v1491 = vmul.f32 %v565, %v1429
    %v1492 = vmul.f32 %v566, %v1428
    %v1493 = vmul.f32 %v567, %v1429
    %v1494 = vadd.f32 %v1360, %v1430
    %v1495 = vadd.f32 %v1361, %v1431
    %v1496 = vadd.f32 %v1362, %v1432
    %v1497 = vadd.f32 %v1363, %v1433
    %v1498 = vadd.f32 %v1364, %v1434
    %v1499 = vadd.f32 %v1365, %v1435
    %v1500 = vadd.f32 %v1366, %v1436
    %v1501 = vadd.f32 %v1367, %v1437
    %v1502 = vadd.f32 %v1368, %v1438
    %v1503 = vadd.f32 %v1369, %v1439
    %v1504 = vadd.f32 %v1370, %v1440
    %v1505 = vadd.f32 %v1371, %v1441
    %v1506 = vadd.f32 %v1372, %v1442
    %v1507 = vadd.f32 %v1373, %v1443
    %v1508 = vadd.f32 %v1374, %v1444
    %v1509 = vadd.f32 %v1375, %v1445
    %v1510 = vadd.f32 %v1376, %v1446
    %v1511 = vadd.f32 %v1377, %v1447
    %v1512 = vadd.f32 %v1378, %v1448
    %v1513 = vadd.f32 %v1379, %v1449
    %v1514 = vadd.f32 %v1380, %v1450
    %v1515 = vadd.f32 %v1381, %v1451
    %v1516 = vadd.f32 %v1382, %v1452
    %v1517 = vadd.f32 %v1383, %v1453
    %v1518 = vadd.f32 %v1384, %v1454
    %v1519 = vadd.f32 %v1385, %v1455
    %v1520 = vadd.f32 %v1386, %v1456
    %v1521 = vadd.f32 %v1387, %v1457
    %v1522 = vadd.f32 %v1388, %v1458
    %v1523 = vadd.f32 %v1389, %v1459
    %v1524 = vadd.f32 %v1390, %v1460
    %v1525 = vadd.f32 %v1391, %v1461
    %v1526 = vadd.f32 %v1392, %v1462
    %v1527 = vadd.f32 %v1393, %v1463
    %v1528 = vadd.f32 %v1394, %v1464
    %v1529 = vadd.f32 %v1395, %v1465
    %v1530 = vadd.f32 %v1396, %v1466
    %v1531 = vadd.f32 %v1397, %v1467
    %v1532 = vadd.f32 %v1398, %v1468
    %v1533 = vadd.f32 %v1399, %v1469
    %v1534 = vadd.f32 %v1400, %v1470
    %v1535 = vadd.f32 %v1401, %v1471
    %v1536 = vadd.f32 %v1402, %v1472
    %v1537 = vadd.f32 %v1403, %v1473
    %v1538 = vadd.f32 %v1404, %v1474
    %v1539 = vadd.f32 %v1405, %v1475
    %v1540 = vadd.f32 %v1406, %v1476
    %v1541 = vadd.f32 %v1407, %v1477
    %v1542 = vadd.f32 %v1408, %v1478
    %v1543 = vadd.f32 %v1409, %v1479
    %v1544 = vadd.f32 %v1410, %v1480
    %v1545 = vadd.f32 %v1411, %v1481
    %v1546 = vadd.f32 %v1412, %v1482
    %v1547 = vadd.f32 %v1413, %v1483
    %v1548 = vadd.f32 %v1414, %v1484
    %v1549 = vadd.f32 %v1415, %v1485
    %v1550 = vadd.f32 %v1416, %v1486
    %v1551 = vadd.f32 %v1417, %v1487
    %v1552 = vadd.f32 %v1418, %v1488
    %v1553 = vadd.f32 %v1419, %v1489
    %v1554 = vadd.f32 %v1420, %v1490
    %v1555 = vadd.f32 %v1421, %v1491
    %v1556 = vadd.f32 %v1422, %v1492
    %v1557 = vadd.f32 %v1423, %v1493
    %v1558 = vperm.slane %v371, 2
    %v1559 = vperm.slane %v371, 6
    %v1562 = vperm.slane %v1558, 2
    %v1563 = vperm.slane %v1559, 2
    %v1564 = vmul.f32 %v500, %v1562
    %v1565 = vmul.f32 %v501, %v1563
    %v1566 = vmul.f32 %v502, %v1562
    %v1567 = vmul.f32 %v503, %v1563
    %v1568 = vmul.f32 %v504, %v1562
    %v1569 = vmul.f32 %v505, %v1563
    %v1570 = vmul.f32 %v506, %v1562
    %v1571 = vmul.f32 %v507, %v1563
    %v1572 = vmul.f32 %v508, %v1562
    %v1573 = vmul.f32 %v509, %v1563
    %v1574 = vmul.f32 %v510, %v1562
    %v1575 = vmul.f32 %v511, %v1563
    %v1576 = vmul.f32 %v512, %v1562
    %v1577 = vmul.f32 %v513, %v1563
    %v1578 = vmul.f32 %v514, %v1562
    %v1579 = vmul.f32 %v515, %v1563
    %v1580 = vmul.f32 %v516, %v1562
    %v1581 = vmul.f32 %v517, %v1563
    %v1582 = vmul.f32 %v518, %v1562
    %v1583 = vmul.f32 %v519, %v1563
    %v1584 = vmul.f32 %v520, %v1562
    %v1585 = vmul.f32 %v521, %v1563
    %v1586 = vmul.f32 %v522, %v1562
    %v1587 = vmul.f32 %v523, %v1563
    %v1588 = vmul.f32 %v524, %v1562
    %v1589 = vmul.f32 %v525, %v1563
    %v1590 = vmul.f32 %v526, %v1562
    %v1591 = vmul.f32 %v527, %v1563
    %v1592 = vmul.f32 %v528, %v1562
    %v1593 = vmul.f32 %v529, %v1563
    %v1594 = vmul.f32 %v530, %v1562
    %v1595 = vmul.f32 %v531, %v1563
    %v1596 = vmul.f32 %v540, %v1562
    %v1597 = vmul.f32 %v541, %v1563
    %v1598 = vmul.f32 %v542, %v1562
    %v1599 = vmul.f32 %v543, %v1563
    %v1600 = vmul.f32 %v544, %v1562
    %v1601 = vmul.f32 %v545, %v1563
    %v1602 = vmul.f32 %v546, %v1562
    %v1603 = vmul.f32 %v547, %v1563
    %v1604 = vmul.f32 %v548, %v1562
    %v1605 = vmul.f32 %v549, %v1563
    %v1606 = vmul.f32 %v550, %v1562
    %v1607 = vmul.f32 %v551, %v1563
    %v1608 = vmul.f32 %v552, %v1562
    %v1609 = vmul.f32 %v553, %v1563
    %v1610 = vmul.f32 %v554, %v1562
    %v1611 = vmul.f32 %v555, %v1563
    %v1612 = vmul.f32 %v556, %v1562
    %v1613 = vmul.f32 %v557, %v1563
    %v1614 = vmul.f32 %v558, %v1562
    %v1615 = vmul.f32 %v559, %v1563
    %v1616 = vmul.f32 %v560, %v1562
    %v1617 = vmul.f32 %v561, %v1563
    %v1618 = vmul.f32 %v562, %v1562
    %v1619 = vmul.f32 %v563, %v1563
    %v1620 = vmul.f32 %v564, %v1562
    %v1621 = vmul.f32 %v565, %v1563
    %v1622 = vmul.f32 %v566, %v1562
    %v1623 = vmul.f32 %v567, %v1563
    %v1624 = vmul.f32 %v568, %v1562
    %v1625 = vmul.f32 %v569, %v1563
    %v1626 = vmul.f32 %v570, %v1562
    %v1627 = vmul.f32 %v571, %v1563
    %v1628 = vadd.f32 %v1494, %v1564
    %v1629 = vadd.f32 %v1495, %v1565
    %v1630 = vadd.f32 %v1496, %v1566
    %v1631 = vadd.f32 %v1497, %v1567
    %v1632 = vadd.f32 %v1498, %v1568
    %v1633 = vadd.f32 %v1499, %v1569
    %v1634 = vadd.f32 %v1500, %v1570
    %v1635 = vadd.f32 %v1501, %v1571
    %v1636 = vadd.f32 %v1502, %v1572
    %v1637 = vadd.f32 %v1503, %v1573
    %v1638 = vadd.f32 %v1504, %v1574
    %v1639 = vadd.f32 %v1505, %v1575
    %v1640 = vadd.f32 %v1506, %v1576
    %v1641 = vadd.f32 %v1507, %v1577
    %v1642 = vadd.f32 %v1508, %v1578
    %v1643 = vadd.f32 %v1509, %v1579
    %v1644 = vadd.f32 %v1510, %v1580
    %v1645 = vadd.f32 %v1511, %v1581
    %v1646 = vadd.f32 %v1512, %v1582
    %v1647 = vadd.f32 %v1513, %v1583
    %v1648 = vadd.f32 %v1514, %v1584
    %v1649 = vadd.f32 %v1515, %v1585
    %v1650 = vadd.f32 %v1516, %v1586
    %v1651 = vadd.f32 %v1517, %v1587
    %v1652 = vadd.f32 %v1518, %v1588
    %v1653 = vadd.f32 %v1519, %v1589
    %v1654 = vadd.f32 %v1520, %v1590
    %v1655 = vadd.f32 %v1521, %v1591
    %v1656 = vadd.f32 %v1522, %v1592
    %v1657 = vadd.f32 %v1523, %v1593
    %v1658 = vadd.f32 %v1524, %v1594
    %v1659 = vadd.f32 %v1525, %v1595
    %v1660 = vadd.f32 %v1526, %v1596
    %v1661 = vadd.f32 %v1527, %v1597
    %v1662 = vadd.f32 %v1528, %v1598
    %v1663 = vadd.f32 %v1529, %v1599
    %v1664 = vadd.f32 %v1530, %v1600
    %v1665 = vadd.f32 %v1531, %v1601
    %v1666 = vadd.f32 %v1532, %v1602
    %v1667 = vadd.f32 %v1533, %v1603
    %v1668 = vadd.f32 %v1534, %v1604
    %v1669 = vadd.f32 %v1535, %v1605
    %v1670 = vadd.f32 %v1536, %v1606
    %v1671 = vadd.f32 %v1537, %v1607
    %v1672 = vadd.f32 %v1538, %v1608
    %v1673 = vadd.f32 %v1539, %v1609
    %v1674 = vadd.f32 %v1540, %v1610
    %v1675 = vadd.f32 %v1541, %v1611
    %v1676 = vadd.f32 %v1542, %v1612
    %v1677 = vadd.f32 %v1543, %v1613
    %v1678 = vadd.f32 %v1544, %v1614
    %v1679 = vadd.f32 %v1545, %v1615
    %v1680 = vadd.f32 %v1546, %v1616
    %v1681 = vadd.f32 %v1547, %v1617
    %v1682 = vadd.f32 %v1548, %v1618
    %v1683 = vadd.f32 %v1549, %v1619
    %v1684 = vadd.f32 %v1550, %v1620
    %v1685 = vadd.f32 %v1551, %v1621
    %v1686 = vadd.f32 %v1552, %v1622
    %v1687 = vadd.f32 %v1553, %v1623
    %v1688 = vadd.f32 %v1554, %v1624
    %v1689 = vadd.f32 %v1555, %v1625
    %v1690 = vadd.f32 %v1556, %v1626
    %v1691 = vadd.f32 %v1557, %v1627
    %v1692 = vsel %vm1353, 1, 0
    %vm1693 = vcmp.eq.s32.totalorder %v1692, 1
    %vm1758 = vcmask 1046528
    %v1759 = vrot.slane %v1628, 1
    %v1760 = vrot.slane %v1630, 1
    %v1761 = vsel %vm1758, %v1759, %v1760
    %v1762 = vrot.slane %v1629, 1
    %v1763 = vrot.slane %v1631, 1
    %v1764 = vsel %vm1758, %v1762, %v1763
    %v1765 = vrot.slane %v1632, 1
    %v1766 = vrot.slane %v1634, 1
    %v1767 = vsel %vm1758, %v1765, %v1766
    %v1768 = vrot.slane %v1633, 1
    %v1769 = vrot.slane %v1635, 1
    %v1770 = vsel %vm1758, %v1768, %v1769
    %v1771 = vrot.slane %v1636, 1
    %v1772 = vrot.slane %v1638, 1
    %v1773 = vsel %vm1758, %v1771, %v1772
    %v1774 = vrot.slane %v1637, 1
    %v1775 = vrot.slane %v1639, 1
    %v1776 = vsel %vm1758, %v1774, %v1775
    %v1777 = vrot.slane %v1640, 1
    %v1778 = vrot.slane %v1642, 1
    %v1779 = vsel %vm1758, %v1777, %v1778
    %v1780 = vrot.slane %v1641, 1
    %v1781 = vrot.slane %v1643, 1
    %v1782 = vsel %vm1758, %v1780, %v1781
    %v1783 = vrot.slane %v1644, 1
    %v1784 = vrot.slane %v1646, 1
    %v1785 = vsel %vm1758, %v1783, %v1784
    %v1786 = vrot.slane %v1645, 1
    %v1787 = vrot.slane %v1647, 1
    %v1788 = vsel %vm1758, %v1786, %v1787
    %v1789 = vrot.slane %v1648, 1
    %v1790 = vrot.slane %v1650, 1
    %v1791 = vsel %vm1758, %v1789, %v1790
    %v1792 = vrot.slane %v1649, 1
    %v1793 = vrot.slane %v1651, 1
    %v1794 = vsel %vm1758, %v1792, %v1793
    %v1795 = vrot.slane %v1652, 1
    %v1796 = vrot.slane %v1654, 1
    %v1797 = vsel %vm1758, %v1795, %v1796
    %v1798 = vrot.slane %v1653, 1
    %v1799 = vrot.slane %v1655, 1
    %v1800 = vsel %vm1758, %v1798, %v1799
    %v1801 = vrot.slane %v1656, 1
    %v1802 = vrot.slane %v1658, 1
    %v1803 = vsel %vm1758, %v1801, %v1802
    %v1804 = vrot.slane %v1657, 1
    %v1805 = vrot.slane %v1659, 1
    %v1806 = vsel %vm1758, %v1804, %v1805
    %v1807 = vrot.slane %v1660, 1
    %v1808 = vrot.slane %v1662, 1
    %v1809 = vsel %vm1758, %v1807, %v1808
    %v1810 = vrot.slane %v1661, 1
    %v1811 = vrot.slane %v1663, 1
    %v1812 = vsel %vm1758, %v1810, %v1811
    %v1813 = vrot.slane %v1664, 1
    %v1814 = vrot.slane %v1666, 1
    %v1815 = vsel %vm1758, %v1813, %v1814
    %v1816 = vrot.slane %v1665, 1
    %v1817 = vrot.slane %v1667, 1
    %v1818 = vsel %vm1758, %v1816, %v1817
    %v1819 = vrot.slane %v1668, 1
    %v1820 = vrot.slane %v1670, 1
    %v1821 = vsel %vm1758, %v1819, %v1820
    %v1822 = vrot.slane %v1669, 1
    %v1823 = vrot.slane %v1671, 1
    %v1824 = vsel %vm1758, %v1822, %v1823
    %v1825 = vrot.slane %v1672, 1
    %v1826 = vrot.slane %v1674, 1
    %v1827 = vsel %vm1758, %v1825, %v1826
    %v1828 = vrot.slane %v1673, 1
    %v1829 = vrot.slane %v1675, 1
    %v1830 = vsel %vm1758, %v1828, %v1829
    %v1831 = vrot.slane %v1676, 1
    %v1832 = vrot.slane %v1678, 1
    %v1833 = vsel %vm1758, %v1831, %v1832
    %v1834 = vrot.slane %v1677, 1
    %v1835 = vrot.slane %v1679, 1
    %v1836 = vsel %vm1758, %v1834, %v1835
    %v1837 = vrot.slane %v1680, 1
    %v1838 = vrot.slane %v1682, 1
    %v1839 = vsel %vm1758, %v1837, %v1838
    %v1840 = vrot.slane %v1681, 1
    %v1841 = vrot.slane %v1683, 1
    %v1842 = vsel %vm1758, %v1840, %v1841
    %v1843 = vrot.slane %v1684, 1
    %v1844 = vrot.slane %v1686, 1
    %v1845 = vsel %vm1758, %v1843, %v1844
    %v1846 = vrot.slane %v1685, 1
    %v1847 = vrot.slane %v1687, 1
    %v1848 = vsel %vm1758, %v1846, %v1847
    %v1849 = vrot.slane %v1688, 1
    %v1850 = vrot.slane %v1690, 1
    %v1851 = vsel %vm1758, %v1849, %v1850
    %v1852 = vrot.slane %v1689, 1
    %v1853 = vrot.slane %v1691, 1
    %v1854 = vsel %vm1758, %v1852, %v1853
    %v1887 = vsel %vm1693, 0.0, %v1761
    %v1888 = vsel %vm1693, 0.0, %v1764
    %v1889 = vsel %vm1693, 0.0, %v1767
    %v1890 = vsel %vm1693, 0.0, %v1770
    %v1891 = vsel %vm1693, 0.0, %v1773
    %v1892 = vsel %vm1693, 0.0, %v1776
    %v1893 = vsel %vm1693, 0.0, %v1779
    %v1894 = vsel %vm1693, 0.0, %v1782
    %v1895 = vsel %vm1693, 0.0, %v1785
    %v1896 = vsel %vm1693, 0.0, %v1788
    %v1897 = vsel %vm1693, 0.0, %v1791
    %v1898 = vsel %vm1693, 0.0, %v1794
    %v1899 = vsel %vm1693, 0.0, %v1797
    %v1900 = vsel %vm1693, 0.0, %v1800
    %v1901 = vsel %vm1693, 0.0, %v1803
    %v1902 = vsel %vm1693, 0.0, %v1806
    %v1903 = vsel %vm1693, 0.0, %v1809
    %v1904 = vsel %vm1693, 0.0, %v1812
    %v1905 = vsel %vm1693, 0.0, %v1815
    %v1906 = vsel %vm1693, 0.0, %v1818
    %v1907 = vsel %vm1693, 0.0, %v1821
    %v1908 = vsel %vm1693, 0.0, %v1824
    %v1909 = vsel %vm1693, 0.0, %v1827
    %v1910 = vsel %vm1693, 0.0, %v1830
    %v1911 = vsel %vm1693, 0.0, %v1833
    %v1912 = vsel %vm1693, 0.0, %v1836
    %v1913 = vsel %vm1693, 0.0, %v1839
    %v1914 = vsel %vm1693, 0.0, %v1842
    %v1915 = vsel %vm1693, 0.0, %v1845
    %v1916 = vsel %vm1693, 0.0, %v1848
    %v1917 = vsel %vm1693, 0.0, %v1851
    %v1918 = vsel %vm1693, 0.0, %v1854
    %v1919 = vadd.f32 %v1321, %v1887
    %v1920 = vadd.f32 %v1322, %v1888
    %v1921 = vadd.f32 %v1323, %v1889
    %v1922 = vadd.f32 %v1324, %v1890
    %v1923 = vadd.f32 %v1325, %v1891
    %v1924 = vadd.f32 %v1326, %v1892
    %v1925 = vadd.f32 %v1327, %v1893
    %v1926 = vadd.f32 %v1328, %v1894
    %v1927 = vadd.f32 %v1329, %v1895
    %v1928 = vadd.f32 %v1330, %v1896
    %v1929 = vadd.f32 %v1331, %v1897
    %v1930 = vadd.f32 %v1332, %v1898
    %v1931 = vadd.f32 %v1333, %v1899
    %v1932 = vadd.f32 %v1334, %v1900
    %v1933 = vadd.f32 %v1335, %v1901
    %v1934 = vadd.f32 %v1336, %v1902
    %v1935 = vadd.f32 %v1337, %v1903
    %v1936 = vadd.f32 %v1338, %v1904
    %v1937 = vadd.f32 %v1339, %v1905
    %v1938 = vadd.f32 %v1340, %v1906
    %v1939 = vadd.f32 %v1341, %v1907
    %v1940 = vadd.f32 %v1342, %v1908
    %v1941 = vadd.f32 %v1343, %v1909
    %v1942 = vadd.f32 %v1344, %v1910
    %v1943 = vadd.f32 %v1345, %v1911
    %v1944 = vadd.f32 %v1346, %v1912
    %v1945 = vadd.f32 %v1347, %v1913
    %v1946 = vadd.f32 %v1348, %v1914
    %v1947 = vadd.f32 %v1349, %v1915
    %v1948 = vadd.f32 %v1350, %v1916
    %v1949 = vadd.f32 %v1351, %v1917
    %v1950 = vadd.f32 %v1352, %v1918
    %v1951 = vld [vmem:[%s4] sm:$0x3]
    %v1953 = vperm.slane %v1951, 0
    %v1954 = vperm.slane %v1951, 1
    %v1957 = vadd.f32 %v1919, %v1953
    %v1958 = vadd.f32 %v1920, %v1954
    %v1959 = vadd.f32 %v1921, %v1953
    %v1960 = vadd.f32 %v1922, %v1954
    %v1961 = vadd.f32 %v1923, %v1953
    %v1962 = vadd.f32 %v1924, %v1954
    %v1963 = vadd.f32 %v1925, %v1953
    %v1964 = vadd.f32 %v1926, %v1954
    %v1965 = vadd.f32 %v1927, %v1953
    %v1966 = vadd.f32 %v1928, %v1954
    %v1967 = vadd.f32 %v1929, %v1953
    %v1968 = vadd.f32 %v1930, %v1954
    %v1969 = vadd.f32 %v1931, %v1953
    %v1970 = vadd.f32 %v1932, %v1954
    %v1971 = vadd.f32 %v1933, %v1953
    %v1972 = vadd.f32 %v1934, %v1954
    %v1973 = vadd.f32 %v1935, %v1953
    %v1974 = vadd.f32 %v1936, %v1954
    %v1975 = vadd.f32 %v1937, %v1953
    %v1976 = vadd.f32 %v1938, %v1954
    %v1977 = vadd.f32 %v1939, %v1953
    %v1978 = vadd.f32 %v1940, %v1954
    %v1979 = vadd.f32 %v1941, %v1953
    %v1980 = vadd.f32 %v1942, %v1954
    %v1981 = vadd.f32 %v1943, %v1953
    %v1982 = vadd.f32 %v1944, %v1954
    %v1983 = vadd.f32 %v1945, %v1953
    %v1984 = vadd.f32 %v1946, %v1954
    %v1985 = vadd.f32 %v1947, %v1953
    %v1986 = vadd.f32 %v1948, %v1954
    %v1987 = vadd.f32 %v1949, %v1953
    %v1988 = vadd.f32 %v1950, %v1954
    %v1989 = vmul.f32 %v1957, 0.5
    %v1990 = vmul.f32 %v1958, 0.5
    %v1991 = vmul.f32 %v1959, 0.5
    %v1992 = vmul.f32 %v1960, 0.5
    %v1993 = vmul.f32 %v1961, 0.5
    %v1994 = vmul.f32 %v1962, 0.5
    %v1995 = vmul.f32 %v1963, 0.5
    %v1996 = vmul.f32 %v1964, 0.5
    %v1997 = vmul.f32 %v1965, 0.5
    %v1998 = vmul.f32 %v1966, 0.5
    %v1999 = vmul.f32 %v1967, 0.5
    %v2000 = vmul.f32 %v1968, 0.5
    %v2001 = vmul.f32 %v1969, 0.5
    %v2002 = vmul.f32 %v1970, 0.5
    %v2003 = vmul.f32 %v1971, 0.5
    %v2004 = vmul.f32 %v1972, 0.5
    %v2005 = vmul.f32 %v1973, 0.5
    %v2006 = vmul.f32 %v1974, 0.5
    %v2007 = vmul.f32 %v1975, 0.5
    %v2008 = vmul.f32 %v1976, 0.5
    %v2009 = vmul.f32 %v1977, 0.5
    %v2010 = vmul.f32 %v1978, 0.5
    %v2011 = vmul.f32 %v1979, 0.5
    %v2012 = vmul.f32 %v1980, 0.5
    %v2013 = vmul.f32 %v1981, 0.5
    %v2014 = vmul.f32 %v1982, 0.5
    %v2015 = vmul.f32 %v1983, 0.5
    %v2016 = vmul.f32 %v1984, 0.5
    %v2017 = vmul.f32 %v1985, 0.5
    %v2018 = vmul.f32 %v1986, 0.5
    %v2019 = vmul.f32 %v1987, 0.5
    %v2020 = vmul.f32 %v1988, 0.5
    %v2021 = vmul.f32 %v1957, 0.70710677
    %v2022 = vmul.f32 %v1958, 0.70710677
    %v2023 = vmul.f32 %v1959, 0.70710677
    %v2024 = vmul.f32 %v1960, 0.70710677
    %v2025 = vmul.f32 %v1961, 0.70710677
    %v2026 = vmul.f32 %v1962, 0.70710677
    %v2027 = vmul.f32 %v1963, 0.70710677
    %v2028 = vmul.f32 %v1964, 0.70710677
    %v2029 = vmul.f32 %v1965, 0.70710677
    %v2030 = vmul.f32 %v1966, 0.70710677
    %v2031 = vmul.f32 %v1967, 0.70710677
    %v2032 = vmul.f32 %v1968, 0.70710677
    %v2033 = vmul.f32 %v1969, 0.70710677
    %v2034 = vmul.f32 %v1970, 0.70710677
    %v2035 = vmul.f32 %v1971, 0.70710677
    %v2036 = vmul.f32 %v1972, 0.70710677
    %v2037 = vmul.f32 %v1973, 0.70710677
    %v2038 = vmul.f32 %v1974, 0.70710677
    %v2039 = vmul.f32 %v1975, 0.70710677
    %v2040 = vmul.f32 %v1976, 0.70710677
    %v2041 = vmul.f32 %v1977, 0.70710677
    %v2042 = vmul.f32 %v1978, 0.70710677
    %v2043 = vmul.f32 %v1979, 0.70710677
    %v2044 = vmul.f32 %v1980, 0.70710677
    %v2045 = vmul.f32 %v1981, 0.70710677
    %v2046 = vmul.f32 %v1982, 0.70710677
    %v2047 = vmul.f32 %v1983, 0.70710677
    %v2048 = vmul.f32 %v1984, 0.70710677
    %v2049 = vmul.f32 %v1985, 0.70710677
    %v2050 = vmul.f32 %v1986, 0.70710677
    %v2051 = vmul.f32 %v1987, 0.70710677
    %v2052 = vmul.f32 %v1988, 0.70710677
    %v2053 = vmul.f32 %v2021, %v2021
    %v2054 = vmin.f32 16.0, %v2053
    %v2055 = vmul.f32 %v2054, 2.1237322e-06
    %v2056 = vadd.f32 %v2055, 0.00028619796
    %v2057 = vmul.f32 %v2054, %v2056
    %v2058 = vadd.f32 %v2057, 0.0036580483
    %v2059 = vmul.f32 %v2054, %v2058
    %v2060 = vadd.f32 %v2059, 0.05243302
    %v2061 = vmul.f32 %v2054, %v2060
    %v2062 = vadd.f32 %v2061, 0.18741608
    %v2063 = vmul.f32 %v2054, %v2062
    %v2064 = vadd.f32 %v2063, 1.1283791
    %v2065 = vmul.f32 %v2021, %v2064
    %v2066 = vmul.f32 %v2054, 3.8918573e-05
    %v2067 = vadd.f32 %v2066, 0.001143296
    %v2068 = vmul.f32 %v2054, %v2067
    %v2069 = vadd.f32 %v2068, 0.014752088
    %v2070 = vmul.f32 %v2054, %v2069
    %v2071 = vadd.f32 %v2070, 0.112945676
    %v2072 = vmul.f32 %v2054, %v2071
    %v2073 = vadd.f32 %v2072, 0.4994258
    %v2074 = vmul.f32 %v2054, %v2073
    %v2075 = vadd.f32 %v2074, 1.0
    %v2076 = vrcp.pop %v2075
    %v2077 = vmul.f32 %v2075, %v2076
    %v2078 = vsub.f32 1.0, %v2077
    %v2079 = vmul.f32 %v2076, %v2078
    %v2080 = vadd.f32 %v2076, %v2079
    %vm2081 = vweird.f32 %v2075
    %vm2082 = vweird.f32 %v2076
    %vm2083 = vmor %vm2081, %vm2082
    %v2084 = vsel %vm2083, %v2076, %v2080
    %v2085 = vand.u32 2147483647, %v2075
    %vm2086 = vcmp.eq.f32.partialorder %v2085, 8.507059e+37
    %v2087 = vand.u32 %v2075, 2147483648
    %v2088 = vor.u32 1.1754944e-38, %v2087
    %v2089 = vsel %vm2086, %v2088, %v2084
    %v2090 = vmul.f32 %v2065, %v2089
    %v2091 = vmin.f32 %v2090, 1.0
    %v2092 = vmax.f32 %v2091, -1.0
    %v2093 = vmul.f32 %v2022, %v2022
    %v2094 = vmin.f32 16.0, %v2093
    %v2095 = vmul.f32 %v2094, 2.1237322e-06
    %v2096 = vadd.f32 %v2095, 0.00028619796
    %v2097 = vmul.f32 %v2094, %v2096
    %v2098 = vadd.f32 %v2097, 0.0036580483
    %v2099 = vmul.f32 %v2094, %v2098
    %v2100 = vadd.f32 %v2099, 0.05243302
    %v2101 = vmul.f32 %v2094, %v2100
    %v2102 = vadd.f32 %v2101, 0.18741608
    %v2103 = vmul.f32 %v2094, %v2102
    %v2104 = vadd.f32 %v2103, 1.1283791
    %v2105 = vmul.f32 %v2022, %v2104
    %v2106 = vmul.f32 %v2094, 3.8918573e-05
    %v2107 = vadd.f32 %v2106, 0.001143296
    %v2108 = vmul.f32 %v2094, %v2107
    %v2109 = vadd.f32 %v2108, 0.014752088
    %v2110 = vmul.f32 %v2094, %v2109
    %v2111 = vadd.f32 %v2110, 0.112945676
    %v2112 = vmul.f32 %v2094, %v2111
    %v2113 = vadd.f32 %v2112, 0.4994258
    %v2114 = vmul.f32 %v2094, %v2113
    %v2115 = vadd.f32 %v2114, 1.0
    %v2116 = vrcp.pop %v2115
    %v2117 = vmul.f32 %v2115, %v2116
    %v2118 = vsub.f32 1.0, %v2117
    %v2119 = vmul.f32 %v2116, %v2118
    %v2120 = vadd.f32 %v2116, %v2119
    %vm2121 = vweird.f32 %v2115
    %vm2122 = vweird.f32 %v2116
    %vm2123 = vmor %vm2121, %vm2122
    %v2124 = vsel %vm2123, %v2116, %v2120
    %v2125 = vand.u32 2147483647, %v2115
    %vm2126 = vcmp.eq.f32.partialorder %v2125, 8.507059e+37
    %v2127 = vand.u32 %v2115, 2147483648
    %v2128 = vor.u32 1.1754944e-38, %v2127
    %v2129 = vsel %vm2126, %v2128, %v2124
    %v2130 = vmul.f32 %v2105, %v2129
    %v2131 = vmin.f32 %v2130, 1.0
    %v2132 = vmax.f32 %v2131, -1.0
    %v2133 = vmul.f32 %v2023, %v2023
    %v2134 = vmin.f32 16.0, %v2133
    %v2135 = vmul.f32 %v2134, 2.1237322e-06
    %v2136 = vadd.f32 %v2135, 0.00028619796
    %v2137 = vmul.f32 %v2134, %v2136
    %v2138 = vadd.f32 %v2137, 0.0036580483
    %v2139 = vmul.f32 %v2134, %v2138
    %v2140 = vadd.f32 %v2139, 0.05243302
    %v2141 = vmul.f32 %v2134, %v2140
    %v2142 = vadd.f32 %v2141, 0.18741608
    %v2143 = vmul.f32 %v2134, %v2142
    %v2144 = vadd.f32 %v2143, 1.1283791
    %v2145 = vmul.f32 %v2023, %v2144
    %v2146 = vmul.f32 %v2134, 3.8918573e-05
    %v2147 = vadd.f32 %v2146, 0.001143296
    %v2148 = vmul.f32 %v2134, %v2147
    %v2149 = vadd.f32 %v2148, 0.014752088
    %v2150 = vmul.f32 %v2134, %v2149
    %v2151 = vadd.f32 %v2150, 0.112945676
    %v2152 = vmul.f32 %v2134, %v2151
    %v2153 = vadd.f32 %v2152, 0.4994258
    %v2154 = vmul.f32 %v2134, %v2153
    %v2155 = vadd.f32 %v2154, 1.0
    %v2156 = vrcp.pop %v2155
    %v2157 = vmul.f32 %v2155, %v2156
    %v2158 = vsub.f32 1.0, %v2157
    %v2159 = vmul.f32 %v2156, %v2158
    %v2160 = vadd.f32 %v2156, %v2159
    %vm2161 = vweird.f32 %v2155
    %vm2162 = vweird.f32 %v2156
    %vm2163 = vmor %vm2161, %vm2162
    %v2164 = vsel %vm2163, %v2156, %v2160
    %v2165 = vand.u32 2147483647, %v2155
    %vm2166 = vcmp.eq.f32.partialorder %v2165, 8.507059e+37
    %v2167 = vand.u32 %v2155, 2147483648
    %v2168 = vor.u32 1.1754944e-38, %v2167
    %v2169 = vsel %vm2166, %v2168, %v2164
    %v2170 = vmul.f32 %v2145, %v2169
    %v2171 = vmin.f32 %v2170, 1.0
    %v2172 = vmax.f32 %v2171, -1.0
    %v2173 = vmul.f32 %v2024, %v2024
    %v2174 = vmin.f32 16.0, %v2173
    %v2175 = vmul.f32 %v2174, 2.1237322e-06
    %v2176 = vadd.f32 %v2175, 0.00028619796
    %v2177 = vmul.f32 %v2174, %v2176
    %v2178 = vadd.f32 %v2177, 0.0036580483
    %v2179 = vmul.f32 %v2174, %v2178
    %v2180 = vadd.f32 %v2179, 0.05243302
    %v2181 = vmul.f32 %v2174, %v2180
    %v2182 = vadd.f32 %v2181, 0.18741608
    %v2183 = vmul.f32 %v2174, %v2182
    %v2184 = vadd.f32 %v2183, 1.1283791
    %v2185 = vmul.f32 %v2024, %v2184
    %v2186 = vmul.f32 %v2174, 3.8918573e-05
    %v2187 = vadd.f32 %v2186, 0.001143296
    %v2188 = vmul.f32 %v2174, %v2187
    %v2189 = vadd.f32 %v2188, 0.014752088
    %v2190 = vmul.f32 %v2174, %v2189
    %v2191 = vadd.f32 %v2190, 0.112945676
    %v2192 = vmul.f32 %v2174, %v2191
    %v2193 = vadd.f32 %v2192, 0.4994258
    %v2194 = vmul.f32 %v2174, %v2193
    %v2195 = vadd.f32 %v2194, 1.0
    %v2196 = vrcp.pop %v2195
    %v2197 = vmul.f32 %v2195, %v2196
    %v2198 = vsub.f32 1.0, %v2197
    %v2199 = vmul.f32 %v2196, %v2198
    %v2200 = vadd.f32 %v2196, %v2199
    %vm2201 = vweird.f32 %v2195
    %vm2202 = vweird.f32 %v2196
    %vm2203 = vmor %vm2201, %vm2202
    %v2204 = vsel %vm2203, %v2196, %v2200
    %v2205 = vand.u32 2147483647, %v2195
    %vm2206 = vcmp.eq.f32.partialorder %v2205, 8.507059e+37
    %v2207 = vand.u32 %v2195, 2147483648
    %v2208 = vor.u32 1.1754944e-38, %v2207
    %v2209 = vsel %vm2206, %v2208, %v2204
    %v2210 = vmul.f32 %v2185, %v2209
    %v2211 = vmin.f32 %v2210, 1.0
    %v2212 = vmax.f32 %v2211, -1.0
    %v2213 = vmul.f32 %v2025, %v2025
    %v2214 = vmin.f32 16.0, %v2213
    %v2215 = vmul.f32 %v2214, 2.1237322e-06
    %v2216 = vadd.f32 %v2215, 0.00028619796
    %v2217 = vmul.f32 %v2214, %v2216
    %v2218 = vadd.f32 %v2217, 0.0036580483
    %v2219 = vmul.f32 %v2214, %v2218
    %v2220 = vadd.f32 %v2219, 0.05243302
    %v2221 = vmul.f32 %v2214, %v2220
    %v2222 = vadd.f32 %v2221, 0.18741608
    %v2223 = vmul.f32 %v2214, %v2222
    %v2224 = vadd.f32 %v2223, 1.1283791
    %v2225 = vmul.f32 %v2025, %v2224
    %v2226 = vmul.f32 %v2214, 3.8918573e-05
    %v2227 = vadd.f32 %v2226, 0.001143296
    %v2228 = vmul.f32 %v2214, %v2227
    %v2229 = vadd.f32 %v2228, 0.014752088
    %v2230 = vmul.f32 %v2214, %v2229
    %v2231 = vadd.f32 %v2230, 0.112945676
    %v2232 = vmul.f32 %v2214, %v2231
    %v2233 = vadd.f32 %v2232, 0.4994258
    %v2234 = vmul.f32 %v2214, %v2233
    %v2235 = vadd.f32 %v2234, 1.0
    %v2236 = vrcp.pop %v2235
    %v2237 = vmul.f32 %v2235, %v2236
    %v2238 = vsub.f32 1.0, %v2237
    %v2239 = vmul.f32 %v2236, %v2238
    %v2240 = vadd.f32 %v2236, %v2239
    %vm2241 = vweird.f32 %v2235
    %vm2242 = vweird.f32 %v2236
    %vm2243 = vmor %vm2241, %vm2242
    %v2244 = vsel %vm2243, %v2236, %v2240
    %v2245 = vand.u32 2147483647, %v2235
    %vm2246 = vcmp.eq.f32.partialorder %v2245, 8.507059e+37
    %v2247 = vand.u32 %v2235, 2147483648
    %v2248 = vor.u32 1.1754944e-38, %v2247
    %v2249 = vsel %vm2246, %v2248, %v2244
    %v2250 = vmul.f32 %v2225, %v2249
    %v2251 = vmin.f32 %v2250, 1.0
    %v2252 = vmax.f32 %v2251, -1.0
    %v2253 = vmul.f32 %v2026, %v2026
    %v2254 = vmin.f32 16.0, %v2253
    %v2255 = vmul.f32 %v2254, 2.1237322e-06
    %v2256 = vadd.f32 %v2255, 0.00028619796
    %v2257 = vmul.f32 %v2254, %v2256
    %v2258 = vadd.f32 %v2257, 0.0036580483
    %v2259 = vmul.f32 %v2254, %v2258
    %v2260 = vadd.f32 %v2259, 0.05243302
    %v2261 = vmul.f32 %v2254, %v2260
    %v2262 = vadd.f32 %v2261, 0.18741608
    %v2263 = vmul.f32 %v2254, %v2262
    %v2264 = vadd.f32 %v2263, 1.1283791
    %v2265 = vmul.f32 %v2026, %v2264
    %v2266 = vmul.f32 %v2254, 3.8918573e-05
    %v2267 = vadd.f32 %v2266, 0.001143296
    %v2268 = vmul.f32 %v2254, %v2267
    %v2269 = vadd.f32 %v2268, 0.014752088
    %v2270 = vmul.f32 %v2254, %v2269
    %v2271 = vadd.f32 %v2270, 0.112945676
    %v2272 = vmul.f32 %v2254, %v2271
    %v2273 = vadd.f32 %v2272, 0.4994258
    %v2274 = vmul.f32 %v2254, %v2273
    %v2275 = vadd.f32 %v2274, 1.0
    %v2276 = vrcp.pop %v2275
    %v2277 = vmul.f32 %v2275, %v2276
    %v2278 = vsub.f32 1.0, %v2277
    %v2279 = vmul.f32 %v2276, %v2278
    %v2280 = vadd.f32 %v2276, %v2279
    %vm2281 = vweird.f32 %v2275
    %vm2282 = vweird.f32 %v2276
    %vm2283 = vmor %vm2281, %vm2282
    %v2284 = vsel %vm2283, %v2276, %v2280
    %v2285 = vand.u32 2147483647, %v2275
    %vm2286 = vcmp.eq.f32.partialorder %v2285, 8.507059e+37
    %v2287 = vand.u32 %v2275, 2147483648
    %v2288 = vor.u32 1.1754944e-38, %v2287
    %v2289 = vsel %vm2286, %v2288, %v2284
    %v2290 = vmul.f32 %v2265, %v2289
    %v2291 = vmin.f32 %v2290, 1.0
    %v2292 = vmax.f32 %v2291, -1.0
    %v2293 = vmul.f32 %v2027, %v2027
    %v2294 = vmin.f32 16.0, %v2293
    %v2295 = vmul.f32 %v2294, 2.1237322e-06
    %v2296 = vadd.f32 %v2295, 0.00028619796
    %v2297 = vmul.f32 %v2294, %v2296
    %v2298 = vadd.f32 %v2297, 0.0036580483
    %v2299 = vmul.f32 %v2294, %v2298
    %v2300 = vadd.f32 %v2299, 0.05243302
    %v2301 = vmul.f32 %v2294, %v2300
    %v2302 = vadd.f32 %v2301, 0.18741608
    %v2303 = vmul.f32 %v2294, %v2302
    %v2304 = vadd.f32 %v2303, 1.1283791
    %v2305 = vmul.f32 %v2027, %v2304
    %v2306 = vmul.f32 %v2294, 3.8918573e-05
    %v2307 = vadd.f32 %v2306, 0.001143296
    %v2308 = vmul.f32 %v2294, %v2307
    %v2309 = vadd.f32 %v2308, 0.014752088
    %v2310 = vmul.f32 %v2294, %v2309
    %v2311 = vadd.f32 %v2310, 0.112945676
    %v2312 = vmul.f32 %v2294, %v2311
    %v2313 = vadd.f32 %v2312, 0.4994258
    %v2314 = vmul.f32 %v2294, %v2313
    %v2315 = vadd.f32 %v2314, 1.0
    %v2316 = vrcp.pop %v2315
    %v2317 = vmul.f32 %v2315, %v2316
    %v2318 = vsub.f32 1.0, %v2317
    %v2319 = vmul.f32 %v2316, %v2318
    %v2320 = vadd.f32 %v2316, %v2319
    %vm2321 = vweird.f32 %v2315
    %vm2322 = vweird.f32 %v2316
    %vm2323 = vmor %vm2321, %vm2322
    %v2324 = vsel %vm2323, %v2316, %v2320
    %v2325 = vand.u32 2147483647, %v2315
    %vm2326 = vcmp.eq.f32.partialorder %v2325, 8.507059e+37
    %v2327 = vand.u32 %v2315, 2147483648
    %v2328 = vor.u32 1.1754944e-38, %v2327
    %v2329 = vsel %vm2326, %v2328, %v2324
    %v2330 = vmul.f32 %v2305, %v2329
    %v2331 = vmin.f32 %v2330, 1.0
    %v2332 = vmax.f32 %v2331, -1.0
    %v2333 = vmul.f32 %v2028, %v2028
    %v2334 = vmin.f32 16.0, %v2333
    %v2335 = vmul.f32 %v2334, 2.1237322e-06
    %v2336 = vadd.f32 %v2335, 0.00028619796
    %v2337 = vmul.f32 %v2334, %v2336
    %v2338 = vadd.f32 %v2337, 0.0036580483
    %v2339 = vmul.f32 %v2334, %v2338
    %v2340 = vadd.f32 %v2339, 0.05243302
    %v2341 = vmul.f32 %v2334, %v2340
    %v2342 = vadd.f32 %v2341, 0.18741608
    %v2343 = vmul.f32 %v2334, %v2342
    %v2344 = vadd.f32 %v2343, 1.1283791
    %v2345 = vmul.f32 %v2028, %v2344
    %v2346 = vmul.f32 %v2334, 3.8918573e-05
    %v2347 = vadd.f32 %v2346, 0.001143296
    %v2348 = vmul.f32 %v2334, %v2347
    %v2349 = vadd.f32 %v2348, 0.014752088
    %v2350 = vmul.f32 %v2334, %v2349
    %v2351 = vadd.f32 %v2350, 0.112945676
    %v2352 = vmul.f32 %v2334, %v2351
    %v2353 = vadd.f32 %v2352, 0.4994258
    %v2354 = vmul.f32 %v2334, %v2353
    %v2355 = vadd.f32 %v2354, 1.0
    %v2356 = vrcp.pop %v2355
    %v2357 = vmul.f32 %v2355, %v2356
    %v2358 = vsub.f32 1.0, %v2357
    %v2359 = vmul.f32 %v2356, %v2358
    %v2360 = vadd.f32 %v2356, %v2359
    %vm2361 = vweird.f32 %v2355
    %vm2362 = vweird.f32 %v2356
    %vm2363 = vmor %vm2361, %vm2362
    %v2364 = vsel %vm2363, %v2356, %v2360
    %v2365 = vand.u32 2147483647, %v2355
    %vm2366 = vcmp.eq.f32.partialorder %v2365, 8.507059e+37
    %v2367 = vand.u32 %v2355, 2147483648
    %v2368 = vor.u32 1.1754944e-38, %v2367
    %v2369 = vsel %vm2366, %v2368, %v2364
    %v2370 = vmul.f32 %v2345, %v2369
    %v2371 = vmin.f32 %v2370, 1.0
    %v2372 = vmax.f32 %v2371, -1.0
    %v2373 = vmul.f32 %v2029, %v2029
    %v2374 = vmin.f32 16.0, %v2373
    %v2375 = vmul.f32 %v2374, 2.1237322e-06
    %v2376 = vadd.f32 %v2375, 0.00028619796
    %v2377 = vmul.f32 %v2374, %v2376
    %v2378 = vadd.f32 %v2377, 0.0036580483
    %v2379 = vmul.f32 %v2374, %v2378
    %v2380 = vadd.f32 %v2379, 0.05243302
    %v2381 = vmul.f32 %v2374, %v2380
    %v2382 = vadd.f32 %v2381, 0.18741608
    %v2383 = vmul.f32 %v2374, %v2382
    %v2384 = vadd.f32 %v2383, 1.1283791
    %v2385 = vmul.f32 %v2029, %v2384
    %v2386 = vmul.f32 %v2374, 3.8918573e-05
    %v2387 = vadd.f32 %v2386, 0.001143296
    %v2388 = vmul.f32 %v2374, %v2387
    %v2389 = vadd.f32 %v2388, 0.014752088
    %v2390 = vmul.f32 %v2374, %v2389
    %v2391 = vadd.f32 %v2390, 0.112945676
    %v2392 = vmul.f32 %v2374, %v2391
    %v2393 = vadd.f32 %v2392, 0.4994258
    %v2394 = vmul.f32 %v2374, %v2393
    %v2395 = vadd.f32 %v2394, 1.0
    %v2396 = vrcp.pop %v2395
    %v2397 = vmul.f32 %v2395, %v2396
    %v2398 = vsub.f32 1.0, %v2397
    %v2399 = vmul.f32 %v2396, %v2398
    %v2400 = vadd.f32 %v2396, %v2399
    %vm2401 = vweird.f32 %v2395
    %vm2402 = vweird.f32 %v2396
    %vm2403 = vmor %vm2401, %vm2402
    %v2404 = vsel %vm2403, %v2396, %v2400
    %v2405 = vand.u32 2147483647, %v2395
    %vm2406 = vcmp.eq.f32.partialorder %v2405, 8.507059e+37
    %v2407 = vand.u32 %v2395, 2147483648
    %v2408 = vor.u32 1.1754944e-38, %v2407
    %v2409 = vsel %vm2406, %v2408, %v2404
    %v2410 = vmul.f32 %v2385, %v2409
    %v2411 = vmin.f32 %v2410, 1.0
    %v2412 = vmax.f32 %v2411, -1.0
    %v2413 = vmul.f32 %v2030, %v2030
    %v2414 = vmin.f32 16.0, %v2413
    %v2415 = vmul.f32 %v2414, 2.1237322e-06
    %v2416 = vadd.f32 %v2415, 0.00028619796
    %v2417 = vmul.f32 %v2414, %v2416
    %v2418 = vadd.f32 %v2417, 0.0036580483
    %v2419 = vmul.f32 %v2414, %v2418
    %v2420 = vadd.f32 %v2419, 0.05243302
    %v2421 = vmul.f32 %v2414, %v2420
    %v2422 = vadd.f32 %v2421, 0.18741608
    %v2423 = vmul.f32 %v2414, %v2422
    %v2424 = vadd.f32 %v2423, 1.1283791
    %v2425 = vmul.f32 %v2030, %v2424
    %v2426 = vmul.f32 %v2414, 3.8918573e-05
    %v2427 = vadd.f32 %v2426, 0.001143296
    %v2428 = vmul.f32 %v2414, %v2427
    %v2429 = vadd.f32 %v2428, 0.014752088
    %v2430 = vmul.f32 %v2414, %v2429
    %v2431 = vadd.f32 %v2430, 0.112945676
    %v2432 = vmul.f32 %v2414, %v2431
    %v2433 = vadd.f32 %v2432, 0.4994258
    %v2434 = vmul.f32 %v2414, %v2433
    %v2435 = vadd.f32 %v2434, 1.0
    %v2436 = vrcp.pop %v2435
    %v2437 = vmul.f32 %v2435, %v2436
    %v2438 = vsub.f32 1.0, %v2437
    %v2439 = vmul.f32 %v2436, %v2438
    %v2440 = vadd.f32 %v2436, %v2439
    %vm2441 = vweird.f32 %v2435
    %vm2442 = vweird.f32 %v2436
    %vm2443 = vmor %vm2441, %vm2442
    %v2444 = vsel %vm2443, %v2436, %v2440
    %v2445 = vand.u32 2147483647, %v2435
    %vm2446 = vcmp.eq.f32.partialorder %v2445, 8.507059e+37
    %v2447 = vand.u32 %v2435, 2147483648
    %v2448 = vor.u32 1.1754944e-38, %v2447
    %v2449 = vsel %vm2446, %v2448, %v2444
    %v2450 = vmul.f32 %v2425, %v2449
    %v2451 = vmin.f32 %v2450, 1.0
    %v2452 = vmax.f32 %v2451, -1.0
    %v2453 = vmul.f32 %v2031, %v2031
    %v2454 = vmin.f32 16.0, %v2453
    %v2455 = vmul.f32 %v2454, 2.1237322e-06
    %v2456 = vadd.f32 %v2455, 0.00028619796
    %v2457 = vmul.f32 %v2454, %v2456
    %v2458 = vadd.f32 %v2457, 0.0036580483
    %v2459 = vmul.f32 %v2454, %v2458
    %v2460 = vadd.f32 %v2459, 0.05243302
    %v2461 = vmul.f32 %v2454, %v2460
    %v2462 = vadd.f32 %v2461, 0.18741608
    %v2463 = vmul.f32 %v2454, %v2462
    %v2464 = vadd.f32 %v2463, 1.1283791
    %v2465 = vmul.f32 %v2031, %v2464
    %v2466 = vmul.f32 %v2454, 3.8918573e-05
    %v2467 = vadd.f32 %v2466, 0.001143296
    %v2468 = vmul.f32 %v2454, %v2467
    %v2469 = vadd.f32 %v2468, 0.014752088
    %v2470 = vmul.f32 %v2454, %v2469
    %v2471 = vadd.f32 %v2470, 0.112945676
    %v2472 = vmul.f32 %v2454, %v2471
    %v2473 = vadd.f32 %v2472, 0.4994258
    %v2474 = vmul.f32 %v2454, %v2473
    %v2475 = vadd.f32 %v2474, 1.0
    %v2476 = vrcp.pop %v2475
    %v2477 = vmul.f32 %v2475, %v2476
    %v2478 = vsub.f32 1.0, %v2477
    %v2479 = vmul.f32 %v2476, %v2478
    %v2480 = vadd.f32 %v2476, %v2479
    %vm2481 = vweird.f32 %v2475
    %vm2482 = vweird.f32 %v2476
    %vm2483 = vmor %vm2481, %vm2482
    %v2484 = vsel %vm2483, %v2476, %v2480
    %v2485 = vand.u32 2147483647, %v2475
    %vm2486 = vcmp.eq.f32.partialorder %v2485, 8.507059e+37
    %v2487 = vand.u32 %v2475, 2147483648
    %v2488 = vor.u32 1.1754944e-38, %v2487
    %v2489 = vsel %vm2486, %v2488, %v2484
    %v2490 = vmul.f32 %v2465, %v2489
    %v2491 = vmin.f32 %v2490, 1.0
    %v2492 = vmax.f32 %v2491, -1.0
    %v2493 = vmul.f32 %v2032, %v2032
    %v2494 = vmin.f32 16.0, %v2493
    %v2495 = vmul.f32 %v2494, 2.1237322e-06
    %v2496 = vadd.f32 %v2495, 0.00028619796
    %v2497 = vmul.f32 %v2494, %v2496
    %v2498 = vadd.f32 %v2497, 0.0036580483
    %v2499 = vmul.f32 %v2494, %v2498
    %v2500 = vadd.f32 %v2499, 0.05243302
    %v2501 = vmul.f32 %v2494, %v2500
    %v2502 = vadd.f32 %v2501, 0.18741608
    %v2503 = vmul.f32 %v2494, %v2502
    %v2504 = vadd.f32 %v2503, 1.1283791
    %v2505 = vmul.f32 %v2032, %v2504
    %v2506 = vmul.f32 %v2494, 3.8918573e-05
    %v2507 = vadd.f32 %v2506, 0.001143296
    %v2508 = vmul.f32 %v2494, %v2507
    %v2509 = vadd.f32 %v2508, 0.014752088
    %v2510 = vmul.f32 %v2494, %v2509
    %v2511 = vadd.f32 %v2510, 0.112945676
    %v2512 = vmul.f32 %v2494, %v2511
    %v2513 = vadd.f32 %v2512, 0.4994258
    %v2514 = vmul.f32 %v2494, %v2513
    %v2515 = vadd.f32 %v2514, 1.0
    %v2516 = vrcp.pop %v2515
    %v2517 = vmul.f32 %v2515, %v2516
    %v2518 = vsub.f32 1.0, %v2517
    %v2519 = vmul.f32 %v2516, %v2518
    %v2520 = vadd.f32 %v2516, %v2519
    %vm2521 = vweird.f32 %v2515
    %vm2522 = vweird.f32 %v2516
    %vm2523 = vmor %vm2521, %vm2522
    %v2524 = vsel %vm2523, %v2516, %v2520
    %v2525 = vand.u32 2147483647, %v2515
    %vm2526 = vcmp.eq.f32.partialorder %v2525, 8.507059e+37
    %v2527 = vand.u32 %v2515, 2147483648
    %v2528 = vor.u32 1.1754944e-38, %v2527
    %v2529 = vsel %vm2526, %v2528, %v2524
    %v2530 = vmul.f32 %v2505, %v2529
    %v2531 = vmin.f32 %v2530, 1.0
    %v2532 = vmax.f32 %v2531, -1.0
    %v2533 = vmul.f32 %v2033, %v2033
    %v2534 = vmin.f32 16.0, %v2533
    %v2535 = vmul.f32 %v2534, 2.1237322e-06
    %v2536 = vadd.f32 %v2535, 0.00028619796
    %v2537 = vmul.f32 %v2534, %v2536
    %v2538 = vadd.f32 %v2537, 0.0036580483
    %v2539 = vmul.f32 %v2534, %v2538
    %v2540 = vadd.f32 %v2539, 0.05243302
    %v2541 = vmul.f32 %v2534, %v2540
    %v2542 = vadd.f32 %v2541, 0.18741608
    %v2543 = vmul.f32 %v2534, %v2542
    %v2544 = vadd.f32 %v2543, 1.1283791
    %v2545 = vmul.f32 %v2033, %v2544
    %v2546 = vmul.f32 %v2534, 3.8918573e-05
    %v2547 = vadd.f32 %v2546, 0.001143296
    %v2548 = vmul.f32 %v2534, %v2547
    %v2549 = vadd.f32 %v2548, 0.014752088
    %v2550 = vmul.f32 %v2534, %v2549
    %v2551 = vadd.f32 %v2550, 0.112945676
    %v2552 = vmul.f32 %v2534, %v2551
    %v2553 = vadd.f32 %v2552, 0.4994258
    %v2554 = vmul.f32 %v2534, %v2553
    %v2555 = vadd.f32 %v2554, 1.0
    %v2556 = vrcp.pop %v2555
    %v2557 = vmul.f32 %v2555, %v2556
    %v2558 = vsub.f32 1.0, %v2557
    %v2559 = vmul.f32 %v2556, %v2558
    %v2560 = vadd.f32 %v2556, %v2559
    %vm2561 = vweird.f32 %v2555
    %vm2562 = vweird.f32 %v2556
    %vm2563 = vmor %vm2561, %vm2562
    %v2564 = vsel %vm2563, %v2556, %v2560
    %v2565 = vand.u32 2147483647, %v2555
    %vm2566 = vcmp.eq.f32.partialorder %v2565, 8.507059e+37
    %v2567 = vand.u32 %v2555, 2147483648
    %v2568 = vor.u32 1.1754944e-38, %v2567
    %v2569 = vsel %vm2566, %v2568, %v2564
    %v2570 = vmul.f32 %v2545, %v2569
    %v2571 = vmin.f32 %v2570, 1.0
    %v2572 = vmax.f32 %v2571, -1.0
    %v2573 = vmul.f32 %v2034, %v2034
    %v2574 = vmin.f32 16.0, %v2573
    %v2575 = vmul.f32 %v2574, 2.1237322e-06
    %v2576 = vadd.f32 %v2575, 0.00028619796
    %v2577 = vmul.f32 %v2574, %v2576
    %v2578 = vadd.f32 %v2577, 0.0036580483
    %v2579 = vmul.f32 %v2574, %v2578
    %v2580 = vadd.f32 %v2579, 0.05243302
    %v2581 = vmul.f32 %v2574, %v2580
    %v2582 = vadd.f32 %v2581, 0.18741608
    %v2583 = vmul.f32 %v2574, %v2582
    %v2584 = vadd.f32 %v2583, 1.1283791
    %v2585 = vmul.f32 %v2034, %v2584
    %v2586 = vmul.f32 %v2574, 3.8918573e-05
    %v2587 = vadd.f32 %v2586, 0.001143296
    %v2588 = vmul.f32 %v2574, %v2587
    %v2589 = vadd.f32 %v2588, 0.014752088
    %v2590 = vmul.f32 %v2574, %v2589
    %v2591 = vadd.f32 %v2590, 0.112945676
    %v2592 = vmul.f32 %v2574, %v2591
    %v2593 = vadd.f32 %v2592, 0.4994258
    %v2594 = vmul.f32 %v2574, %v2593
    %v2595 = vadd.f32 %v2594, 1.0
    %v2596 = vrcp.pop %v2595
    %v2597 = vmul.f32 %v2595, %v2596
    %v2598 = vsub.f32 1.0, %v2597
    %v2599 = vmul.f32 %v2596, %v2598
    %v2600 = vadd.f32 %v2596, %v2599
    %vm2601 = vweird.f32 %v2595
    %vm2602 = vweird.f32 %v2596
    %vm2603 = vmor %vm2601, %vm2602
    %v2604 = vsel %vm2603, %v2596, %v2600
    %v2605 = vand.u32 2147483647, %v2595
    %vm2606 = vcmp.eq.f32.partialorder %v2605, 8.507059e+37
    %v2607 = vand.u32 %v2595, 2147483648
    %v2608 = vor.u32 1.1754944e-38, %v2607
    %v2609 = vsel %vm2606, %v2608, %v2604
    %v2610 = vmul.f32 %v2585, %v2609
    %v2611 = vmin.f32 %v2610, 1.0
    %v2612 = vmax.f32 %v2611, -1.0
    %v2613 = vmul.f32 %v2035, %v2035
    %v2614 = vmin.f32 16.0, %v2613
    %v2615 = vmul.f32 %v2614, 2.1237322e-06
    %v2616 = vadd.f32 %v2615, 0.00028619796
    %v2617 = vmul.f32 %v2614, %v2616
    %v2618 = vadd.f32 %v2617, 0.0036580483
    %v2619 = vmul.f32 %v2614, %v2618
    %v2620 = vadd.f32 %v2619, 0.05243302
    %v2621 = vmul.f32 %v2614, %v2620
    %v2622 = vadd.f32 %v2621, 0.18741608
    %v2623 = vmul.f32 %v2614, %v2622
    %v2624 = vadd.f32 %v2623, 1.1283791
    %v2625 = vmul.f32 %v2035, %v2624
    %v2626 = vmul.f32 %v2614, 3.8918573e-05
    %v2627 = vadd.f32 %v2626, 0.001143296
    %v2628 = vmul.f32 %v2614, %v2627
    %v2629 = vadd.f32 %v2628, 0.014752088
    %v2630 = vmul.f32 %v2614, %v2629
    %v2631 = vadd.f32 %v2630, 0.112945676
    %v2632 = vmul.f32 %v2614, %v2631
    %v2633 = vadd.f32 %v2632, 0.4994258
    %v2634 = vmul.f32 %v2614, %v2633
    %v2635 = vadd.f32 %v2634, 1.0
    %v2636 = vrcp.pop %v2635
    %v2637 = vmul.f32 %v2635, %v2636
    %v2638 = vsub.f32 1.0, %v2637
    %v2639 = vmul.f32 %v2636, %v2638
    %v2640 = vadd.f32 %v2636, %v2639
    %vm2641 = vweird.f32 %v2635
    %vm2642 = vweird.f32 %v2636
    %vm2643 = vmor %vm2641, %vm2642
    %v2644 = vsel %vm2643, %v2636, %v2640
    %v2645 = vand.u32 2147483647, %v2635
    %vm2646 = vcmp.eq.f32.partialorder %v2645, 8.507059e+37
    %v2647 = vand.u32 %v2635, 2147483648
    %v2648 = vor.u32 1.1754944e-38, %v2647
    %v2649 = vsel %vm2646, %v2648, %v2644
    %v2650 = vmul.f32 %v2625, %v2649
    %v2651 = vmin.f32 %v2650, 1.0
    %v2652 = vmax.f32 %v2651, -1.0
    %v2653 = vmul.f32 %v2036, %v2036
    %v2654 = vmin.f32 16.0, %v2653
    %v2655 = vmul.f32 %v2654, 2.1237322e-06
    %v2656 = vadd.f32 %v2655, 0.00028619796
    %v2657 = vmul.f32 %v2654, %v2656
    %v2658 = vadd.f32 %v2657, 0.0036580483
    %v2659 = vmul.f32 %v2654, %v2658
    %v2660 = vadd.f32 %v2659, 0.05243302
    %v2661 = vmul.f32 %v2654, %v2660
    %v2662 = vadd.f32 %v2661, 0.18741608
    %v2663 = vmul.f32 %v2654, %v2662
    %v2664 = vadd.f32 %v2663, 1.1283791
    %v2665 = vmul.f32 %v2036, %v2664
    %v2666 = vmul.f32 %v2654, 3.8918573e-05
    %v2667 = vadd.f32 %v2666, 0.001143296
    %v2668 = vmul.f32 %v2654, %v2667
    %v2669 = vadd.f32 %v2668, 0.014752088
    %v2670 = vmul.f32 %v2654, %v2669
    %v2671 = vadd.f32 %v2670, 0.112945676
    %v2672 = vmul.f32 %v2654, %v2671
    %v2673 = vadd.f32 %v2672, 0.4994258
    %v2674 = vmul.f32 %v2654, %v2673
    %v2675 = vadd.f32 %v2674, 1.0
    %v2676 = vrcp.pop %v2675
    %v2677 = vmul.f32 %v2675, %v2676
    %v2678 = vsub.f32 1.0, %v2677
    %v2679 = vmul.f32 %v2676, %v2678
    %v2680 = vadd.f32 %v2676, %v2679
    %vm2681 = vweird.f32 %v2675
    %vm2682 = vweird.f32 %v2676
    %vm2683 = vmor %vm2681, %vm2682
    %v2684 = vsel %vm2683, %v2676, %v2680
    %v2685 = vand.u32 2147483647, %v2675
    %vm2686 = vcmp.eq.f32.partialorder %v2685, 8.507059e+37
    %v2687 = vand.u32 %v2675, 2147483648
    %v2688 = vor.u32 1.1754944e-38, %v2687
    %v2689 = vsel %vm2686, %v2688, %v2684
    %v2690 = vmul.f32 %v2665, %v2689
    %v2691 = vmin.f32 %v2690, 1.0
    %v2692 = vmax.f32 %v2691, -1.0
    %v2693 = vmul.f32 %v2037, %v2037
    %v2694 = vmin.f32 16.0, %v2693
    %v2695 = vmul.f32 %v2694, 2.1237322e-06
    %v2696 = vadd.f32 %v2695, 0.00028619796
    %v2697 = vmul.f32 %v2694, %v2696
    %v2698 = vadd.f32 %v2697, 0.0036580483
    %v2699 = vmul.f32 %v2694, %v2698
    %v2700 = vadd.f32 %v2699, 0.05243302
    %v2701 = vmul.f32 %v2694, %v2700
    %v2702 = vadd.f32 %v2701, 0.18741608
    %v2703 = vmul.f32 %v2694, %v2702
    %v2704 = vadd.f32 %v2703, 1.1283791
    %v2705 = vmul.f32 %v2037, %v2704
    %v2706 = vmul.f32 %v2694, 3.8918573e-05
    %v2707 = vadd.f32 %v2706, 0.001143296
    %v2708 = vmul.f32 %v2694, %v2707
    %v2709 = vadd.f32 %v2708, 0.014752088
    %v2710 = vmul.f32 %v2694, %v2709
    %v2711 = vadd.f32 %v2710, 0.112945676
    %v2712 = vmul.f32 %v2694, %v2711
    %v2713 = vadd.f32 %v2712, 0.4994258
    %v2714 = vmul.f32 %v2694, %v2713
    %v2715 = vadd.f32 %v2714, 1.0
    %v2716 = vrcp.pop %v2715
    %v2717 = vmul.f32 %v2715, %v2716
    %v2718 = vsub.f32 1.0, %v2717
    %v2719 = vmul.f32 %v2716, %v2718
    %v2720 = vadd.f32 %v2716, %v2719
    %vm2721 = vweird.f32 %v2715
    %vm2722 = vweird.f32 %v2716
    %vm2723 = vmor %vm2721, %vm2722
    %v2724 = vsel %vm2723, %v2716, %v2720
    %v2725 = vand.u32 2147483647, %v2715
    %vm2726 = vcmp.eq.f32.partialorder %v2725, 8.507059e+37
    %v2727 = vand.u32 %v2715, 2147483648
    %v2728 = vor.u32 1.1754944e-38, %v2727
    %v2729 = vsel %vm2726, %v2728, %v2724
    %v2730 = vmul.f32 %v2705, %v2729
    %v2731 = vmin.f32 %v2730, 1.0
    %v2732 = vmax.f32 %v2731, -1.0
    %v2733 = vmul.f32 %v2038, %v2038
    %v2734 = vmin.f32 16.0, %v2733
    %v2735 = vmul.f32 %v2734, 2.1237322e-06
    %v2736 = vadd.f32 %v2735, 0.00028619796
    %v2737 = vmul.f32 %v2734, %v2736
    %v2738 = vadd.f32 %v2737, 0.0036580483
    %v2739 = vmul.f32 %v2734, %v2738
    %v2740 = vadd.f32 %v2739, 0.05243302
    %v2741 = vmul.f32 %v2734, %v2740
    %v2742 = vadd.f32 %v2741, 0.18741608
    %v2743 = vmul.f32 %v2734, %v2742
    %v2744 = vadd.f32 %v2743, 1.1283791
    %v2745 = vmul.f32 %v2038, %v2744
    %v2746 = vmul.f32 %v2734, 3.8918573e-05
    %v2747 = vadd.f32 %v2746, 0.001143296
    %v2748 = vmul.f32 %v2734, %v2747
    %v2749 = vadd.f32 %v2748, 0.014752088
    %v2750 = vmul.f32 %v2734, %v2749
    %v2751 = vadd.f32 %v2750, 0.112945676
    %v2752 = vmul.f32 %v2734, %v2751
    %v2753 = vadd.f32 %v2752, 0.4994258
    %v2754 = vmul.f32 %v2734, %v2753
    %v2755 = vadd.f32 %v2754, 1.0
    %v2756 = vrcp.pop %v2755
    %v2757 = vmul.f32 %v2755, %v2756
    %v2758 = vsub.f32 1.0, %v2757
    %v2759 = vmul.f32 %v2756, %v2758
    %v2760 = vadd.f32 %v2756, %v2759
    %vm2761 = vweird.f32 %v2755
    %vm2762 = vweird.f32 %v2756
    %vm2763 = vmor %vm2761, %vm2762
    %v2764 = vsel %vm2763, %v2756, %v2760
    %v2765 = vand.u32 2147483647, %v2755
    %vm2766 = vcmp.eq.f32.partialorder %v2765, 8.507059e+37
    %v2767 = vand.u32 %v2755, 2147483648
    %v2768 = vor.u32 1.1754944e-38, %v2767
    %v2769 = vsel %vm2766, %v2768, %v2764
    %v2770 = vmul.f32 %v2745, %v2769
    %v2771 = vmin.f32 %v2770, 1.0
    %v2772 = vmax.f32 %v2771, -1.0
    %v2773 = vmul.f32 %v2039, %v2039
    %v2774 = vmin.f32 16.0, %v2773
    %v2775 = vmul.f32 %v2774, 2.1237322e-06
    %v2776 = vadd.f32 %v2775, 0.00028619796
    %v2777 = vmul.f32 %v2774, %v2776
    %v2778 = vadd.f32 %v2777, 0.0036580483
    %v2779 = vmul.f32 %v2774, %v2778
    %v2780 = vadd.f32 %v2779, 0.05243302
    %v2781 = vmul.f32 %v2774, %v2780
    %v2782 = vadd.f32 %v2781, 0.18741608
    %v2783 = vmul.f32 %v2774, %v2782
    %v2784 = vadd.f32 %v2783, 1.1283791
    %v2785 = vmul.f32 %v2039, %v2784
    %v2786 = vmul.f32 %v2774, 3.8918573e-05
    %v2787 = vadd.f32 %v2786, 0.001143296
    %v2788 = vmul.f32 %v2774, %v2787
    %v2789 = vadd.f32 %v2788, 0.014752088
    %v2790 = vmul.f32 %v2774, %v2789
    %v2791 = vadd.f32 %v2790, 0.112945676
    %v2792 = vmul.f32 %v2774, %v2791
    %v2793 = vadd.f32 %v2792, 0.4994258
    %v2794 = vmul.f32 %v2774, %v2793
    %v2795 = vadd.f32 %v2794, 1.0
    %v2796 = vrcp.pop %v2795
    %v2797 = vmul.f32 %v2795, %v2796
    %v2798 = vsub.f32 1.0, %v2797
    %v2799 = vmul.f32 %v2796, %v2798
    %v2800 = vadd.f32 %v2796, %v2799
    %vm2801 = vweird.f32 %v2795
    %vm2802 = vweird.f32 %v2796
    %vm2803 = vmor %vm2801, %vm2802
    %v2804 = vsel %vm2803, %v2796, %v2800
    %v2805 = vand.u32 2147483647, %v2795
    %vm2806 = vcmp.eq.f32.partialorder %v2805, 8.507059e+37
    %v2807 = vand.u32 %v2795, 2147483648
    %v2808 = vor.u32 1.1754944e-38, %v2807
    %v2809 = vsel %vm2806, %v2808, %v2804
    %v2810 = vmul.f32 %v2785, %v2809
    %v2811 = vmin.f32 %v2810, 1.0
    %v2812 = vmax.f32 %v2811, -1.0
    %v2813 = vmul.f32 %v2040, %v2040
    %v2814 = vmin.f32 16.0, %v2813
    %v2815 = vmul.f32 %v2814, 2.1237322e-06
    %v2816 = vadd.f32 %v2815, 0.00028619796
    %v2817 = vmul.f32 %v2814, %v2816
    %v2818 = vadd.f32 %v2817, 0.0036580483
    %v2819 = vmul.f32 %v2814, %v2818
    %v2820 = vadd.f32 %v2819, 0.05243302
    %v2821 = vmul.f32 %v2814, %v2820
    %v2822 = vadd.f32 %v2821, 0.18741608
    %v2823 = vmul.f32 %v2814, %v2822
    %v2824 = vadd.f32 %v2823, 1.1283791
    %v2825 = vmul.f32 %v2040, %v2824
    %v2826 = vmul.f32 %v2814, 3.8918573e-05
    %v2827 = vadd.f32 %v2826, 0.001143296
    %v2828 = vmul.f32 %v2814, %v2827
    %v2829 = vadd.f32 %v2828, 0.014752088
    %v2830 = vmul.f32 %v2814, %v2829
    %v2831 = vadd.f32 %v2830, 0.112945676
    %v2832 = vmul.f32 %v2814, %v2831
    %v2833 = vadd.f32 %v2832, 0.4994258
    %v2834 = vmul.f32 %v2814, %v2833
    %v2835 = vadd.f32 %v2834, 1.0
    %v2836 = vrcp.pop %v2835
    %v2837 = vmul.f32 %v2835, %v2836
    %v2838 = vsub.f32 1.0, %v2837
    %v2839 = vmul.f32 %v2836, %v2838
    %v2840 = vadd.f32 %v2836, %v2839
    %vm2841 = vweird.f32 %v2835
    %vm2842 = vweird.f32 %v2836
    %vm2843 = vmor %vm2841, %vm2842
    %v2844 = vsel %vm2843, %v2836, %v2840
    %v2845 = vand.u32 2147483647, %v2835
    %vm2846 = vcmp.eq.f32.partialorder %v2845, 8.507059e+37
    %v2847 = vand.u32 %v2835, 2147483648
    %v2848 = vor.u32 1.1754944e-38, %v2847
    %v2849 = vsel %vm2846, %v2848, %v2844
    %v2850 = vmul.f32 %v2825, %v2849
    %v2851 = vmin.f32 %v2850, 1.0
    %v2852 = vmax.f32 %v2851, -1.0
    %v2853 = vmul.f32 %v2041, %v2041
    %v2854 = vmin.f32 16.0, %v2853
    %v2855 = vmul.f32 %v2854, 2.1237322e-06
    %v2856 = vadd.f32 %v2855, 0.00028619796
    %v2857 = vmul.f32 %v2854, %v2856
    %v2858 = vadd.f32 %v2857, 0.0036580483
    %v2859 = vmul.f32 %v2854, %v2858
    %v2860 = vadd.f32 %v2859, 0.05243302
    %v2861 = vmul.f32 %v2854, %v2860
    %v2862 = vadd.f32 %v2861, 0.18741608
    %v2863 = vmul.f32 %v2854, %v2862
    %v2864 = vadd.f32 %v2863, 1.1283791
    %v2865 = vmul.f32 %v2041, %v2864
    %v2866 = vmul.f32 %v2854, 3.8918573e-05
    %v2867 = vadd.f32 %v2866, 0.001143296
    %v2868 = vmul.f32 %v2854, %v2867
    %v2869 = vadd.f32 %v2868, 0.014752088
    %v2870 = vmul.f32 %v2854, %v2869
    %v2871 = vadd.f32 %v2870, 0.112945676
    %v2872 = vmul.f32 %v2854, %v2871
    %v2873 = vadd.f32 %v2872, 0.4994258
    %v2874 = vmul.f32 %v2854, %v2873
    %v2875 = vadd.f32 %v2874, 1.0
    %v2876 = vrcp.pop %v2875
    %v2877 = vmul.f32 %v2875, %v2876
    %v2878 = vsub.f32 1.0, %v2877
    %v2879 = vmul.f32 %v2876, %v2878
    %v2880 = vadd.f32 %v2876, %v2879
    %vm2881 = vweird.f32 %v2875
    %vm2882 = vweird.f32 %v2876
    %vm2883 = vmor %vm2881, %vm2882
    %v2884 = vsel %vm2883, %v2876, %v2880
    %v2885 = vand.u32 2147483647, %v2875
    %vm2886 = vcmp.eq.f32.partialorder %v2885, 8.507059e+37
    %v2887 = vand.u32 %v2875, 2147483648
    %v2888 = vor.u32 1.1754944e-38, %v2887
    %v2889 = vsel %vm2886, %v2888, %v2884
    %v2890 = vmul.f32 %v2865, %v2889
    %v2891 = vmin.f32 %v2890, 1.0
    %v2892 = vmax.f32 %v2891, -1.0
    %v2893 = vmul.f32 %v2042, %v2042
    %v2894 = vmin.f32 16.0, %v2893
    %v2895 = vmul.f32 %v2894, 2.1237322e-06
    %v2896 = vadd.f32 %v2895, 0.00028619796
    %v2897 = vmul.f32 %v2894, %v2896
    %v2898 = vadd.f32 %v2897, 0.0036580483
    %v2899 = vmul.f32 %v2894, %v2898
    %v2900 = vadd.f32 %v2899, 0.05243302
    %v2901 = vmul.f32 %v2894, %v2900
    %v2902 = vadd.f32 %v2901, 0.18741608
    %v2903 = vmul.f32 %v2894, %v2902
    %v2904 = vadd.f32 %v2903, 1.1283791
    %v2905 = vmul.f32 %v2042, %v2904
    %v2906 = vmul.f32 %v2894, 3.8918573e-05
    %v2907 = vadd.f32 %v2906, 0.001143296
    %v2908 = vmul.f32 %v2894, %v2907
    %v2909 = vadd.f32 %v2908, 0.014752088
    %v2910 = vmul.f32 %v2894, %v2909
    %v2911 = vadd.f32 %v2910, 0.112945676
    %v2912 = vmul.f32 %v2894, %v2911
    %v2913 = vadd.f32 %v2912, 0.4994258
    %v2914 = vmul.f32 %v2894, %v2913
    %v2915 = vadd.f32 %v2914, 1.0
    %v2916 = vrcp.pop %v2915
    %v2917 = vmul.f32 %v2915, %v2916
    %v2918 = vsub.f32 1.0, %v2917
    %v2919 = vmul.f32 %v2916, %v2918
    %v2920 = vadd.f32 %v2916, %v2919
    %vm2921 = vweird.f32 %v2915
    %vm2922 = vweird.f32 %v2916
    %vm2923 = vmor %vm2921, %vm2922
    %v2924 = vsel %vm2923, %v2916, %v2920
    %v2925 = vand.u32 2147483647, %v2915
    %vm2926 = vcmp.eq.f32.partialorder %v2925, 8.507059e+37
    %v2927 = vand.u32 %v2915, 2147483648
    %v2928 = vor.u32 1.1754944e-38, %v2927
    %v2929 = vsel %vm2926, %v2928, %v2924
    %v2930 = vmul.f32 %v2905, %v2929
    %v2931 = vmin.f32 %v2930, 1.0
    %v2932 = vmax.f32 %v2931, -1.0
    %v2933 = vmul.f32 %v2043, %v2043
    %v2934 = vmin.f32 16.0, %v2933
    %v2935 = vmul.f32 %v2934, 2.1237322e-06
    %v2936 = vadd.f32 %v2935, 0.00028619796
    %v2937 = vmul.f32 %v2934, %v2936
    %v2938 = vadd.f32 %v2937, 0.0036580483
    %v2939 = vmul.f32 %v2934, %v2938
    %v2940 = vadd.f32 %v2939, 0.05243302
    %v2941 = vmul.f32 %v2934, %v2940
    %v2942 = vadd.f32 %v2941, 0.18741608
    %v2943 = vmul.f32 %v2934, %v2942
    %v2944 = vadd.f32 %v2943, 1.1283791
    %v2945 = vmul.f32 %v2043, %v2944
    %v2946 = vmul.f32 %v2934, 3.8918573e-05
    %v2947 = vadd.f32 %v2946, 0.001143296
    %v2948 = vmul.f32 %v2934, %v2947
    %v2949 = vadd.f32 %v2948, 0.014752088
    %v2950 = vmul.f32 %v2934, %v2949
    %v2951 = vadd.f32 %v2950, 0.112945676
    %v2952 = vmul.f32 %v2934, %v2951
    %v2953 = vadd.f32 %v2952, 0.4994258
    %v2954 = vmul.f32 %v2934, %v2953
    %v2955 = vadd.f32 %v2954, 1.0
    %v2956 = vrcp.pop %v2955
    %v2957 = vmul.f32 %v2955, %v2956
    %v2958 = vsub.f32 1.0, %v2957
    %v2959 = vmul.f32 %v2956, %v2958
    %v2960 = vadd.f32 %v2956, %v2959
    %vm2961 = vweird.f32 %v2955
    %vm2962 = vweird.f32 %v2956
    %vm2963 = vmor %vm2961, %vm2962
    %v2964 = vsel %vm2963, %v2956, %v2960
    %v2965 = vand.u32 2147483647, %v2955
    %vm2966 = vcmp.eq.f32.partialorder %v2965, 8.507059e+37
    %v2967 = vand.u32 %v2955, 2147483648
    %v2968 = vor.u32 1.1754944e-38, %v2967
    %v2969 = vsel %vm2966, %v2968, %v2964
    %v2970 = vmul.f32 %v2945, %v2969
    %v2971 = vmin.f32 %v2970, 1.0
    %v2972 = vmax.f32 %v2971, -1.0
    %v2973 = vmul.f32 %v2044, %v2044
    %v2974 = vmin.f32 16.0, %v2973
    %v2975 = vmul.f32 %v2974, 2.1237322e-06
    %v2976 = vadd.f32 %v2975, 0.00028619796
    %v2977 = vmul.f32 %v2974, %v2976
    %v2978 = vadd.f32 %v2977, 0.0036580483
    %v2979 = vmul.f32 %v2974, %v2978
    %v2980 = vadd.f32 %v2979, 0.05243302
    %v2981 = vmul.f32 %v2974, %v2980
    %v2982 = vadd.f32 %v2981, 0.18741608
    %v2983 = vmul.f32 %v2974, %v2982
    %v2984 = vadd.f32 %v2983, 1.1283791
    %v2985 = vmul.f32 %v2044, %v2984
    %v2986 = vmul.f32 %v2974, 3.8918573e-05
    %v2987 = vadd.f32 %v2986, 0.001143296
    %v2988 = vmul.f32 %v2974, %v2987
    %v2989 = vadd.f32 %v2988, 0.014752088
    %v2990 = vmul.f32 %v2974, %v2989
    %v2991 = vadd.f32 %v2990, 0.112945676
    %v2992 = vmul.f32 %v2974, %v2991
    %v2993 = vadd.f32 %v2992, 0.4994258
    %v2994 = vmul.f32 %v2974, %v2993
    %v2995 = vadd.f32 %v2994, 1.0
    %v2996 = vrcp.pop %v2995
    %v2997 = vmul.f32 %v2995, %v2996
    %v2998 = vsub.f32 1.0, %v2997
    %v2999 = vmul.f32 %v2996, %v2998
    %v3000 = vadd.f32 %v2996, %v2999
    %vm3001 = vweird.f32 %v2995
    %vm3002 = vweird.f32 %v2996
    %vm3003 = vmor %vm3001, %vm3002
    %v3004 = vsel %vm3003, %v2996, %v3000
    %v3005 = vand.u32 2147483647, %v2995
    %vm3006 = vcmp.eq.f32.partialorder %v3005, 8.507059e+37
    %v3007 = vand.u32 %v2995, 2147483648
    %v3008 = vor.u32 1.1754944e-38, %v3007
    %v3009 = vsel %vm3006, %v3008, %v3004
    %v3010 = vmul.f32 %v2985, %v3009
    %v3011 = vmin.f32 %v3010, 1.0
    %v3012 = vmax.f32 %v3011, -1.0
    %v3013 = vmul.f32 %v2045, %v2045
    %v3014 = vmin.f32 16.0, %v3013
    %v3015 = vmul.f32 %v3014, 2.1237322e-06
    %v3016 = vadd.f32 %v3015, 0.00028619796
    %v3017 = vmul.f32 %v3014, %v3016
    %v3018 = vadd.f32 %v3017, 0.0036580483
    %v3019 = vmul.f32 %v3014, %v3018
    %v3020 = vadd.f32 %v3019, 0.05243302
    %v3021 = vmul.f32 %v3014, %v3020
    %v3022 = vadd.f32 %v3021, 0.18741608
    %v3023 = vmul.f32 %v3014, %v3022
    %v3024 = vadd.f32 %v3023, 1.1283791
    %v3025 = vmul.f32 %v2045, %v3024
    %v3026 = vmul.f32 %v3014, 3.8918573e-05
    %v3027 = vadd.f32 %v3026, 0.001143296
    %v3028 = vmul.f32 %v3014, %v3027
    %v3029 = vadd.f32 %v3028, 0.014752088
    %v3030 = vmul.f32 %v3014, %v3029
    %v3031 = vadd.f32 %v3030, 0.112945676
    %v3032 = vmul.f32 %v3014, %v3031
    %v3033 = vadd.f32 %v3032, 0.4994258
    %v3034 = vmul.f32 %v3014, %v3033
    %v3035 = vadd.f32 %v3034, 1.0
    %v3036 = vrcp.pop %v3035
    %v3037 = vmul.f32 %v3035, %v3036
    %v3038 = vsub.f32 1.0, %v3037
    %v3039 = vmul.f32 %v3036, %v3038
    %v3040 = vadd.f32 %v3036, %v3039
    %vm3041 = vweird.f32 %v3035
    %vm3042 = vweird.f32 %v3036
    %vm3043 = vmor %vm3041, %vm3042
    %v3044 = vsel %vm3043, %v3036, %v3040
    %v3045 = vand.u32 2147483647, %v3035
    %vm3046 = vcmp.eq.f32.partialorder %v3045, 8.507059e+37
    %v3047 = vand.u32 %v3035, 2147483648
    %v3048 = vor.u32 1.1754944e-38, %v3047
    %v3049 = vsel %vm3046, %v3048, %v3044
    %v3050 = vmul.f32 %v3025, %v3049
    %v3051 = vmin.f32 %v3050, 1.0
    %v3052 = vmax.f32 %v3051, -1.0
    %v3053 = vmul.f32 %v2046, %v2046
    %v3054 = vmin.f32 16.0, %v3053
    %v3055 = vmul.f32 %v3054, 2.1237322e-06
    %v3056 = vadd.f32 %v3055, 0.00028619796
    %v3057 = vmul.f32 %v3054, %v3056
    %v3058 = vadd.f32 %v3057, 0.0036580483
    %v3059 = vmul.f32 %v3054, %v3058
    %v3060 = vadd.f32 %v3059, 0.05243302
    %v3061 = vmul.f32 %v3054, %v3060
    %v3062 = vadd.f32 %v3061, 0.18741608
    %v3063 = vmul.f32 %v3054, %v3062
    %v3064 = vadd.f32 %v3063, 1.1283791
    %v3065 = vmul.f32 %v2046, %v3064
    %v3066 = vmul.f32 %v3054, 3.8918573e-05
    %v3067 = vadd.f32 %v3066, 0.001143296
    %v3068 = vmul.f32 %v3054, %v3067
    %v3069 = vadd.f32 %v3068, 0.014752088
    %v3070 = vmul.f32 %v3054, %v3069
    %v3071 = vadd.f32 %v3070, 0.112945676
    %v3072 = vmul.f32 %v3054, %v3071
    %v3073 = vadd.f32 %v3072, 0.4994258
    %v3074 = vmul.f32 %v3054, %v3073
    %v3075 = vadd.f32 %v3074, 1.0
    %v3076 = vrcp.pop %v3075
    %v3077 = vmul.f32 %v3075, %v3076
    %v3078 = vsub.f32 1.0, %v3077
    %v3079 = vmul.f32 %v3076, %v3078
    %v3080 = vadd.f32 %v3076, %v3079
    %vm3081 = vweird.f32 %v3075
    %vm3082 = vweird.f32 %v3076
    %vm3083 = vmor %vm3081, %vm3082
    %v3084 = vsel %vm3083, %v3076, %v3080
    %v3085 = vand.u32 2147483647, %v3075
    %vm3086 = vcmp.eq.f32.partialorder %v3085, 8.507059e+37
    %v3087 = vand.u32 %v3075, 2147483648
    %v3088 = vor.u32 1.1754944e-38, %v3087
    %v3089 = vsel %vm3086, %v3088, %v3084
    %v3090 = vmul.f32 %v3065, %v3089
    %v3091 = vmin.f32 %v3090, 1.0
    %v3092 = vmax.f32 %v3091, -1.0
    %v3093 = vmul.f32 %v2047, %v2047
    %v3094 = vmin.f32 16.0, %v3093
    %v3095 = vmul.f32 %v3094, 2.1237322e-06
    %v3096 = vadd.f32 %v3095, 0.00028619796
    %v3097 = vmul.f32 %v3094, %v3096
    %v3098 = vadd.f32 %v3097, 0.0036580483
    %v3099 = vmul.f32 %v3094, %v3098
    %v3100 = vadd.f32 %v3099, 0.05243302
    %v3101 = vmul.f32 %v3094, %v3100
    %v3102 = vadd.f32 %v3101, 0.18741608
    %v3103 = vmul.f32 %v3094, %v3102
    %v3104 = vadd.f32 %v3103, 1.1283791
    %v3105 = vmul.f32 %v2047, %v3104
    %v3106 = vmul.f32 %v3094, 3.8918573e-05
    %v3107 = vadd.f32 %v3106, 0.001143296
    %v3108 = vmul.f32 %v3094, %v3107
    %v3109 = vadd.f32 %v3108, 0.014752088
    %v3110 = vmul.f32 %v3094, %v3109
    %v3111 = vadd.f32 %v3110, 0.112945676
    %v3112 = vmul.f32 %v3094, %v3111
    %v3113 = vadd.f32 %v3112, 0.4994258
    %v3114 = vmul.f32 %v3094, %v3113
    %v3115 = vadd.f32 %v3114, 1.0
    %v3116 = vrcp.pop %v3115
    %v3117 = vmul.f32 %v3115, %v3116
    %v3118 = vsub.f32 1.0, %v3117
    %v3119 = vmul.f32 %v3116, %v3118
    %v3120 = vadd.f32 %v3116, %v3119
    %vm3121 = vweird.f32 %v3115
    %vm3122 = vweird.f32 %v3116
    %vm3123 = vmor %vm3121, %vm3122
    %v3124 = vsel %vm3123, %v3116, %v3120
    %v3125 = vand.u32 2147483647, %v3115
    %vm3126 = vcmp.eq.f32.partialorder %v3125, 8.507059e+37
    %v3127 = vand.u32 %v3115, 2147483648
    %v3128 = vor.u32 1.1754944e-38, %v3127
    %v3129 = vsel %vm3126, %v3128, %v3124
    %v3130 = vmul.f32 %v3105, %v3129
    %v3131 = vmin.f32 %v3130, 1.0
    %v3132 = vmax.f32 %v3131, -1.0
    %v3133 = vmul.f32 %v2048, %v2048
    %v3134 = vmin.f32 16.0, %v3133
    %v3135 = vmul.f32 %v3134, 2.1237322e-06
    %v3136 = vadd.f32 %v3135, 0.00028619796
    %v3137 = vmul.f32 %v3134, %v3136
    %v3138 = vadd.f32 %v3137, 0.0036580483
    %v3139 = vmul.f32 %v3134, %v3138
    %v3140 = vadd.f32 %v3139, 0.05243302
    %v3141 = vmul.f32 %v3134, %v3140
    %v3142 = vadd.f32 %v3141, 0.18741608
    %v3143 = vmul.f32 %v3134, %v3142
    %v3144 = vadd.f32 %v3143, 1.1283791
    %v3145 = vmul.f32 %v2048, %v3144
    %v3146 = vmul.f32 %v3134, 3.8918573e-05
    %v3147 = vadd.f32 %v3146, 0.001143296
    %v3148 = vmul.f32 %v3134, %v3147
    %v3149 = vadd.f32 %v3148, 0.014752088
    %v3150 = vmul.f32 %v3134, %v3149
    %v3151 = vadd.f32 %v3150, 0.112945676
    %v3152 = vmul.f32 %v3134, %v3151
    %v3153 = vadd.f32 %v3152, 0.4994258
    %v3154 = vmul.f32 %v3134, %v3153
    %v3155 = vadd.f32 %v3154, 1.0
    %v3156 = vrcp.pop %v3155
    %v3157 = vmul.f32 %v3155, %v3156
    %v3158 = vsub.f32 1.0, %v3157
    %v3159 = vmul.f32 %v3156, %v3158
    %v3160 = vadd.f32 %v3156, %v3159
    %vm3161 = vweird.f32 %v3155
    %vm3162 = vweird.f32 %v3156
    %vm3163 = vmor %vm3161, %vm3162
    %v3164 = vsel %vm3163, %v3156, %v3160
    %v3165 = vand.u32 2147483647, %v3155
    %vm3166 = vcmp.eq.f32.partialorder %v3165, 8.507059e+37
    %v3167 = vand.u32 %v3155, 2147483648
    %v3168 = vor.u32 1.1754944e-38, %v3167
    %v3169 = vsel %vm3166, %v3168, %v3164
    %v3170 = vmul.f32 %v3145, %v3169
    %v3171 = vmin.f32 %v3170, 1.0
    %v3172 = vmax.f32 %v3171, -1.0
    %v3173 = vmul.f32 %v2049, %v2049
    %v3174 = vmin.f32 16.0, %v3173
    %v3175 = vmul.f32 %v3174, 2.1237322e-06
    %v3176 = vadd.f32 %v3175, 0.00028619796
    %v3177 = vmul.f32 %v3174, %v3176
    %v3178 = vadd.f32 %v3177, 0.0036580483
    %v3179 = vmul.f32 %v3174, %v3178
    %v3180 = vadd.f32 %v3179, 0.05243302
    %v3181 = vmul.f32 %v3174, %v3180
    %v3182 = vadd.f32 %v3181, 0.18741608
    %v3183 = vmul.f32 %v3174, %v3182
    %v3184 = vadd.f32 %v3183, 1.1283791
    %v3185 = vmul.f32 %v2049, %v3184
    %v3186 = vmul.f32 %v3174, 3.8918573e-05
    %v3187 = vadd.f32 %v3186, 0.001143296
    %v3188 = vmul.f32 %v3174, %v3187
    %v3189 = vadd.f32 %v3188, 0.014752088
    %v3190 = vmul.f32 %v3174, %v3189
    %v3191 = vadd.f32 %v3190, 0.112945676
    %v3192 = vmul.f32 %v3174, %v3191
    %v3193 = vadd.f32 %v3192, 0.4994258
    %v3194 = vmul.f32 %v3174, %v3193
    %v3195 = vadd.f32 %v3194, 1.0
    %v3196 = vrcp.pop %v3195
    %v3197 = vmul.f32 %v3195, %v3196
    %v3198 = vsub.f32 1.0, %v3197
    %v3199 = vmul.f32 %v3196, %v3198
    %v3200 = vadd.f32 %v3196, %v3199
    %vm3201 = vweird.f32 %v3195
    %vm3202 = vweird.f32 %v3196
    %vm3203 = vmor %vm3201, %vm3202
    %v3204 = vsel %vm3203, %v3196, %v3200
    %v3205 = vand.u32 2147483647, %v3195
    %vm3206 = vcmp.eq.f32.partialorder %v3205, 8.507059e+37
    %v3207 = vand.u32 %v3195, 2147483648
    %v3208 = vor.u32 1.1754944e-38, %v3207
    %v3209 = vsel %vm3206, %v3208, %v3204
    %v3210 = vmul.f32 %v3185, %v3209
    %v3211 = vmin.f32 %v3210, 1.0
    %v3212 = vmax.f32 %v3211, -1.0
    %v3213 = vmul.f32 %v2050, %v2050
    %v3214 = vmin.f32 16.0, %v3213
    %v3215 = vmul.f32 %v3214, 2.1237322e-06
    %v3216 = vadd.f32 %v3215, 0.00028619796
    %v3217 = vmul.f32 %v3214, %v3216
    %v3218 = vadd.f32 %v3217, 0.0036580483
    %v3219 = vmul.f32 %v3214, %v3218
    %v3220 = vadd.f32 %v3219, 0.05243302
    %v3221 = vmul.f32 %v3214, %v3220
    %v3222 = vadd.f32 %v3221, 0.18741608
    %v3223 = vmul.f32 %v3214, %v3222
    %v3224 = vadd.f32 %v3223, 1.1283791
    %v3225 = vmul.f32 %v2050, %v3224
    %v3226 = vmul.f32 %v3214, 3.8918573e-05
    %v3227 = vadd.f32 %v3226, 0.001143296
    %v3228 = vmul.f32 %v3214, %v3227
    %v3229 = vadd.f32 %v3228, 0.014752088
    %v3230 = vmul.f32 %v3214, %v3229
    %v3231 = vadd.f32 %v3230, 0.112945676
    %v3232 = vmul.f32 %v3214, %v3231
    %v3233 = vadd.f32 %v3232, 0.4994258
    %v3234 = vmul.f32 %v3214, %v3233
    %v3235 = vadd.f32 %v3234, 1.0
    %v3236 = vrcp.pop %v3235
    %v3237 = vmul.f32 %v3235, %v3236
    %v3238 = vsub.f32 1.0, %v3237
    %v3239 = vmul.f32 %v3236, %v3238
    %v3240 = vadd.f32 %v3236, %v3239
    %vm3241 = vweird.f32 %v3235
    %vm3242 = vweird.f32 %v3236
    %vm3243 = vmor %vm3241, %vm3242
    %v3244 = vsel %vm3243, %v3236, %v3240
    %v3245 = vand.u32 2147483647, %v3235
    %vm3246 = vcmp.eq.f32.partialorder %v3245, 8.507059e+37
    %v3247 = vand.u32 %v3235, 2147483648
    %v3248 = vor.u32 1.1754944e-38, %v3247
    %v3249 = vsel %vm3246, %v3248, %v3244
    %v3250 = vmul.f32 %v3225, %v3249
    %v3251 = vmin.f32 %v3250, 1.0
    %v3252 = vmax.f32 %v3251, -1.0
    %v3253 = vmul.f32 %v2051, %v2051
    %v3254 = vmin.f32 16.0, %v3253
    %v3255 = vmul.f32 %v3254, 2.1237322e-06
    %v3256 = vadd.f32 %v3255, 0.00028619796
    %v3257 = vmul.f32 %v3254, %v3256
    %v3258 = vadd.f32 %v3257, 0.0036580483
    %v3259 = vmul.f32 %v3254, %v3258
    %v3260 = vadd.f32 %v3259, 0.05243302
    %v3261 = vmul.f32 %v3254, %v3260
    %v3262 = vadd.f32 %v3261, 0.18741608
    %v3263 = vmul.f32 %v3254, %v3262
    %v3264 = vadd.f32 %v3263, 1.1283791
    %v3265 = vmul.f32 %v2051, %v3264
    %v3266 = vmul.f32 %v3254, 3.8918573e-05
    %v3267 = vadd.f32 %v3266, 0.001143296
    %v3268 = vmul.f32 %v3254, %v3267
    %v3269 = vadd.f32 %v3268, 0.014752088
    %v3270 = vmul.f32 %v3254, %v3269
    %v3271 = vadd.f32 %v3270, 0.112945676
    %v3272 = vmul.f32 %v3254, %v3271
    %v3273 = vadd.f32 %v3272, 0.4994258
    %v3274 = vmul.f32 %v3254, %v3273
    %v3275 = vadd.f32 %v3274, 1.0
    %v3276 = vrcp.pop %v3275
    %v3277 = vmul.f32 %v3275, %v3276
    %v3278 = vsub.f32 1.0, %v3277
    %v3279 = vmul.f32 %v3276, %v3278
    %v3280 = vadd.f32 %v3276, %v3279
    %vm3281 = vweird.f32 %v3275
    %vm3282 = vweird.f32 %v3276
    %vm3283 = vmor %vm3281, %vm3282
    %v3284 = vsel %vm3283, %v3276, %v3280
    %v3285 = vand.u32 2147483647, %v3275
    %vm3286 = vcmp.eq.f32.partialorder %v3285, 8.507059e+37
    %v3287 = vand.u32 %v3275, 2147483648
    %v3288 = vor.u32 1.1754944e-38, %v3287
    %v3289 = vsel %vm3286, %v3288, %v3284
    %v3290 = vmul.f32 %v3265, %v3289
    %v3291 = vmin.f32 %v3290, 1.0
    %v3292 = vmax.f32 %v3291, -1.0
    %v3293 = vmul.f32 %v2052, %v2052
    %v3294 = vmin.f32 16.0, %v3293
    %v3295 = vmul.f32 %v3294, 2.1237322e-06
    %v3296 = vadd.f32 %v3295, 0.00028619796
    %v3297 = vmul.f32 %v3294, %v3296
    %v3298 = vadd.f32 %v3297, 0.0036580483
    %v3299 = vmul.f32 %v3294, %v3298
    %v3300 = vadd.f32 %v3299, 0.05243302
    %v3301 = vmul.f32 %v3294, %v3300
    %v3302 = vadd.f32 %v3301, 0.18741608
    %v3303 = vmul.f32 %v3294, %v3302
    %v3304 = vadd.f32 %v3303, 1.1283791
    %v3305 = vmul.f32 %v2052, %v3304
    %v3306 = vmul.f32 %v3294, 3.8918573e-05
    %v3307 = vadd.f32 %v3306, 0.001143296
    %v3308 = vmul.f32 %v3294, %v3307
    %v3309 = vadd.f32 %v3308, 0.014752088
    %v3310 = vmul.f32 %v3294, %v3309
    %v3311 = vadd.f32 %v3310, 0.112945676
    %v3312 = vmul.f32 %v3294, %v3311
    %v3313 = vadd.f32 %v3312, 0.4994258
    %v3314 = vmul.f32 %v3294, %v3313
    %v3315 = vadd.f32 %v3314, 1.0
    %v3316 = vrcp.pop %v3315
    %v3317 = vmul.f32 %v3315, %v3316
    %v3318 = vsub.f32 1.0, %v3317
    %v3319 = vmul.f32 %v3316, %v3318
    %v3320 = vadd.f32 %v3316, %v3319
    %vm3321 = vweird.f32 %v3315
    %vm3322 = vweird.f32 %v3316
    %vm3323 = vmor %vm3321, %vm3322
    %v3324 = vsel %vm3323, %v3316, %v3320
    %v3325 = vand.u32 2147483647, %v3315
    %vm3326 = vcmp.eq.f32.partialorder %v3325, 8.507059e+37
    %v3327 = vand.u32 %v3315, 2147483648
    %v3328 = vor.u32 1.1754944e-38, %v3327
    %v3329 = vsel %vm3326, %v3328, %v3324
    %v3330 = vmul.f32 %v3305, %v3329
    %v3331 = vmin.f32 %v3330, 1.0
    %v3332 = vmax.f32 %v3331, -1.0
    %v3333 = vadd.f32 %v2092, 1.0
    %v3334 = vadd.f32 %v2132, 1.0
    %v3335 = vadd.f32 %v2172, 1.0
    %v3336 = vadd.f32 %v2212, 1.0
    %v3337 = vadd.f32 %v2252, 1.0
    %v3338 = vadd.f32 %v2292, 1.0
    %v3339 = vadd.f32 %v2332, 1.0
    %v3340 = vadd.f32 %v2372, 1.0
    %v3341 = vadd.f32 %v2412, 1.0
    %v3342 = vadd.f32 %v2452, 1.0
    %v3343 = vadd.f32 %v2492, 1.0
    %v3344 = vadd.f32 %v2532, 1.0
    %v3345 = vadd.f32 %v2572, 1.0
    %v3346 = vadd.f32 %v2612, 1.0
    %v3347 = vadd.f32 %v2652, 1.0
    %v3348 = vadd.f32 %v2692, 1.0
    %v3349 = vadd.f32 %v2732, 1.0
    %v3350 = vadd.f32 %v2772, 1.0
    %v3351 = vadd.f32 %v2812, 1.0
    %v3352 = vadd.f32 %v2852, 1.0
    %v3353 = vadd.f32 %v2892, 1.0
    %v3354 = vadd.f32 %v2932, 1.0
    %v3355 = vadd.f32 %v2972, 1.0
    %v3356 = vadd.f32 %v3012, 1.0
    %v3357 = vadd.f32 %v3052, 1.0
    %v3358 = vadd.f32 %v3092, 1.0
    %v3359 = vadd.f32 %v3132, 1.0
    %v3360 = vadd.f32 %v3172, 1.0
    %v3361 = vadd.f32 %v3212, 1.0
    %v3362 = vadd.f32 %v3252, 1.0
    %v3363 = vadd.f32 %v3292, 1.0
    %v3364 = vadd.f32 %v3332, 1.0
    %v3365 = vmul.f32 %v1989, %v3333
    %v3366 = vmul.f32 %v1990, %v3334
    %v3367 = vmul.f32 %v1991, %v3335
    %v3368 = vmul.f32 %v1992, %v3336
    %v3369 = vmul.f32 %v1993, %v3337
    %v3370 = vmul.f32 %v1994, %v3338
    %v3371 = vmul.f32 %v1995, %v3339
    %v3372 = vmul.f32 %v1996, %v3340
    %v3373 = vmul.f32 %v1997, %v3341
    %v3374 = vmul.f32 %v1998, %v3342
    %v3375 = vmul.f32 %v1999, %v3343
    %v3376 = vmul.f32 %v2000, %v3344
    %v3377 = vmul.f32 %v2001, %v3345
    %v3378 = vmul.f32 %v2002, %v3346
    %v3379 = vmul.f32 %v2003, %v3347
    %v3380 = vmul.f32 %v2004, %v3348
    %v3381 = vmul.f32 %v2005, %v3349
    %v3382 = vmul.f32 %v2006, %v3350
    %v3383 = vmul.f32 %v2007, %v3351
    %v3384 = vmul.f32 %v2008, %v3352
    %v3385 = vmul.f32 %v2009, %v3353
    %v3386 = vmul.f32 %v2010, %v3354
    %v3387 = vmul.f32 %v2011, %v3355
    %v3388 = vmul.f32 %v2012, %v3356
    %v3389 = vmul.f32 %v2013, %v3357
    %v3390 = vmul.f32 %v2014, %v3358
    %v3391 = vmul.f32 %v2015, %v3359
    %v3392 = vmul.f32 %v2016, %v3360
    %v3393 = vmul.f32 %v2017, %v3361
    %v3394 = vmul.f32 %v2018, %v3362
    %v3395 = vmul.f32 %v2019, %v3363
    %v3396 = vmul.f32 %v2020, %v3364
    %v3397 = vpack.c.bf16 %v3367, %v3365
    %v3398 = vpack.c.bf16 %v3368, %v3366
    %v3399 = vpack.c.bf16 %v3371, %v3369
    %v3400 = vpack.c.bf16 %v3372, %v3370
    %v3401 = vpack.c.bf16 %v3375, %v3373
    %v3402 = vpack.c.bf16 %v3376, %v3374
    %v3403 = vpack.c.bf16 %v3379, %v3377
    %v3404 = vpack.c.bf16 %v3380, %v3378
    %v3405 = vpack.c.bf16 %v3383, %v3381
    %v3406 = vpack.c.bf16 %v3384, %v3382
    %v3407 = vpack.c.bf16 %v3387, %v3385
    %v3408 = vpack.c.bf16 %v3388, %v3386
    %v3409 = vpack.c.bf16 %v3391, %v3389
    %v3410 = vpack.c.bf16 %v3392, %v3390
    %v3411 = vpack.c.bf16 %v3395, %v3393
    %v3412 = vpack.c.bf16 %v3396, %v3394
    %v3413 = vld [vmem:[#allocation11] sm:$0xf]
    %v3414 = vld [vmem:[#allocation11 + $0x4] sm:$0xf]
    %v3415 = vld [vmem:[#allocation11 + $0x8] sm:$0xf]
    %v3416 = vld [vmem:[#allocation11 + $0xc] sm:$0xf]
    %v3417 = vld [vmem:[#allocation11 + $0x10] sm:$0xf]
    %v3418 = vld [vmem:[#allocation11 + $0x14] sm:$0xf]
    %v3419 = vld [vmem:[#allocation11 + $0x18] sm:$0xf]
    %v3420 = vld [vmem:[#allocation11 + $0x1c] sm:$0xf]
    %v3421 = vld [vmem:[#allocation11 + $0x20] sm:$0xf]
    %v3422 = vld [vmem:[#allocation11 + $0x24] sm:$0xf]
    %v3423 = vld [vmem:[#allocation11 + $0x28] sm:$0xf]
    %v3424 = vld [vmem:[#allocation11 + $0x2c] sm:$0xf]
    %v3425 = vld [vmem:[#allocation11 + $0x30] sm:$0xf]
    %v3426 = vld [vmem:[#allocation11 + $0x34] sm:$0xf]
    %v3427 = vld [vmem:[#allocation11 + $0x38] sm:$0xf]
    %v3428 = vld [vmem:[#allocation11 + $0x3c] sm:$0xf]
    %v3429 = vld [vmem:[#allocation11 + $0x40] sm:$0xf]
    %v3430 = vld [vmem:[#allocation11 + $0x44] sm:$0xf]
    %v3431 = vld [vmem:[#allocation11 + $0x48] sm:$0xf]
    %v3432 = vld [vmem:[#allocation11 + $0x4c] sm:$0xf]
    %v3433 = vld [vmem:[#allocation11 + $0x50] sm:$0xf]
    %v3434 = vld [vmem:[#allocation11 + $0x54] sm:$0xf]
    %v3435 = vld [vmem:[#allocation11 + $0x58] sm:$0xf]
    %v3436 = vld [vmem:[#allocation11 + $0x5c] sm:$0xf]
    %v3437 = vld [vmem:[#allocation11 + $0x60] sm:$0xf]
    %v3438 = vld [vmem:[#allocation11 + $0x64] sm:$0xf]
    %v3439 = vld [vmem:[#allocation11 + $0x68] sm:$0xf]
    %v3440 = vld [vmem:[#allocation11 + $0x6c] sm:$0xf]
    %v3441 = vld [vmem:[#allocation11 + $0x70] sm:$0xf]
    %v3442 = vld [vmem:[#allocation11 + $0x74] sm:$0xf]
    %v3443 = vld [vmem:[#allocation11 + $0x78] sm:$0xf]
    %v3444 = vld [vmem:[#allocation11 + $0x7c] sm:$0xf]
    %v3445 = vld [vmem:[%s6] sm:$0x1]
    %v3447 = vperm.slane %v3445, 0
    %v3481 = vunpack.c.l.b16 %v3413
    %v3482 = vunpack.c.l.b16 %v3414
    %v3483 = vunpack.c.l.b16 %v3415
    %v3484 = vunpack.c.l.b16 %v3416
    %v3485 = vunpack.c.l.b16 %v3417
    %v3486 = vunpack.c.l.b16 %v3418
    %v3487 = vunpack.c.l.b16 %v3419
    %v3488 = vunpack.c.l.b16 %v3420
    %v3489 = vunpack.c.l.b16 %v3421
    %v3490 = vunpack.c.l.b16 %v3422
    %v3491 = vunpack.c.l.b16 %v3423
    %v3492 = vunpack.c.l.b16 %v3424
    %v3493 = vunpack.c.l.b16 %v3425
    %v3494 = vunpack.c.l.b16 %v3426
    %v3495 = vunpack.c.l.b16 %v3427
    %v3496 = vunpack.c.l.b16 %v3428
    %v3497 = vunpack.c.l.b16 %v3429
    %v3498 = vunpack.c.l.b16 %v3430
    %v3499 = vunpack.c.l.b16 %v3431
    %v3500 = vunpack.c.l.b16 %v3432
    %v3501 = vunpack.c.l.b16 %v3433
    %v3502 = vunpack.c.l.b16 %v3434
    %v3503 = vunpack.c.l.b16 %v3435
    %v3504 = vunpack.c.l.b16 %v3436
    %v3505 = vunpack.c.l.b16 %v3437
    %v3506 = vunpack.c.l.b16 %v3438
    %v3507 = vunpack.c.l.b16 %v3439
    %v3508 = vunpack.c.l.b16 %v3440
    %v3509 = vunpack.c.l.b16 %v3441
    %v3510 = vunpack.c.l.b16 %v3442
    %v3511 = vunpack.c.l.b16 %v3443
    %v3512 = vunpack.c.l.b16 %v3444
    %v3513 = vpack.c.b16 %v3482, %v3481
    %v3514 = vpack.c.b16 %v3484, %v3483
    %v3515 = vpack.c.b16 %v3486, %v3485
    %v3516 = vpack.c.b16 %v3488, %v3487
    %v3517 = vpack.c.b16 %v3490, %v3489
    %v3518 = vpack.c.b16 %v3492, %v3491
    %v3519 = vpack.c.b16 %v3494, %v3493
    %v3520 = vpack.c.b16 %v3496, %v3495
    %v3521 = vpack.c.b16 %v3498, %v3497
    %v3522 = vpack.c.b16 %v3500, %v3499
    %v3523 = vpack.c.b16 %v3502, %v3501
    %v3524 = vpack.c.b16 %v3504, %v3503
    %v3525 = vpack.c.b16 %v3506, %v3505
    %v3526 = vpack.c.b16 %v3508, %v3507
    %v3527 = vpack.c.b16 %v3510, %v3509
    %v3528 = vpack.c.b16 %v3512, %v3511
    %3545 = vmatpush.bf16.msra.mxu0 %v3520
    %3546 = vmatpush.bf16.msra.mxu0 %v3519
    %3547 = vmatpush.bf16.msra.mxu0 %v3518
    %3548 = vmatpush.bf16.msra.mxu0 %v3517
    %3549 = vmatpush.bf16.msra.mxu0 %v3516
    %3550 = vmatpush.bf16.msra.mxu0 %v3515
    %3551 = vmatpush.bf16.msra.mxu0 %v3514
    %3552 = vmatpush.bf16.msra.mxu0 %v3513
    %3553 = vmatmul.bf16.gmra.mxu0 %v3397
    %v3554 = vpop.f32.mrf.mxu0
    %v3555 = vadd.f32 %v3447, %v3554
    %v3556 = vpop.f32.mrf.mxu0
    %v3557 = vadd.f32 %v3447, %v3556
    %3558 = vmatmul.bf16.gmra.mxu0 %v3399
    %v3559 = vpop.f32.mrf.mxu0
    %v3560 = vadd.f32 %v3447, %v3559
    %v3561 = vpop.f32.mrf.mxu0
    %v3562 = vadd.f32 %v3447, %v3561
    %3563 = vmatmul.bf16.gmra.mxu0 %v3401
    %v3564 = vpop.f32.mrf.mxu0
    %v3565 = vadd.f32 %v3447, %v3564
    %v3566 = vpop.f32.mrf.mxu0
    %v3567 = vadd.f32 %v3447, %v3566
    %3568 = vmatmul.bf16.gmra.mxu0 %v3403
    %v3569 = vpop.f32.mrf.mxu0
    %v3570 = vadd.f32 %v3447, %v3569
    %v3571 = vpop.f32.mrf.mxu0
    %v3572 = vadd.f32 %v3447, %v3571
    %3573 = vmatmul.bf16.gmra.mxu0 %v3405
    %v3574 = vpop.f32.mrf.mxu0
    %v3575 = vadd.f32 %v3447, %v3574
    %v3576 = vpop.f32.mrf.mxu0
    %v3577 = vadd.f32 %v3447, %v3576
    %3578 = vmatmul.bf16.gmra.mxu0 %v3407
    %v3579 = vpop.f32.mrf.mxu0
    %v3580 = vadd.f32 %v3447, %v3579
    %v3581 = vpop.f32.mrf.mxu0
    %v3582 = vadd.f32 %v3447, %v3581
    %3583 = vmatmul.bf16.gmra.mxu0 %v3409
    %v3584 = vpop.f32.mrf.mxu0
    %v3585 = vadd.f32 %v3447, %v3584
    %v3586 = vpop.f32.mrf.mxu0
    %v3587 = vadd.f32 %v3447, %v3586
    %3588 = vmatmul.bf16.gmra.mxu0 %v3411
    %v3589 = vpop.f32.mrf.mxu0
    %v3590 = vadd.f32 %v3447, %v3589
    %v3591 = vpop.f32.mrf.mxu0
    %v3592 = vadd.f32 %v3447, %v3591
    %3593 = vdwg.mxu0
    %3594 = vmatpush.bf16.msra.mxu0 %v3528
    %3595 = vmatpush.bf16.msra.mxu0 %v3527
    %3596 = vmatpush.bf16.msra.mxu0 %v3526
    %3597 = vmatpush.bf16.msra.mxu0 %v3525
    %3598 = vmatpush.bf16.msra.mxu0 %v3524
    %3599 = vmatpush.bf16.msra.mxu0 %v3523
    %3600 = vmatpush.bf16.msra.mxu0 %v3522
    %3601 = vmatpush.bf16.msra.mxu0 %v3521
    %3602 = vmatmul.bf16.gmra.mxu0 %v3398
    %v3603 = vpop.f32.mrf.mxu0
    %v3604 = vadd.f32 %v3555, %v3603
    %v3605 = vpop.f32.mrf.mxu0
    %v3606 = vadd.f32 %v3557, %v3605
    %3607 = vmatmul.bf16.gmra.mxu0 %v3400
    %v3608 = vpop.f32.mrf.mxu0
    %v3609 = vadd.f32 %v3560, %v3608
    %v3610 = vpop.f32.mrf.mxu0
    %v3611 = vadd.f32 %v3562, %v3610
    %3612 = vmatmul.bf16.gmra.mxu0 %v3402
    %v3613 = vpop.f32.mrf.mxu0
    %v3614 = vadd.f32 %v3565, %v3613
    %v3615 = vpop.f32.mrf.mxu0
    %v3616 = vadd.f32 %v3567, %v3615
    %3617 = vmatmul.bf16.gmra.mxu0 %v3404
    %v3618 = vpop.f32.mrf.mxu0
    %v3619 = vadd.f32 %v3570, %v3618
    %v3620 = vpop.f32.mrf.mxu0
    %v3621 = vadd.f32 %v3572, %v3620
    %3622 = vmatmul.bf16.gmra.mxu0 %v3406
    %v3623 = vpop.f32.mrf.mxu0
    %v3624 = vadd.f32 %v3575, %v3623
    %v3625 = vpop.f32.mrf.mxu0
    %v3626 = vadd.f32 %v3577, %v3625
    %3627 = vmatmul.bf16.gmra.mxu0 %v3408
    %v3628 = vpop.f32.mrf.mxu0
    %v3629 = vadd.f32 %v3580, %v3628
    %v3630 = vpop.f32.mrf.mxu0
    %v3631 = vadd.f32 %v3582, %v3630
    %3632 = vmatmul.bf16.gmra.mxu0 %v3410
    %v3633 = vpop.f32.mrf.mxu0
    %v3634 = vadd.f32 %v3585, %v3633
    %v3635 = vpop.f32.mrf.mxu0
    %v3636 = vadd.f32 %v3587, %v3635
    %3637 = vmatmul.bf16.gmra.mxu0 %v3412
    %v3638 = vpop.f32.mrf.mxu0
    %v3639 = vadd.f32 %v3590, %v3638
    %v3640 = vpop.f32.mrf.mxu0
    %v3641 = vadd.f32 %v3592, %v3640
    %3642 = vdwg.mxu0
    %3643 = vst [vmem:[#allocation12] sm:$0xff] %v3604
    %3644 = vst [vmem:[#allocation12 + $0x8] sm:$0xff] %v3606
    %3645 = vst [vmem:[#allocation12 + $0x10] sm:$0xff] %v3609
    %3646 = vst [vmem:[#allocation12 + $0x18] sm:$0xff] %v3611
    %3647 = vst [vmem:[#allocation12 + $0x20] sm:$0xff] %v3614
    %3648 = vst [vmem:[#allocation12 + $0x28] sm:$0xff] %v3616
    %3649 = vst [vmem:[#allocation12 + $0x30] sm:$0xff] %v3619
    %3650 = vst [vmem:[#allocation12 + $0x38] sm:$0xff] %v3621
    %3651 = vst [vmem:[#allocation12 + $0x40] sm:$0xff] %v3624
    %3652 = vst [vmem:[#allocation12 + $0x48] sm:$0xff] %v3626
    %3653 = vst [vmem:[#allocation12 + $0x50] sm:$0xff] %v3629
    %3654 = vst [vmem:[#allocation12 + $0x58] sm:$0xff] %v3631
    %3655 = vst [vmem:[#allocation12 + $0x60] sm:$0xff] %v3634
    %3656 = vst [vmem:[#allocation12 + $0x68] sm:$0xff] %v3636
    %3657 = vst [vmem:[#allocation12 + $0x70] sm:$0xff] %v3639
    %3658 = vst [vmem:[#allocation12 + $0x78] sm:$0xff] %v3641
    // Predicated region
    $region50: #{tpu_custom_call.1} parent=1 // pred_check
      _
    $region51: #{tpu_custom_call.1} parent=1 // pred_check_branch
      %3660 = sbr.rel (0) target = $region53
    $region52: #{tpu_custom_call.1} parent=1 // pred_region
      %3662 = vsyncadd [#allocation5], 0
      %s3663 = sshll.u32 [#allocation12], 4
      %s3664 = int_to_ptr.vmem [resolvable:$true] %s3663
      %s3665 = sshll.u32 %s7, 4
      %s3666 = int_to_ptr.hbm [resolvable:$true] %s3665
      %3671 = dma.vmem_to_hbm [thread:$0]  %s3664, 2048, %s3666, [#allocation5], 128, 128, 8
    $region53: #{tpu_custom_call.1} parent=1 // pred_fallthru
      _
    // Predicated region
    $region54: #{tpu_custom_call.1} parent=1 // pred_check
      _
    $region55: #{tpu_custom_call.1} parent=1 // pred_check_branch
      %3673 = sbr.rel (0) target = $region57
    $region56: #{tpu_custom_call.1} parent=1 // pred_region
      %3675 = dma.done [#allocation5], 2048
    $region57: #{tpu_custom_call.1} parent=1 // pred_fallthru
      _
    %3676 = vsyncpa [#allocation4], 1
    %3677 = vsyncpa [#allocation7], 1
    %3678 = vsyncpa [#allocation10], 1
    %3679 = vsyncpa [#allocation5], 1

</llo_original>
